<compile_context>
chip_gen: v5e
topology: v5e:2x2
jax: 0.10.0
libtpu: 0.0.40
codegen_flags: <defaults>
</compile_context>

<pallas_src>
import math

import jax
import jax.numpy as jnp
from jax.experimental import pallas as pl
from jax.experimental.pallas import tpu as pltpu


def _round_up(x, m):
    return ((x + m - 1) // m) * m


def _make_kernel(num_heads, head_dim, head_size, scale, bb, sq, sk, with_probs):
    """Builds the fused per-batch-block attention kernel."""

    def kernel(hs_ref, ctx_ref, mask_ref,
               wq_ref, bq_ref, wk_ref, bk_ref, wv_ref, bv_ref,
               *out_refs):
        out_ref = out_refs[0]
        probs_ref = out_refs[1] if with_probs else None

        cdt = hs_ref.dtype                 # native MXU feed dtype (bf16 stays bf16)
        in_q = hs_ref.shape[-1]
        in_kv = ctx_ref.shape[-1]

        # ---- Q/K/V projections: one flattened, MXU-filling matmul each ------
        hs = hs_ref[...].reshape(bb * sq, in_q)       # (BB*Sq, H)
        ctx = ctx_ref[...].reshape(bb * sk, in_kv)    # (BB*Sk, C)

        q = jnp.dot(hs, wq_ref[...], preferred_element_type=jnp.float32)
        q = (q + bq_ref[...]) * scale                 # fold 1/sqrt(dh) in once
        k = jnp.dot(ctx, wk_ref[...], preferred_element_type=jnp.float32) + bk_ref[...]
        v = jnp.dot(ctx, wv_ref[...], preferred_element_type=jnp.float32) + bv_ref[...]

        # Back to per-batch-element layout; native dtype for the attention MXU
        # feeds (no-op when inputs are f32), scores/softmax stay f32.
        q3 = q.astype(cdt).reshape(bb, sq, head_size)
        k3 = k.astype(cdt).reshape(bb, sk, head_size)
        v3 = v.astype(cdt).reshape(bb, sk, head_size)

        # Additive key mask broadcast once (hoisted out of the head loop).
        mask = jnp.broadcast_to(mask_ref[...].astype(jnp.float32), (bb, sq, sk))

        # ---- Per-head attention, batched over the BB batch elements ---------
        for h in range(num_heads):                    # static unroll; nh is small
            sl = slice(h * head_dim, (h + 1) * head_dim)
            q_h = q3[:, :, sl]                        # (BB, Sq, dh)
            k_h = k3[:, :, sl]                        # (BB, Sk, dh)
            v_h = v3[:, :, sl]                        # (BB, Sk, dh)

            scores = jnp.einsum("bqd,bkd->bqk", q_h, k_h,
                                preferred_element_type=jnp.float32) + mask
            m = jnp.max(scores, axis=-1, keepdims=True)
            e = jnp.exp(scores - m)
            denom = jnp.sum(e, axis=-1, keepdims=True)
            probs = e * pl.reciprocal(denom, approx=False)   # EUP, not VALU divide

            if with_probs:
                probs_ref[:, h, :, :] = probs.astype(probs_ref.dtype)

            o_h = jnp.einsum("bqk,bkd->bqd", probs.astype(cdt), v_h,
                             preferred_element_type=jnp.float32)
            # This head's columns go straight into the output block (VMEM store);
            # the HBM writeback remains one full-width block DMA.
            out_ref[:, :, sl] = o_h.astype(out_ref.dtype)

    return kernel


def lxmert_attention(hidden_states, context, params, *, num_heads,
                     attention_mask=None, output_attentions=False,
                     block_rows=256):
    """Pallas forward of LxmertAttention (eval mode).

    params: wq/wk/wv of shape (in_dim, head_size), bq/bk/bv of shape (head_size,).
    attention_mask: HF-style additive mask broadcasting over queries:
    (B, Sk), (B, 1, Sk) or (B, 1, 1, Sk).
    """
    B, Sq, H = hidden_states.shape
    _, Sk, C = context.shape
    wq, bq = params["wq"], params["bq"]
    wk, bk = params["wk"], params["bk"]
    wv, bv = params["wv"], params["bv"]
    head_size = wq.shape[1]
    assert head_size % num_heads == 0
    head_dim = head_size // num_heads
    scale = 1.0 / math.sqrt(head_dim)
    dt = hidden_states.dtype

    # ---- padding + batch-block size ---------------------------------------
    sq_p = _round_up(Sq, 8)
    sk_p = _round_up(Sk, 8)
    # BB*Sq ~ block_rows fills the MXU M dim; keep >= 2 grid steps when B > 1
    # so the 'parallel' grid axis can shard batch blocks across TensorCores.
    bb = max(1, min(B, block_rows // sq_p))
    if B > 1:
        bb = min(bb, _round_up(B, 2) // 2)
    b_p = _round_up(B, bb)
    n_steps = b_p // bb

    hs_p = jnp.pad(hidden_states, ((0, b_p - B), (0, sq_p - Sq), (0, 0)))
    ctx_p = jnp.pad(context, ((0, b_p - B), (0, sk_p - Sk), (0, 0)))

    # Additive key mask (f32); padded key columns get -1e9 so exp() underflows
    # to exactly 0 and the softmax over real keys is unchanged.
    if attention_mask is None:
        user_mask = jnp.zeros((B, 1, Sk), jnp.float32)
    else:
        user_mask = attention_mask.reshape(B, 1, Sk).astype(jnp.float32)
    mask_p = jnp.full((b_p, 1, sk_p), -1e9, dtype=jnp.float32)
    mask_p = mask_p.at[:B, :, :Sk].set(user_mask)

    bq2 = bq.reshape(1, head_size).astype(dt)
    bk2 = bk.reshape(1, head_size).astype(dt)
    bv2 = bv.reshape(1, head_size).astype(dt)

    kernel = _make_kernel(num_heads, head_dim, head_size, scale,
                          bb, sq_p, sk_p, output_attentions)

    out_shapes = [jax.ShapeDtypeStruct((b_p, sq_p, head_size), dt)]
    out_specs = [pl.BlockSpec((bb, sq_p, head_size), lambda i: (i, 0, 0))]
    if output_attentions:
        out_shapes.append(
            jax.ShapeDtypeStruct((b_p, num_heads, sq_p, sk_p), jnp.float32))
        out_specs.append(
            pl.BlockSpec((bb, num_heads, sq_p, sk_p), lambda i: (i, 0, 0, 0)))

    # ---- explicit VMEM budget (weights single-buffered, blocks x2) ---------
    isz = jnp.dtype(dt).itemsize
    w_bytes = (H + 2 * C + 3) * head_size * isz
    blk_bytes = (bb * sq_p * H + bb * sk_p * C + bb * sq_p * head_size) * isz
    blk_bytes += bb * sk_p * 4
    if output_attentions:
        blk_bytes += bb * num_heads * sq_p * sk_p * 4
    work_bytes = 3 * bb * max(sq_p, sk_p) * head_size * 4       # f32 q/k/v temps
    vmem_limit = int(min(64 << 20,
                         max(16 << 20,
                             w_bytes + 2 * blk_bytes + work_bytes + (4 << 20))))

    def build(single_buffer_weights):
        wkw = ({"pipeline_mode": pl.Buffered(1)} if single_buffer_weights else {})
        in_specs = [
            pl.BlockSpec((bb, sq_p, H), lambda i: (i, 0, 0)),        # hidden_states
            pl.BlockSpec((bb, sk_p, C), lambda i: (i, 0, 0)),        # context
            pl.BlockSpec((bb, 1, sk_p), lambda i: (i, 0, 0)),        # mask
            pl.BlockSpec((H, head_size), lambda i: (0, 0), **wkw),   # wq (resident)
            pl.BlockSpec((1, head_size), lambda i: (0, 0), **wkw),   # bq
            pl.BlockSpec((C, head_size), lambda i: (0, 0), **wkw),   # wk
            pl.BlockSpec((1, head_size), lambda i: (0, 0), **wkw),   # bk
            pl.BlockSpec((C, head_size), lambda i: (0, 0), **wkw),   # wv
            pl.BlockSpec((1, head_size), lambda i: (0, 0), **wkw),   # bv
        ]
        return pl.pallas_call(
            kernel,
            out_shape=tuple(out_shapes),
            grid_spec=pl.GridSpec(grid=(n_steps,), in_specs=in_specs,
                                  out_specs=tuple(out_specs)),
            compiler_params=pltpu.CompilerParams(
                dimension_semantics=("parallel",),
                vmem_limit_bytes=vmem_limit),
        )

    args = (hs_p, ctx_p, mask_p, wq, bq2, wk, bk2, wv, bv2)
    try:
        outs = build(True)(*args)       # single-buffered resident weights
    except Exception:
        # Fallback for Pallas versions without pl.Buffered(1) single-buffering.
        outs = build(False)(*args)

    out = outs[0][:B, :Sq, :]
    if output_attentions:
        probs = outs[1][:B, :, :Sq, :Sk]
        return out, probs
    return (out,)


def lxmert_attention_ref(hidden_states, context, params, num_heads,
                         attention_mask=None):
    """Pure-JAX reference matching the torch forward (eval mode)."""
    B, Sq, _ = hidden_states.shape
    _, Sk, _ = context.shape
    head_size = params["wq"].shape[1]
    dh = head_size // num_heads
    hp = jax.lax.Precision.HIGHEST

    q = hidden_states @ params["wq"] + params["bq"]
    k = context @ params["wk"] + params["bk"]
    v = context @ params["wv"] + params["bv"]
    q = q.reshape(B, Sq, num_heads, dh).transpose(0, 2, 1, 3)
    k = k.reshape(B, Sk, num_heads, dh).transpose(0, 2, 1, 3)
    v = v.reshape(B, Sk, num_heads, dh).transpose(0, 2, 1, 3)

    scores = jnp.einsum("bhqd,bhkd->bhqk", q, k, precision=hp) / math.sqrt(dh)
    if attention_mask is not None:
        scores = scores + attention_mask
    probs = jax.nn.softmax(scores, axis=-1)
    ctx_layer = jnp.einsum("bhqk,bhkd->bhqd", probs, v, precision=hp)
    ctx_layer = ctx_layer.transpose(0, 2, 1, 3).reshape(B, Sq, head_size)
    return ctx_layer, probs


if __name__ == "__main__":
    key = jax.random.PRNGKey(0)
    B, Sq, Sk = 3, 8, 13            # odd B / Sk exercise the padding path
    hidden = 32
    ctx_dim = 32
    num_heads = 4
    head_size = hidden              # num_heads * head_dim = 4 * 8

    ks = jax.random.split(key, 8)
    hidden_states = jax.random.normal(ks[0], (B, Sq, hidden), dtype=jnp.float32)
    context = jax.random.normal(ks[1], (B, Sk, ctx_dim), dtype=jnp.float32)

    w_scale = 0.2
    params = dict(
        wq=w_scale * jax.random.normal(ks[2], (hidden, head_size), dtype=jnp.float32),
        wk=w_scale * jax.random.normal(ks[3], (ctx_dim, head_size), dtype=jnp.float32),
        wv=w_scale * jax.random.normal(ks[4], (ctx_dim, head_size), dtype=jnp.float32),
        bq=0.05 * jax.random.normal(ks[5], (head_size,), dtype=jnp.float32),
        bk=0.05 * jax.random.normal(ks[6], (head_size,), dtype=jnp.float32),
        bv=0.05 * jax.random.normal(ks[7], (head_size,), dtype=jnp.float32),
    )

    # HF-style additive mask: 0 for keep, -10000 for masked keys.
    lengths = jnp.array([Sk, Sk - 4, Sk - 7], dtype=jnp.int32)
    key_pos = jnp.arange(Sk)[None, :]
    attn_mask = jnp.where(key_pos < lengths[:, None], 0.0, -10000.0).astype(jnp.float32)
    attn_mask4 = attn_mask[:, None, None, :]        # (B, 1, 1, Sk)

    out, probs = lxmert_attention(
        hidden_states, context, params, num_heads=num_heads,
        attention_mask=attn_mask4, output_attentions=True)
    jax.block_until_ready((out, probs))

    ref_out, ref_probs = lxmert_attention_ref(
        hidden_states, context, params, num_heads, attn_mask4)

    assert out.shape == (B, Sq, head_size) and out.dtype == hidden_states.dtype
    assert probs.shape == (B, num_heads, Sq, Sk)
    assert jnp.allclose(out, ref_out, atol=1e-3, rtol=1e-3), \
        float(jnp.max(jnp.abs(out - ref_out)))
    assert jnp.allclose(probs, ref_probs, atol=1e-3, rtol=1e-3), \
        float(jnp.max(jnp.abs(probs - ref_probs)))

    print("KERNEL_OK")
</pallas_src>

<mosaic_0001>
module attributes {stable_mosaic.version = 11 : i64} {
  func.func @kernel(%arg0: i32, %arg1: memref<2x8x32xf32, #tpu.memory_space<vmem>>, %arg2: memref<2x16x32xf32, #tpu.memory_space<vmem>>, %arg3: memref<2x1x16xf32, #tpu.memory_space<vmem>>, %arg4: memref<32x32xf32, #tpu.memory_space<vmem>>, %arg5: memref<1x32xf32, #tpu.memory_space<vmem>>, %arg6: memref<32x32xf32, #tpu.memory_space<vmem>>, %arg7: memref<1x32xf32, #tpu.memory_space<vmem>>, %arg8: memref<32x32xf32, #tpu.memory_space<vmem>>, %arg9: memref<1x32xf32, #tpu.memory_space<vmem>>, %arg10: memref<2x8x32xf32, #tpu.memory_space<vmem>>, %arg11: memref<2x4x8x16xf32, #tpu.memory_space<vmem>>) attributes {dimension_semantics = [#tpu.dimension_semantics<parallel>], iteration_bounds = array<i64: 2>, scalar_prefetch = 0 : i64, scratch_operands = 0 : i64, tpu.core_type = #tpu.core_type<tc>, window_params = [{transform_indices = @transform_0, window_bounds = array<i64: 2, 8, 32>}, {transform_indices = @transform_1, window_bounds = array<i64: 2, 16, 32>}, {transform_indices = @transform_2, window_bounds = array<i64: 2, 1, 16>}, {pipeline_mode = #tpu.pipeline_mode<synchronous>, transform_indices = @transform_3, window_bounds = array<i64: 32, 32>}, {pipeline_mode = #tpu.pipeline_mode<synchronous>, transform_indices = @transform_4, window_bounds = array<i64: 1, 32>}, {pipeline_mode = #tpu.pipeline_mode<synchronous>, transform_indices = @transform_5, window_bounds = array<i64: 32, 32>}, {pipeline_mode = #tpu.pipeline_mode<synchronous>, transform_indices = @transform_6, window_bounds = array<i64: 1, 32>}, {pipeline_mode = #tpu.pipeline_mode<synchronous>, transform_indices = @transform_7, window_bounds = array<i64: 32, 32>}, {pipeline_mode = #tpu.pipeline_mode<synchronous>, transform_indices = @transform_8, window_bounds = array<i64: 1, 32>}, {transform_indices = @transform_9, window_bounds = array<i64: 2, 8, 32>}, {transform_indices = @transform_10, window_bounds = array<i64: 2, 4, 8, 16>}]} {
    %c0 = arith.constant 0 : index
    %c0_0 = arith.constant 0 : index
    %c0_1 = arith.constant 0 : index
    %0 = vector.load %arg1[%c0, %c0_0, %c0_1] : memref<2x8x32xf32, #tpu.memory_space<vmem>>, vector<2x8x32xf32>
    %1 = vector.shape_cast %0 : vector<2x8x32xf32> to vector<16x32xf32>
    %c0_2 = arith.constant 0 : index
    %c0_3 = arith.constant 0 : index
    %c0_4 = arith.constant 0 : index
    %2 = vector.load %arg2[%c0_2, %c0_3, %c0_4] : memref<2x16x32xf32, #tpu.memory_space<vmem>>, vector<2x16x32xf32>
    %3 = vector.shape_cast %2 : vector<2x16x32xf32> to vector<32x32xf32>
    %c0_5 = arith.constant 0 : index
    %c0_6 = arith.constant 0 : index
    %4 = vector.load %arg4[%c0_5, %c0_6] : memref<32x32xf32, #tpu.memory_space<vmem>>, vector<32x32xf32>
    %cst = arith.constant dense<0.000000e+00> : vector<16x32xf32>
    %5 = tpu.matmul %1, %4, %cst {dimension_numbers = #tpu.dot_dimension_numbers<[1], [0], [0], [1], [0, 0, 1, 1], [], []>} : vector<16x32xf32>, vector<32x32xf32>, vector<16x32xf32> -> vector<16x32xf32>
    %c0_7 = arith.constant 0 : index
    %c0_8 = arith.constant 0 : index
    %6 = vector.load %arg5[%c0_7, %c0_8] : memref<1x32xf32, #tpu.memory_space<vmem>>, vector<1x32xf32>
    %7 = vector.broadcast %6 : vector<1x32xf32> to vector<16x32xf32>
    %8 = arith.addf %5, %7 : vector<16x32xf32>
    %cst_9 = arith.constant 0.353553385 : f32
    %9 = vector.broadcast %cst_9 : f32 to vector<16x32xf32>
    %10 = arith.mulf %8, %9 : vector<16x32xf32>
    %c0_10 = arith.constant 0 : index
    %c0_11 = arith.constant 0 : index
    %11 = vector.load %arg6[%c0_10, %c0_11] : memref<32x32xf32, #tpu.memory_space<vmem>>, vector<32x32xf32>
    %cst_12 = arith.constant dense<0.000000e+00> : vector<32x32xf32>
    %12 = tpu.matmul %3, %11, %cst_12 {dimension_numbers = #tpu.dot_dimension_numbers<[1], [0], [0], [1], [0, 0, 1, 1], [], []>} : vector<32x32xf32>, vector<32x32xf32>, vector<32x32xf32> -> vector<32x32xf32>
    %c0_13 = arith.constant 0 : index
    %c0_14 = arith.constant 0 : index
    %13 = vector.load %arg7[%c0_13, %c0_14] : memref<1x32xf32, #tpu.memory_space<vmem>>, vector<1x32xf32>
    %14 = vector.broadcast %13 : vector<1x32xf32> to vector<32x32xf32>
    %15 = arith.addf %12, %14 : vector<32x32xf32>
    %c0_15 = arith.constant 0 : index
    %c0_16 = arith.constant 0 : index
    %16 = vector.load %arg8[%c0_15, %c0_16] : memref<32x32xf32, #tpu.memory_space<vmem>>, vector<32x32xf32>
    %cst_17 = arith.constant dense<0.000000e+00> : vector<32x32xf32>
    %17 = tpu.matmul %3, %16, %cst_17 {dimension_numbers = #tpu.dot_dimension_numbers<[1], [0], [0], [1], [0, 0, 1, 1], [], []>} : vector<32x32xf32>, vector<32x32xf32>, vector<32x32xf32> -> vector<32x32xf32>
    %c0_18 = arith.constant 0 : index
    %c0_19 = arith.constant 0 : index
    %18 = vector.load %arg9[%c0_18, %c0_19] : memref<1x32xf32, #tpu.memory_space<vmem>>, vector<1x32xf32>
    %19 = vector.broadcast %18 : vector<1x32xf32> to vector<32x32xf32>
    %20 = arith.addf %17, %19 : vector<32x32xf32>
    %21 = vector.shape_cast %10 : vector<16x32xf32> to vector<2x8x32xf32>
    %22 = vector.shape_cast %15 : vector<32x32xf32> to vector<2x16x32xf32>
    %23 = vector.shape_cast %20 : vector<32x32xf32> to vector<2x16x32xf32>
    %c0_20 = arith.constant 0 : index
    %c0_21 = arith.constant 0 : index
    %c0_22 = arith.constant 0 : index
    %24 = vector.load %arg3[%c0_20, %c0_21, %c0_22] : memref<2x1x16xf32, #tpu.memory_space<vmem>>, vector<2x1x16xf32>
    %25 = vector.shape_cast %24 : vector<2x1x16xf32> to vector<2x1x16xf32>
    %26 = vector.broadcast %25 : vector<2x1x16xf32> to vector<2x8x16xf32>
    %27 = vector.extract_strided_slice %21 {offsets = [0, 0, 0], sizes = [2, 8, 8], strides = [1, 1, 1]} : vector<2x8x32xf32> to vector<2x8x8xf32>
    %28 = vector.extract_strided_slice %22 {offsets = [0, 0, 0], sizes = [2, 16, 8], strides = [1, 1, 1]} : vector<2x16x32xf32> to vector<2x16x8xf32>
    %29 = vector.extract_strided_slice %23 {offsets = [0, 0, 0], sizes = [2, 16, 8], strides = [1, 1, 1]} : vector<2x16x32xf32> to vector<2x16x8xf32>
    "tpu.trace_start"() <{level = 10 : i32, message = "bqd,bkd->bqk"}> : () -> ()
    %cst_23 = arith.constant dense<0.000000e+00> : vector<2x8x16xf32>
    %30 = tpu.matmul %27, %28, %cst_23 {dimension_numbers = #tpu.dot_dimension_numbers<[2], [2], [1], [1], [0, 0, 0, 1, 1, 1], [0], [0]>} : vector<2x8x8xf32>, vector<2x16x8xf32>, vector<2x8x16xf32> -> vector<2x8x16xf32>
    "tpu.trace_stop"() : () -> ()
    %31 = arith.addf %30, %26 : vector<2x8x16xf32>
    %cst_24 = arith.constant dense<0xFF800000> : vector<2x8xf32>
    %32 = vector.multi_reduction <maximumf>, %31, %cst_24 [2] : vector<2x8x16xf32> to vector<2x8xf32>
    %33 = vector.shape_cast %32 : vector<2x8xf32> to vector<2x8x1xf32>
    %34 = vector.broadcast %33 : vector<2x8x1xf32> to vector<2x8x16xf32>
    %35 = arith.subf %31, %34 : vector<2x8x16xf32>
    %36 = math.exp %35 : vector<2x8x16xf32>
    %cst_25 = arith.constant dense<0.000000e+00> : vector<2x8xf32>
    %37 = vector.multi_reduction <add>, %36, %cst_25 [2] : vector<2x8x16xf32> to vector<2x8xf32>
    %38 = vector.shape_cast %37 : vector<2x8xf32> to vector<2x8x1xf32>
    %39 = tpu.reciprocal %38 : vector<2x8x1xf32> -> vector<2x8x1xf32>
    %40 = vector.broadcast %39 : vector<2x8x1xf32> to vector<2x8x16xf32>
    %41 = arith.mulf %36, %40 : vector<2x8x16xf32>
    %c0_26 = arith.constant 0 : index
    %c0_27 = arith.constant 0 : index
    %c0_28 = arith.constant 0 : index
    %c0_29 = arith.constant 0 : index
    %42 = vector.load %arg11[%c0_26, %c0_27, %c0_28, %c0_29] : memref<2x4x8x16xf32, #tpu.memory_space<vmem>>, vector<2x1x8x16xf32>
    %43 = vector.shape_cast %42 : vector<2x1x8x16xf32> to vector<2x8x16xf32>
    %44 = vector.shape_cast %41 : vector<2x8x16xf32> to vector<2x1x8x16xf32>
    tpu.vector_store %arg11[%c0_26, %c0_27, %c0_28, %c0_29], %44 {strides = array<i32>} : memref<2x4x8x16xf32, #tpu.memory_space<vmem>>, vector<2x1x8x16xf32>,
    "tpu.trace_start"() <{level = 10 : i32, message = "bqk,bkd->bqd"}> : () -> ()
    %cst_30 = arith.constant dense<0.000000e+00> : vector<2x8x8xf32>
    %45 = tpu.matmul %41, %29, %cst_30 {dimension_numbers = #tpu.dot_dimension_numbers<[2], [1], [1], [2], [0, 0, 0, 1, 1, 2], [0], [0]>} : vector<2x8x16xf32>, vector<2x16x8xf32>, vector<2x8x8xf32> -> vector<2x8x8xf32>
    "tpu.trace_stop"() : () -> ()
    %c0_31 = arith.constant 0 : index
    %c0_32 = arith.constant 0 : index
    %c0_33 = arith.constant 0 : index
    %46 = vector.load %arg10[%c0_31, %c0_32, %c0_33] : memref<2x8x32xf32, #tpu.memory_space<vmem>>, vector<2x8x8xf32>
    tpu.vector_store %arg10[%c0_31, %c0_32, %c0_33], %45 {strides = array<i32>} : memref<2x8x32xf32, #tpu.memory_space<vmem>>, vector<2x8x8xf32>,
    %47 = vector.extract_strided_slice %21 {offsets = [0, 0, 8], sizes = [2, 8, 8], strides = [1, 1, 1]} : vector<2x8x32xf32> to vector<2x8x8xf32>
    %48 = vector.extract_strided_slice %22 {offsets = [0, 0, 8], sizes = [2, 16, 8], strides = [1, 1, 1]} : vector<2x16x32xf32> to vector<2x16x8xf32>
    %49 = vector.extract_strided_slice %23 {offsets = [0, 0, 8], sizes = [2, 16, 8], strides = [1, 1, 1]} : vector<2x16x32xf32> to vector<2x16x8xf32>
    "tpu.trace_start"() <{level = 10 : i32, message = "bqd,bkd->bqk"}> : () -> ()
    %cst_34 = arith.constant dense<0.000000e+00> : vector<2x8x16xf32>
    %50 = tpu.matmul %47, %48, %cst_34 {dimension_numbers = #tpu.dot_dimension_numbers<[2], [2], [1], [1], [0, 0, 0, 1, 1, 1], [0], [0]>} : vector<2x8x8xf32>, vector<2x16x8xf32>, vector<2x8x16xf32> -> vector<2x8x16xf32>
    "tpu.trace_stop"() : () -> ()
    %51 = arith.addf %50, %26 : vector<2x8x16xf32>
    %cst_35 = arith.constant dense<0xFF800000> : vector<2x8xf32>
    %52 = vector.multi_reduction <maximumf>, %51, %cst_35 [2] : vector<2x8x16xf32> to vector<2x8xf32>
    %53 = vector.shape_cast %52 : vector<2x8xf32> to vector<2x8x1xf32>
    %54 = vector.broadcast %53 : vector<2x8x1xf32> to vector<2x8x16xf32>
    %55 = arith.subf %51, %54 : vector<2x8x16xf32>
    %56 = math.exp %55 : vector<2x8x16xf32>
    %cst_36 = arith.constant dense<0.000000e+00> : vector<2x8xf32>
    %57 = vector.multi_reduction <add>, %56, %cst_36 [2] : vector<2x8x16xf32> to vector<2x8xf32>
    %58 = vector.shape_cast %57 : vector<2x8xf32> to vector<2x8x1xf32>
    %59 = tpu.reciprocal %58 : vector<2x8x1xf32> -> vector<2x8x1xf32>
    %60 = vector.broadcast %59 : vector<2x8x1xf32> to vector<2x8x16xf32>
    %61 = arith.mulf %56, %60 : vector<2x8x16xf32>
    %c0_37 = arith.constant 0 : index
    %c1 = arith.constant 1 : index
    %c0_38 = arith.constant 0 : index
    %c0_39 = arith.constant 0 : index
    %62 = vector.load %arg11[%c0_37, %c1, %c0_38, %c0_39] : memref<2x4x8x16xf32, #tpu.memory_space<vmem>>, vector<2x1x8x16xf32>
    %63 = vector.shape_cast %62 : vector<2x1x8x16xf32> to vector<2x8x16xf32>
    %64 = vector.shape_cast %61 : vector<2x8x16xf32> to vector<2x1x8x16xf32>
    tpu.vector_store %arg11[%c0_37, %c1, %c0_38, %c0_39], %64 {strides = array<i32>} : memref<2x4x8x16xf32, #tpu.memory_space<vmem>>, vector<2x1x8x16xf32>,
    "tpu.trace_start"() <{level = 10 : i32, message = "bqk,bkd->bqd"}> : () -> ()
    %cst_40 = arith.constant dense<0.000000e+00> : vector<2x8x8xf32>
    %65 = tpu.matmul %61, %49, %cst_40 {dimension_numbers = #tpu.dot_dimension_numbers<[2], [1], [1], [2], [0, 0, 0, 1, 1, 2], [0], [0]>} : vector<2x8x16xf32>, vector<2x16x8xf32>, vector<2x8x8xf32> -> vector<2x8x8xf32>
    "tpu.trace_stop"() : () -> ()
    %c0_41 = arith.constant 0 : index
    %c0_42 = arith.constant 0 : index
    %c8 = arith.constant 8 : index
    %66 = vector.load %arg10[%c0_41, %c0_42, %c8] : memref<2x8x32xf32, #tpu.memory_space<vmem>>, vector<2x8x8xf32>
    tpu.vector_store %arg10[%c0_41, %c0_42, %c8], %65 {strides = array<i32>} : memref<2x8x32xf32, #tpu.memory_space<vmem>>, vector<2x8x8xf32>,
    %67 = vector.extract_strided_slice %21 {offsets = [0, 0, 16], sizes = [2, 8, 8], strides = [1, 1, 1]} : vector<2x8x32xf32> to vector<2x8x8xf32>
    %68 = vector.extract_strided_slice %22 {offsets = [0, 0, 16], sizes = [2, 16, 8], strides = [1, 1, 1]} : vector<2x16x32xf32> to vector<2x16x8xf32>
    %69 = vector.extract_strided_slice %23 {offsets = [0, 0, 16], sizes = [2, 16, 8], strides = [1, 1, 1]} : vector<2x16x32xf32> to vector<2x16x8xf32>
    "tpu.trace_start"() <{level = 10 : i32, message = "bqd,bkd->bqk"}> : () -> ()
    %cst_43 = arith.constant dense<0.000000e+00> : vector<2x8x16xf32>
    %70 = tpu.matmul %67, %68, %cst_43 {dimension_numbers = #tpu.dot_dimension_numbers<[2], [2], [1], [1], [0, 0, 0, 1, 1, 1], [0], [0]>} : vector<2x8x8xf32>, vector<2x16x8xf32>, vector<2x8x16xf32> -> vector<2x8x16xf32>
    "tpu.trace_stop"() : () -> ()
    %71 = arith.addf %70, %26 : vector<2x8x16xf32>
    %cst_44 = arith.constant dense<0xFF800000> : vector<2x8xf32>
    %72 = vector.multi_reduction <maximumf>, %71, %cst_44 [2] : vector<2x8x16xf32> to vector<2x8xf32>
    %73 = vector.shape_cast %72 : vector<2x8xf32> to vector<2x8x1xf32>
    %74 = vector.broadcast %73 : vector<2x8x1xf32> to vector<2x8x16xf32>
    %75 = arith.subf %71, %74 : vector<2x8x16xf32>
    %76 = math.exp %75 : vector<2x8x16xf32>
    %cst_45 = arith.constant dense<0.000000e+00> : vector<2x8xf32>
    %77 = vector.multi_reduction <add>, %76, %cst_45 [2] : vector<2x8x16xf32> to vector<2x8xf32>
    %78 = vector.shape_cast %77 : vector<2x8xf32> to vector<2x8x1xf32>
    %79 = tpu.reciprocal %78 : vector<2x8x1xf32> -> vector<2x8x1xf32>
    %80 = vector.broadcast %79 : vector<2x8x1xf32> to vector<2x8x16xf32>
    %81 = arith.mulf %76, %80 : vector<2x8x16xf32>
    %c0_46 = arith.constant 0 : index
    %c2 = arith.constant 2 : index
    %c0_47 = arith.constant 0 : index
    %c0_48 = arith.constant 0 : index
    %82 = vector.load %arg11[%c0_46, %c2, %c0_47, %c0_48] : memref<2x4x8x16xf32, #tpu.memory_space<vmem>>, vector<2x1x8x16xf32>
    %83 = vector.shape_cast %82 : vector<2x1x8x16xf32> to vector<2x8x16xf32>
    %84 = vector.shape_cast %81 : vector<2x8x16xf32> to vector<2x1x8x16xf32>
    tpu.vector_store %arg11[%c0_46, %c2, %c0_47, %c0_48], %84 {strides = array<i32>} : memref<2x4x8x16xf32, #tpu.memory_space<vmem>>, vector<2x1x8x16xf32>,
    "tpu.trace_start"() <{level = 10 : i32, message = "bqk,bkd->bqd"}> : () -> ()
    %cst_49 = arith.constant dense<0.000000e+00> : vector<2x8x8xf32>
    %85 = tpu.matmul %81, %69, %cst_49 {dimension_numbers = #tpu.dot_dimension_numbers<[2], [1], [1], [2], [0, 0, 0, 1, 1, 2], [0], [0]>} : vector<2x8x16xf32>, vector<2x16x8xf32>, vector<2x8x8xf32> -> vector<2x8x8xf32>
    "tpu.trace_stop"() : () -> ()
    %c0_50 = arith.constant 0 : index
    %c0_51 = arith.constant 0 : index
    %c16 = arith.constant 16 : index
    %86 = vector.load %arg10[%c0_50, %c0_51, %c16] : memref<2x8x32xf32, #tpu.memory_space<vmem>>, vector<2x8x8xf32>
    tpu.vector_store %arg10[%c0_50, %c0_51, %c16], %85 {strides = array<i32>} : memref<2x8x32xf32, #tpu.memory_space<vmem>>, vector<2x8x8xf32>,
    %87 = vector.extract_strided_slice %21 {offsets = [0, 0, 24], sizes = [2, 8, 8], strides = [1, 1, 1]} : vector<2x8x32xf32> to vector<2x8x8xf32>
    %88 = vector.extract_strided_slice %22 {offsets = [0, 0, 24], sizes = [2, 16, 8], strides = [1, 1, 1]} : vector<2x16x32xf32> to vector<2x16x8xf32>
    %89 = vector.extract_strided_slice %23 {offsets = [0, 0, 24], sizes = [2, 16, 8], strides = [1, 1, 1]} : vector<2x16x32xf32> to vector<2x16x8xf32>
    "tpu.trace_start"() <{level = 10 : i32, message = "bqd,bkd->bqk"}> : () -> ()
    %cst_52 = arith.constant dense<0.000000e+00> : vector<2x8x16xf32>
    %90 = tpu.matmul %87, %88, %cst_52 {dimension_numbers = #tpu.dot_dimension_numbers<[2], [2], [1], [1], [0, 0, 0, 1, 1, 1], [0], [0]>} : vector<2x8x8xf32>, vector<2x16x8xf32>, vector<2x8x16xf32> -> vector<2x8x16xf32>
    "tpu.trace_stop"() : () -> ()
    %91 = arith.addf %90, %26 : vector<2x8x16xf32>
    %cst_53 = arith.constant dense<0xFF800000> : vector<2x8xf32>
    %92 = vector.multi_reduction <maximumf>, %91, %cst_53 [2] : vector<2x8x16xf32> to vector<2x8xf32>
    %93 = vector.shape_cast %92 : vector<2x8xf32> to vector<2x8x1xf32>
    %94 = vector.broadcast %93 : vector<2x8x1xf32> to vector<2x8x16xf32>
    %95 = arith.subf %91, %94 : vector<2x8x16xf32>
    %96 = math.exp %95 : vector<2x8x16xf32>
    %cst_54 = arith.constant dense<0.000000e+00> : vector<2x8xf32>
    %97 = vector.multi_reduction <add>, %96, %cst_54 [2] : vector<2x8x16xf32> to vector<2x8xf32>
    %98 = vector.shape_cast %97 : vector<2x8xf32> to vector<2x8x1xf32>
    %99 = tpu.reciprocal %98 : vector<2x8x1xf32> -> vector<2x8x1xf32>
    %100 = vector.broadcast %99 : vector<2x8x1xf32> to vector<2x8x16xf32>
    %101 = arith.mulf %96, %100 : vector<2x8x16xf32>
    %c0_55 = arith.constant 0 : index
    %c3 = arith.constant 3 : index
    %c0_56 = arith.constant 0 : index
    %c0_57 = arith.constant 0 : index
    %102 = vector.load %arg11[%c0_55, %c3, %c0_56, %c0_57] : memref<2x4x8x16xf32, #tpu.memory_space<vmem>>, vector<2x1x8x16xf32>
    %103 = vector.shape_cast %102 : vector<2x1x8x16xf32> to vector<2x8x16xf32>
    %104 = vector.shape_cast %101 : vector<2x8x16xf32> to vector<2x1x8x16xf32>
    tpu.vector_store %arg11[%c0_55, %c3, %c0_56, %c0_57], %104 {strides = array<i32>} : memref<2x4x8x16xf32, #tpu.memory_space<vmem>>, vector<2x1x8x16xf32>,
    "tpu.trace_start"() <{level = 10 : i32, message = "bqk,bkd->bqd"}> : () -> ()
    %cst_58 = arith.constant dense<0.000000e+00> : vector<2x8x8xf32>
    %105 = tpu.matmul %101, %89, %cst_58 {dimension_numbers = #tpu.dot_dimension_numbers<[2], [1], [1], [2], [0, 0, 0, 1, 1, 2], [0], [0]>} : vector<2x8x16xf32>, vector<2x16x8xf32>, vector<2x8x8xf32> -> vector<2x8x8xf32>
    "tpu.trace_stop"() : () -> ()
    %c0_59 = arith.constant 0 : index
    %c0_60 = arith.constant 0 : index
    %c24 = arith.constant 24 : index
    %106 = vector.load %arg10[%c0_59, %c0_60, %c24] : memref<2x8x32xf32, #tpu.memory_space<vmem>>, vector<2x8x8xf32>
    tpu.vector_store %arg10[%c0_59, %c0_60, %c24], %105 {strides = array<i32>} : memref<2x8x32xf32, #tpu.memory_space<vmem>>, vector<2x8x8xf32>,
    return
  }
  func.func @transform_0(%arg0: i32) -> (i32, i32, i32) {
    %c0_i32 = arith.constant 0 : i32
    %c0_i32_0 = arith.constant 0 : i32
    %c0_i32_1 = arith.constant 0 : i32
    return %arg0, %c0_i32, %c0_i32_0 : i32, i32, i32
  }
  func.func @transform_1(%arg0: i32) -> (i32, i32, i32) {
    %c0_i32 = arith.constant 0 : i32
    %c0_i32_0 = arith.constant 0 : i32
    %c0_i32_1 = arith.constant 0 : i32
    return %arg0, %c0_i32, %c0_i32_0 : i32, i32, i32
  }
  func.func @transform_2(%arg0: i32) -> (i32, i32, i32) {
    %c0_i32 = arith.constant 0 : i32
    %c0_i32_0 = arith.constant 0 : i32
    %c0_i32_1 = arith.constant 0 : i32
    return %arg0, %c0_i32, %c0_i32_0 : i32, i32, i32
  }
  func.func @transform_3(%arg0: i32) -> (i32, i32) {
    %c0_i32 = arith.constant 0 : i32
    %c0_i32_0 = arith.constant 0 : i32
    %c0_i32_1 = arith.constant 0 : i32
    return %c0_i32, %c0_i32_0 : i32, i32
  }
  func.func @transform_4(%arg0: i32) -> (i32, i32) {
    %c0_i32 = arith.constant 0 : i32
    %c0_i32_0 = arith.constant 0 : i32
    %c0_i32_1 = arith.constant 0 : i32
    return %c0_i32, %c0_i32_0 : i32, i32
  }
  func.func @transform_5(%arg0: i32) -> (i32, i32) {
    %c0_i32 = arith.constant 0 : i32
    %c0_i32_0 = arith.constant 0 : i32
    %c0_i32_1 = arith.constant 0 : i32
    return %c0_i32, %c0_i32_0 : i32, i32
  }
  func.func @transform_6(%arg0: i32) -> (i32, i32) {
    %c0_i32 = arith.constant 0 : i32
    %c0_i32_0 = arith.constant 0 : i32
    %c0_i32_1 = arith.constant 0 : i32
    return %c0_i32, %c0_i32_0 : i32, i32
  }
  func.func @transform_7(%arg0: i32) -> (i32, i32) {
    %c0_i32 = arith.constant 0 : i32
    %c0_i32_0 = arith.constant 0 : i32
    %c0_i32_1 = arith.constant 0 : i32
    return %c0_i32, %c0_i32_0 : i32, i32
  }
  func.func @transform_8(%arg0: i32) -> (i32, i32) {
    %c0_i32 = arith.constant 0 : i32
    %c0_i32_0 = arith.constant 0 : i32
    %c0_i32_1 = arith.constant 0 : i32
    return %c0_i32, %c0_i32_0 : i32, i32
  }
  func.func @transform_9(%arg0: i32) -> (i32, i32, i32) {
    %c0_i32 = arith.constant 0 : i32
    %c0_i32_0 = arith.constant 0 : i32
    %c0_i32_1 = arith.constant 0 : i32
    return %arg0, %c0_i32, %c0_i32_0 : i32, i32, i32
  }
  func.func @transform_10(%arg0: i32) -> (i32, i32, i32, i32) {
    %c0_i32 = arith.constant 0 : i32
    %c0_i32_0 = arith.constant 0 : i32
    %c0_i32_1 = arith.constant 0 : i32
    %c0_i32_2 = arith.constant 0 : i32
    return %arg0, %c0_i32, %c0_i32_0, %c0_i32_1 : i32, i32, i32, i32
  }
}

module attributes {stable_mosaic.version = 11 : i64} {
  func.func @kernel(%arg0: i32, %arg1: memref<2x8x32xf32, #tpu.memory_space<vmem>>, %arg2: memref<2x16x32xf32, #tpu.memory_space<vmem>>, %arg3: memref<2x1x16xf32, #tpu.memory_space<vmem>>, %arg4: memref<32x32xf32, #tpu.memory_space<vmem>>, %arg5: memref<1x32xf32, #tpu.memory_space<vmem>>, %arg6: memref<32x32xf32, #tpu.memory_space<vmem>>, %arg7: memref<1x32xf32, #tpu.memory_space<vmem>>, %arg8: memref<32x32xf32, #tpu.memory_space<vmem>>, %arg9: memref<1x32xf32, #tpu.memory_space<vmem>>, %arg10: memref<2x8x32xf32, #tpu.memory_space<vmem>>, %arg11: memref<2x4x8x16xf32, #tpu.memory_space<vmem>>) attributes {dimension_semantics = [#tpu.dimension_semantics<parallel>], iteration_bounds = array<i64: 2>, scalar_prefetch = 0 : i64, scratch_operands = 0 : i64, tpu.core_type = #tpu.core_type<tc>, window_params = [{transform_indices = @transform_0, window_bounds = array<i64: 2, 8, 32>}, {transform_indices = @transform_1, window_bounds = array<i64: 2, 16, 32>}, {transform_indices = @transform_2, window_bounds = array<i64: 2, 1, 16>}, {pipeline_mode = #tpu.pipeline_mode<synchronous>, transform_indices = @transform_3, window_bounds = array<i64: 32, 32>}, {pipeline_mode = #tpu.pipeline_mode<synchronous>, transform_indices = @transform_4, window_bounds = array<i64: 1, 32>}, {pipeline_mode = #tpu.pipeline_mode<synchronous>, transform_indices = @transform_5, window_bounds = array<i64: 32, 32>}, {pipeline_mode = #tpu.pipeline_mode<synchronous>, transform_indices = @transform_6, window_bounds = array<i64: 1, 32>}, {pipeline_mode = #tpu.pipeline_mode<synchronous>, transform_indices = @transform_7, window_bounds = array<i64: 32, 32>}, {pipeline_mode = #tpu.pipeline_mode<synchronous>, transform_indices = @transform_8, window_bounds = array<i64: 1, 32>}, {transform_indices = @transform_9, window_bounds = array<i64: 2, 8, 32>}, {transform_indices = @transform_10, window_bounds = array<i64: 2, 4, 8, 16>}]} {
    %c0 = arith.constant 0 : index
    %c0_0 = arith.constant 0 : index
    %c0_1 = arith.constant 0 : index
    %0 = vector.load %arg1[%c0, %c0_0, %c0_1] : memref<2x8x32xf32, #tpu.memory_space<vmem>>, vector<2x8x32xf32>
    %1 = vector.shape_cast %0 : vector<2x8x32xf32> to vector<16x32xf32>
    %c0_2 = arith.constant 0 : index
    %c0_3 = arith.constant 0 : index
    %c0_4 = arith.constant 0 : index
    %2 = vector.load %arg2[%c0_2, %c0_3, %c0_4] : memref<2x16x32xf32, #tpu.memory_space<vmem>>, vector<2x16x32xf32>
    %3 = vector.shape_cast %2 : vector<2x16x32xf32> to vector<32x32xf32>
    %c0_5 = arith.constant 0 : index
    %c0_6 = arith.constant 0 : index
    %4 = vector.load %arg4[%c0_5, %c0_6] : memref<32x32xf32, #tpu.memory_space<vmem>>, vector<32x32xf32>
    %cst = arith.constant dense<0.000000e+00> : vector<16x32xf32>
    %5 = tpu.matmul %1, %4, %cst {dimension_numbers = #tpu.dot_dimension_numbers<[1], [0], [0], [1], [0, 0, 1, 1], [], []>} : vector<16x32xf32>, vector<32x32xf32>, vector<16x32xf32> -> vector<16x32xf32>
    %c0_7 = arith.constant 0 : index
    %c0_8 = arith.constant 0 : index
    %6 = vector.load %arg5[%c0_7, %c0_8] : memref<1x32xf32, #tpu.memory_space<vmem>>, vector<1x32xf32>
    %7 = vector.broadcast %6 : vector<1x32xf32> to vector<16x32xf32>
    %8 = arith.addf %5, %7 : vector<16x32xf32>
    %cst_9 = arith.constant 0.353553385 : f32
    %9 = vector.broadcast %cst_9 : f32 to vector<16x32xf32>
    %10 = arith.mulf %8, %9 : vector<16x32xf32>
    %c0_10 = arith.constant 0 : index
    %c0_11 = arith.constant 0 : index
    %11 = vector.load %arg6[%c0_10, %c0_11] : memref<32x32xf32, #tpu.memory_space<vmem>>, vector<32x32xf32>
    %cst_12 = arith.constant dense<0.000000e+00> : vector<32x32xf32>
    %12 = tpu.matmul %3, %11, %cst_12 {dimension_numbers = #tpu.dot_dimension_numbers<[1], [0], [0], [1], [0, 0, 1, 1], [], []>} : vector<32x32xf32>, vector<32x32xf32>, vector<32x32xf32> -> vector<32x32xf32>
    %c0_13 = arith.constant 0 : index
    %c0_14 = arith.constant 0 : index
    %13 = vector.load %arg7[%c0_13, %c0_14] : memref<1x32xf32, #tpu.memory_space<vmem>>, vector<1x32xf32>
    %14 = vector.broadcast %13 : vector<1x32xf32> to vector<32x32xf32>
    %15 = arith.addf %12, %14 : vector<32x32xf32>
    %c0_15 = arith.constant 0 : index
    %c0_16 = arith.constant 0 : index
    %16 = vector.load %arg8[%c0_15, %c0_16] : memref<32x32xf32, #tpu.memory_space<vmem>>, vector<32x32xf32>
    %cst_17 = arith.constant dense<0.000000e+00> : vector<32x32xf32>
    %17 = tpu.matmul %3, %16, %cst_17 {dimension_numbers = #tpu.dot_dimension_numbers<[1], [0], [0], [1], [0, 0, 1, 1], [], []>} : vector<32x32xf32>, vector<32x32xf32>, vector<32x32xf32> -> vector<32x32xf32>
    %c0_18 = arith.constant 0 : index
    %c0_19 = arith.constant 0 : index
    %18 = vector.load %arg9[%c0_18, %c0_19] : memref<1x32xf32, #tpu.memory_space<vmem>>, vector<1x32xf32>
    %19 = vector.broadcast %18 : vector<1x32xf32> to vector<32x32xf32>
    %20 = arith.addf %17, %19 : vector<32x32xf32>
    %21 = vector.shape_cast %10 : vector<16x32xf32> to vector<2x8x32xf32>
    %22 = vector.shape_cast %15 : vector<32x32xf32> to vector<2x16x32xf32>
    %23 = vector.shape_cast %20 : vector<32x32xf32> to vector<2x16x32xf32>
    %c0_20 = arith.constant 0 : index
    %c0_21 = arith.constant 0 : index
    %c0_22 = arith.constant 0 : index
    %24 = vector.load %arg3[%c0_20, %c0_21, %c0_22] : memref<2x1x16xf32, #tpu.memory_space<vmem>>, vector<2x1x16xf32>
    %25 = vector.shape_cast %24 : vector<2x1x16xf32> to vector<2x1x16xf32>
    %26 = vector.broadcast %25 : vector<2x1x16xf32> to vector<2x8x16xf32>
    %27 = vector.extract_strided_slice %21 {offsets = [0, 0, 0], sizes = [2, 8, 8], strides = [1, 1, 1]} : vector<2x8x32xf32> to vector<2x8x8xf32>
    %28 = vector.extract_strided_slice %22 {offsets = [0, 0, 0], sizes = [2, 16, 8], strides = [1, 1, 1]} : vector<2x16x32xf32> to vector<2x16x8xf32>
    %29 = vector.extract_strided_slice %23 {offsets = [0, 0, 0], sizes = [2, 16, 8], strides = [1, 1, 1]} : vector<2x16x32xf32> to vector<2x16x8xf32>
    "tpu.trace_start"() <{level = 10 : i32, message = "bqd,bkd->bqk"}> : () -> ()
    %cst_23 = arith.constant dense<0.000000e+00> : vector<2x8x16xf32>
    %30 = tpu.matmul %27, %28, %cst_23 {dimension_numbers = #tpu.dot_dimension_numbers<[2], [2], [1], [1], [0, 0, 0, 1, 1, 1], [0], [0]>} : vector<2x8x8xf32>, vector<2x16x8xf32>, vector<2x8x16xf32> -> vector<2x8x16xf32>
    "tpu.trace_stop"() : () -> ()
    %31 = arith.addf %30, %26 : vector<2x8x16xf32>
    %cst_24 = arith.constant dense<0xFF800000> : vector<2x8xf32>
    %32 = vector.multi_reduction <maximumf>, %31, %cst_24 [2] : vector<2x8x16xf32> to vector<2x8xf32>
    %33 = vector.shape_cast %32 : vector<2x8xf32> to vector<2x8x1xf32>
    %34 = vector.broadcast %33 : vector<2x8x1xf32> to vector<2x8x16xf32>
    %35 = arith.subf %31, %34 : vector<2x8x16xf32>
    %36 = math.exp %35 : vector<2x8x16xf32>
    %cst_25 = arith.constant dense<0.000000e+00> : vector<2x8xf32>
    %37 = vector.multi_reduction <add>, %36, %cst_25 [2] : vector<2x8x16xf32> to vector<2x8xf32>
    %38 = vector.shape_cast %37 : vector<2x8xf32> to vector<2x8x1xf32>
    %39 = tpu.reciprocal %38 : vector<2x8x1xf32> -> vector<2x8x1xf32>
    %40 = vector.broadcast %39 : vector<2x8x1xf32> to vector<2x8x16xf32>
    %41 = arith.mulf %36, %40 : vector<2x8x16xf32>
    %c0_26 = arith.constant 0 : index
    %c0_27 = arith.constant 0 : index
    %c0_28 = arith.constant 0 : index
    %c0_29 = arith.constant 0 : index
    %42 = vector.load %arg11[%c0_26, %c0_27, %c0_28, %c0_29] : memref<2x4x8x16xf32, #tpu.memory_space<vmem>>, vector<2x1x8x16xf32>
    %43 = vector.shape_cast %42 : vector<2x1x8x16xf32> to vector<2x8x16xf32>
    %44 = vector.shape_cast %41 : vector<2x8x16xf32> to vector<2x1x8x16xf32>
    tpu.vector_store %arg11[%c0_26, %c0_27, %c0_28, %c0_29], %44 {strides = array<i32>} : memref<2x4x8x16xf32, #tpu.memory_space<vmem>>, vector<2x1x8x16xf32>,
    "tpu.trace_start"() <{level = 10 : i32, message = "bqk,bkd->bqd"}> : () -> ()
    %cst_30 = arith.constant dense<0.000000e+00> : vector<2x8x8xf32>
    %45 = tpu.matmul %41, %29, %cst_30 {dimension_numbers = #tpu.dot_dimension_numbers<[2], [1], [1], [2], [0, 0, 0, 1, 1, 2], [0], [0]>} : vector<2x8x16xf32>, vector<2x16x8xf32>, vector<2x8x8xf32> -> vector<2x8x8xf32>
    "tpu.trace_stop"() : () -> ()
    %c0_31 = arith.constant 0 : index
    %c0_32 = arith.constant 0 : index
    %c0_33 = arith.constant 0 : index
    %46 = vector.load %arg10[%c0_31, %c0_32, %c0_33] : memref<2x8x32xf32, #tpu.memory_space<vmem>>, vector<2x8x8xf32>
    tpu.vector_store %arg10[%c0_31, %c0_32, %c0_33], %45 {strides = array<i32>} : memref<2x8x32xf32, #tpu.memory_space<vmem>>, vector<2x8x8xf32>,
    %47 = vector.extract_strided_slice %21 {offsets = [0, 0, 8], sizes = [2, 8, 8], strides = [1, 1, 1]} : vector<2x8x32xf32> to vector<2x8x8xf32>
    %48 = vector.extract_strided_slice %22 {offsets = [0, 0, 8], sizes = [2, 16, 8], strides = [1, 1, 1]} : vector<2x16x32xf32> to vector<2x16x8xf32>
    %49 = vector.extract_strided_slice %23 {offsets = [0, 0, 8], sizes = [2, 16, 8], strides = [1, 1, 1]} : vector<2x16x32xf32> to vector<2x16x8xf32>
    "tpu.trace_start"() <{level = 10 : i32, message = "bqd,bkd->bqk"}> : () -> ()
    %cst_34 = arith.constant dense<0.000000e+00> : vector<2x8x16xf32>
    %50 = tpu.matmul %47, %48, %cst_34 {dimension_numbers = #tpu.dot_dimension_numbers<[2], [2], [1], [1], [0, 0, 0, 1, 1, 1], [0], [0]>} : vector<2x8x8xf32>, vector<2x16x8xf32>, vector<2x8x16xf32> -> vector<2x8x16xf32>
    "tpu.trace_stop"() : () -> ()
    %51 = arith.addf %50, %26 : vector<2x8x16xf32>
    %cst_35 = arith.constant dense<0xFF800000> : vector<2x8xf32>
    %52 = vector.multi_reduction <maximumf>, %51, %cst_35 [2] : vector<2x8x16xf32> to vector<2x8xf32>
    %53 = vector.shape_cast %52 : vector<2x8xf32> to vector<2x8x1xf32>
    %54 = vector.broadcast %53 : vector<2x8x1xf32> to vector<2x8x16xf32>
    %55 = arith.subf %51, %54 : vector<2x8x16xf32>
    %56 = math.exp %55 : vector<2x8x16xf32>
    %cst_36 = arith.constant dense<0.000000e+00> : vector<2x8xf32>
    %57 = vector.multi_reduction <add>, %56, %cst_36 [2] : vector<2x8x16xf32> to vector<2x8xf32>
    %58 = vector.shape_cast %57 : vector<2x8xf32> to vector<2x8x1xf32>
    %59 = tpu.reciprocal %58 : vector<2x8x1xf32> -> vector<2x8x1xf32>
    %60 = vector.broadcast %59 : vector<2x8x1xf32> to vector<2x8x16xf32>
    %61 = arith.mulf %56, %60 : vector<2x8x16xf32>
    %c0_37 = arith.constant 0 : index
    %c1 = arith.constant 1 : index
    %c0_38 = arith.constant 0 : index
    %c0_39 = arith.constant 0 : index
    %62 = vector.load %arg11[%c0_37, %c1, %c0_38, %c0_39] : memref<2x4x8x16xf32, #tpu.memory_space<vmem>>, vector<2x1x8x16xf32>
    %63 = vector.shape_cast %62 : vector<2x1x8x16xf32> to vector<2x8x16xf32>
    %64 = vector.shape_cast %61 : vector<2x8x16xf32> to vector<2x1x8x16xf32>
    tpu.vector_store %arg11[%c0_37, %c1, %c0_38, %c0_39], %64 {strides = array<i32>} : memref<2x4x8x16xf32, #tpu.memory_space<vmem>>, vector<2x1x8x16xf32>,
    "tpu.trace_start"() <{level = 10 : i32, message = "bqk,bkd->bqd"}> : () -> ()
    %cst_40 = arith.constant dense<0.000000e+00> : vector<2x8x8xf32>
    %65 = tpu.matmul %61, %49, %cst_40 {dimension_numbers = #tpu.dot_dimension_numbers<[2], [1], [1], [2], [0, 0, 0, 1, 1, 2], [0], [0]>} : vector<2x8x16xf32>, vector<2x16x8xf32>, vector<2x8x8xf32> -> vector<2x8x8xf32>
    "tpu.trace_stop"() : () -> ()
    %c0_41 = arith.constant 0 : index
    %c0_42 = arith.constant 0 : index
    %c8 = arith.constant 8 : index
    %66 = vector.load %arg10[%c0_41, %c0_42, %c8] : memref<2x8x32xf32, #tpu.memory_space<vmem>>, vector<2x8x8xf32>
    tpu.vector_store %arg10[%c0_41, %c0_42, %c8], %65 {strides = array<i32>} : memref<2x8x32xf32, #tpu.memory_space<vmem>>, vector<2x8x8xf32>,
    %67 = vector.extract_strided_slice %21 {offsets = [0, 0, 16], sizes = [2, 8, 8], strides = [1, 1, 1]} : vector<2x8x32xf32> to vector<2x8x8xf32>
    %68 = vector.extract_strided_slice %22 {offsets = [0, 0, 16], sizes = [2, 16, 8], strides = [1, 1, 1]} : vector<2x16x32xf32> to vector<2x16x8xf32>
    %69 = vector.extract_strided_slice %23 {offsets = [0, 0, 16], sizes = [2, 16, 8], strides = [1, 1, 1]} : vector<2x16x32xf32> to vector<2x16x8xf32>
    "tpu.trace_start"() <{level = 10 : i32, message = "bqd,bkd->bqk"}> : () -> ()
    %cst_43 = arith.constant dense<0.000000e+00> : vector<2x8x16xf32>
    %70 = tpu.matmul %67, %68, %cst_43 {dimension_numbers = #tpu.dot_dimension_numbers<[2], [2], [1], [1], [0, 0, 0, 1, 1, 1], [0], [0]>} : vector<2x8x8xf32>, vector<2x16x8xf32>, vector<2x8x16xf32> -> vector<2x8x16xf32>
    "tpu.trace_stop"() : () -> ()
    %71 = arith.addf %70, %26 : vector<2x8x16xf32>
    %cst_44 = arith.constant dense<0xFF800000> : vector<2x8xf32>
    %72 = vector.multi_reduction <maximumf>, %71, %cst_44 [2] : vector<2x8x16xf32> to vector<2x8xf32>
    %73 = vector.shape_cast %72 : vector<2x8xf32> to vector<2x8x1xf32>
    %74 = vector.broadcast %73 : vector<2x8x1xf32> to vector<2x8x16xf32>
    %75 = arith.subf %71, %74 : vector<2x8x16xf32>
    %76 = math.exp %75 : vector<2x8x16xf32>
    %cst_45 = arith.constant dense<0.000000e+00> : vector<2x8xf32>
    %77 = vector.multi_reduction <add>, %76, %cst_45 [2] : vector<2x8x16xf32> to vector<2x8xf32>
    %78 = vector.shape_cast %77 : vector<2x8xf32> to vector<2x8x1xf32>
    %79 = tpu.reciprocal %78 : vector<2x8x1xf32> -> vector<2x8x1xf32>
    %80 = vector.broadcast %79 : vector<2x8x1xf32> to vector<2x8x16xf32>
    %81 = arith.mulf %76, %80 : vector<2x8x16xf32>
    %c0_46 = arith.constant 0 : index
    %c2 = arith.constant 2 : index
    %c0_47 = arith.constant 0 : index
    %c0_48 = arith.constant 0 : index
    %82 = vector.load %arg11[%c0_46, %c2, %c0_47, %c0_48] : memref<2x4x8x16xf32, #tpu.memory_space<vmem>>, vector<2x1x8x16xf32>
    %83 = vector.shape_cast %82 : vector<2x1x8x16xf32> to vector<2x8x16xf32>
    %84 = vector.shape_cast %81 : vector<2x8x16xf32> to vector<2x1x8x16xf32>
    tpu.vector_store %arg11[%c0_46, %c2, %c0_47, %c0_48], %84 {strides = array<i32>} : memref<2x4x8x16xf32, #tpu.memory_space<vmem>>, vector<2x1x8x16xf32>,
    "tpu.trace_start"() <{level = 10 : i32, message = "bqk,bkd->bqd"}> : () -> ()
    %cst_49 = arith.constant dense<0.000000e+00> : vector<2x8x8xf32>
    %85 = tpu.matmul %81, %69, %cst_49 {dimension_numbers = #tpu.dot_dimension_numbers<[2], [1], [1], [2], [0, 0, 0, 1, 1, 2], [0], [0]>} : vector<2x8x16xf32>, vector<2x16x8xf32>, vector<2x8x8xf32> -> vector<2x8x8xf32>
    "tpu.trace_stop"() : () -> ()
    %c0_50 = arith.constant 0 : index
    %c0_51 = arith.constant 0 : index
    %c16 = arith.constant 16 : index
    %86 = vector.load %arg10[%c0_50, %c0_51, %c16] : memref<2x8x32xf32, #tpu.memory_space<vmem>>, vector<2x8x8xf32>
    tpu.vector_store %arg10[%c0_50, %c0_51, %c16], %85 {strides = array<i32>} : memref<2x8x32xf32, #tpu.memory_space<vmem>>, vector<2x8x8xf32>,
    %87 = vector.extract_strided_slice %21 {offsets = [0, 0, 24], sizes = [2, 8, 8], strides = [1, 1, 1]} : vector<2x8x32xf32> to vector<2x8x8xf32>
    %88 = vector.extract_strided_slice %22 {offsets = [0, 0, 24], sizes = [2, 16, 8], strides = [1, 1, 1]} : vector<2x16x32xf32> to vector<2x16x8xf32>
    %89 = vector.extract_strided_slice %23 {offsets = [0, 0, 24], sizes = [2, 16, 8], strides = [1, 1, 1]} : vector<2x16x32xf32> to vector<2x16x8xf32>
    "tpu.trace_start"() <{level = 10 : i32, message = "bqd,bkd->bqk"}> : () -> ()
    %cst_52 = arith.constant dense<0.000000e+00> : vector<2x8x16xf32>
    %90 = tpu.matmul %87, %88, %cst_52 {dimension_numbers = #tpu.dot_dimension_numbers<[2], [2], [1], [1], [0, 0, 0, 1, 1, 1], [0], [0]>} : vector<2x8x8xf32>, vector<2x16x8xf32>, vector<2x8x16xf32> -> vector<2x8x16xf32>
    "tpu.trace_stop"() : () -> ()
    %91 = arith.addf %90, %26 : vector<2x8x16xf32>
    %cst_53 = arith.constant dense<0xFF800000> : vector<2x8xf32>
    %92 = vector.multi_reduction <maximumf>, %91, %cst_53 [2] : vector<2x8x16xf32> to vector<2x8xf32>
    %93 = vector.shape_cast %92 : vector<2x8xf32> to vector<2x8x1xf32>
    %94 = vector.broadcast %93 : vector<2x8x1xf32> to vector<2x8x16xf32>
    %95 = arith.subf %91, %94 : vector<2x8x16xf32>
    %96 = math.exp %95 : vector<2x8x16xf32>
    %cst_54 = arith.constant dense<0.000000e+00> : vector<2x8xf32>
    %97 = vector.multi_reduction <add>, %96, %cst_54 [2] : vector<2x8x16xf32> to vector<2x8xf32>
    %98 = vector.shape_cast %97 : vector<2x8xf32> to vector<2x8x1xf32>
    %99 = tpu.reciprocal %98 : vector<2x8x1xf32> -> vector<2x8x1xf32>
    %100 = vector.broadcast %99 : vector<2x8x1xf32> to vector<2x8x16xf32>
    %101 = arith.mulf %96, %100 : vector<2x8x16xf32>
    %c0_55 = arith.constant 0 : index
    %c3 = arith.constant 3 : index
    %c0_56 = arith.constant 0 : index
    %c0_57 = arith.constant 0 : index
    %102 = vector.load %arg11[%c0_55, %c3, %c0_56, %c0_57] : memref<2x4x8x16xf32, #tpu.memory_space<vmem>>, vector<2x1x8x16xf32>
    %103 = vector.shape_cast %102 : vector<2x1x8x16xf32> to vector<2x8x16xf32>
    %104 = vector.shape_cast %101 : vector<2x8x16xf32> to vector<2x1x8x16xf32>
    tpu.vector_store %arg11[%c0_55, %c3, %c0_56, %c0_57], %104 {strides = array<i32>} : memref<2x4x8x16xf32, #tpu.memory_space<vmem>>, vector<2x1x8x16xf32>,
    "tpu.trace_start"() <{level = 10 : i32, message = "bqk,bkd->bqd"}> : () -> ()
    %cst_58 = arith.constant dense<0.000000e+00> : vector<2x8x8xf32>
    %105 = tpu.matmul %101, %89, %cst_58 {dimension_numbers = #tpu.dot_dimension_numbers<[2], [1], [1], [2], [0, 0, 0, 1, 1, 2], [0], [0]>} : vector<2x8x16xf32>, vector<2x16x8xf32>, vector<2x8x8xf32> -> vector<2x8x8xf32>
    "tpu.trace_stop"() : () -> ()
    %c0_59 = arith.constant 0 : index
    %c0_60 = arith.constant 0 : index
    %c24 = arith.constant 24 : index
    %106 = vector.load %arg10[%c0_59, %c0_60, %c24] : memref<2x8x32xf32, #tpu.memory_space<vmem>>, vector<2x8x8xf32>
    tpu.vector_store %arg10[%c0_59, %c0_60, %c24], %105 {strides = array<i32>} : memref<2x8x32xf32, #tpu.memory_space<vmem>>, vector<2x8x8xf32>,
    return
  }
  func.func @transform_0(%arg0: i32) -> (i32, i32, i32) {
    %c0_i32 = arith.constant 0 : i32
    %c0_i32_0 = arith.constant 0 : i32
    %c0_i32_1 = arith.constant 0 : i32
    return %arg0, %c0_i32, %c0_i32_0 : i32, i32, i32
  }
  func.func @transform_1(%arg0: i32) -> (i32, i32, i32) {
    %c0_i32 = arith.constant 0 : i32
    %c0_i32_0 = arith.constant 0 : i32
    %c0_i32_1 = arith.constant 0 : i32
    return %arg0, %c0_i32, %c0_i32_0 : i32, i32, i32
  }
  func.func @transform_2(%arg0: i32) -> (i32, i32, i32) {
    %c0_i32 = arith.constant 0 : i32
    %c0_i32_0 = arith.constant 0 : i32
    %c0_i32_1 = arith.constant 0 : i32
    return %arg0, %c0_i32, %c0_i32_0 : i32, i32, i32
  }
  func.func @transform_3(%arg0: i32) -> (i32, i32) {
    %c0_i32 = arith.constant 0 : i32
    %c0_i32_0 = arith.constant 0 : i32
    %c0_i32_1 = arith.constant 0 : i32
    return %c0_i32, %c0_i32_0 : i32, i32
  }
  func.func @transform_4(%arg0: i32) -> (i32, i32) {
    %c0_i32 = arith.constant 0 : i32
    %c0_i32_0 = arith.constant 0 : i32
    %c0_i32_1 = arith.constant 0 : i32
    return %c0_i32, %c0_i32_0 : i32, i32
  }
  func.func @transform_5(%arg0: i32) -> (i32, i32) {
    %c0_i32 = arith.constant 0 : i32
    %c0_i32_0 = arith.constant 0 : i32
    %c0_i32_1 = arith.constant 0 : i32
    return %c0_i32, %c0_i32_0 : i32, i32
  }
  func.func @transform_6(%arg0: i32) -> (i32, i32) {
    %c0_i32 = arith.constant 0 : i32
    %c0_i32_0 = arith.constant 0 : i32
    %c0_i32_1 = arith.constant 0 : i32
    return %c0_i32, %c0_i32_0 : i32, i32
  }
  func.func @transform_7(%arg0: i32) -> (i32, i32) {
    %c0_i32 = arith.constant 0 : i32
    %c0_i32_0 = arith.constant 0 : i32
    %c0_i32_1 = arith.constant 0 : i32
    return %c0_i32, %c0_i32_0 : i32, i32
  }
  func.func @transform_8(%arg0: i32) -> (i32, i32) {
    %c0_i32 = arith.constant 0 : i32
    %c0_i32_0 = arith.constant 0 : i32
    %c0_i32_1 = arith.constant 0 : i32
    return %c0_i32, %c0_i32_0 : i32, i32
  }
  func.func @transform_9(%arg0: i32) -> (i32, i32, i32) {
    %c0_i32 = arith.constant 0 : i32
    %c0_i32_0 = arith.constant 0 : i32
    %c0_i32_1 = arith.constant 0 : i32
    return %arg0, %c0_i32, %c0_i32_0 : i32, i32, i32
  }
  func.func @transform_10(%arg0: i32) -> (i32, i32, i32, i32) {
    %c0_i32 = arith.constant 0 : i32
    %c0_i32_0 = arith.constant 0 : i32
    %c0_i32_1 = arith.constant 0 : i32
    %c0_i32_2 = arith.constant 0 : i32
    return %arg0, %c0_i32, %c0_i32_0, %c0_i32_1 : i32, i32, i32, i32
  }
}

</mosaic_0001>

<llo_original>
// kernel: tpu_custom_call.1
$region0: #{tpu_custom_call.1}
  #allocation0 [shape = 'u32[]', space=smem, size = 0x4, offset = 0x4, fixed_abs, tag = 'smem constant byte address 0x4 - core index']
  #allocation1 [shape = 'u32[72,128]{1,0:T(1,128)}', space=vmem, size = 0x9000, scoped, tag = 'internal scratch']
  %s0 = inlined_call_operand.hbm [shape: f32[4,8,32], index: 0, kind: input, shape index: {}]
  %s1 = inlined_call_operand.hbm [shape: f32[4,16,32], index: 1, kind: input, shape index: {}]
  %s2 = inlined_call_operand.hbm [shape: f32[4,1,16], index: 2, kind: input, shape index: {}]
  %s3 = inlined_call_operand.hbm [shape: f32[32,32], index: 3, kind: input, shape index: {}]
  %s4 = inlined_call_operand.vmem [shape: f32[1,32], index: 4, kind: input, shape index: {}]
  %s5 = inlined_call_operand.hbm [shape: f32[32,32], index: 5, kind: input, shape index: {}]
  %s6 = inlined_call_operand.vmem [shape: f32[1,32], index: 6, kind: input, shape index: {}]
  %s7 = inlined_call_operand.hbm [shape: f32[32,32], index: 7, kind: input, shape index: {}]
  %s8 = inlined_call_operand.vmem [shape: f32[1,32], index: 8, kind: input, shape index: {}]
  %s9 = inlined_call_operand.hbm [shape: f32[4,8,32], index: 9, kind: output, shape index: {0}]
  %s10 = inlined_call_operand.hbm [shape: f32[4,4,8,16], index: 10, kind: output, shape index: {1}]
  %11 = xla_tuple %s9, %s10
  %s12 = sld [smem:[#allocation0]]
  $region101: #{tpu_custom_call.1} parent=0
    _
  %s14 = ssub.s32 1, %s12
  %s15 = scalar_select 0, %s14, %s12
  $region1: #{tpu_custom_call.1} parent=0
    #allocation2 [shape = 'u8[16384]{0}', space=vmem, size = 0x4000, scoped, tag = 'input window, operand 0']
    #allocation3 [shape = 's32[2]{0}', space=sflag, size = 0x8, scoped, tag = 'scoped memory for tpu_custom_call.1']
    #allocation4 [shape = 's32[2]{0}', space=sflag, size = 0x8, scoped, tag = 'scoped memory for tpu_custom_call.1']
    #allocation5 [shape = 'u8[32768]{0}', space=vmem, size = 0x8000, scoped, tag = 'input window, operand 1']
    #allocation6 [shape = 's32[2]{0}', space=sflag, size = 0x8, scoped, tag = 'scoped memory for tpu_custom_call.1']
    #allocation7 [shape = 'u8[2048]{0}', space=vmem, size = 0x800, scoped, tag = 'input window, operand 2']
    #allocation8 [shape = 'u8[16384]{0}', space=vmem, size = 0x4000, scoped, tag = 'input window, operand 3, single buffered']
    #allocation9 [shape = 's32[1]{0}', space=sflag, size = 0x4, scoped, tag = 'scoped memory for tpu_custom_call.1']
    #allocation10 [shape = 'u8[16384]{0}', space=vmem, size = 0x4000, scoped, tag = 'input window, operand 5, single buffered']
    #allocation11 [shape = 'u8[16384]{0}', space=vmem, size = 0x4000, scoped, tag = 'input window, operand 7, single buffered']
    #allocation12 [shape = 's32[1]{0}', space=sflag, size = 0x4, scoped, tag = 'scoped memory for tpu_custom_call.1']
    #allocation13 [shape = 'u8[16384]{0}', space=vmem, size = 0x4000, scoped, tag = 'output window, operand 0']
    #allocation14 [shape = 'u8[65536]{0}', space=vmem, size = 0x10000, scoped, tag = 'output window, operand 1']
    #allocation15 [shape = 's32[2]{0}', space=sflag, size = 0x8, scoped, tag = 'scoped memory for tpu_custom_call.1']
    %16 = vsyncpa [#allocation3], 0
    %s17 = scalar_lea.sflag [#allocation3], 1
    %18 = vsyncpa %s17, 0
    %19 = vsyncpa [#allocation6], 0
    %s20 = scalar_lea.sflag [#allocation6], 1
    %21 = vsyncpa %s20, 0
    %22 = vsyncpa [#allocation9], 0
    %23 = vsyncpa [#allocation12], 0
    %24 = vsyncpa [#allocation4], 0
    %s25 = scalar_lea.sflag [#allocation4], 1
    %26 = vsyncpa %s25, 0
    %27 = vsyncpa [#allocation15], 0
    %s28 = scalar_lea.sflag [#allocation15], 1
    %29 = vsyncpa %s28, 0
    loop: start=0, step=1, limit=4
    $region2: #{tpu_custom_call.1} parent=1 // loop_pre_header
      _
    $region3: #{tpu_custom_call.1} parent=1 // loop_header
      %s31 = sphi 0, %s35
      %p32 = scmp.ge.s32.totalorder %s31, 4
      %s41 = sphi 0, %s43
      %s44 = sphi 0, %s41
      %s45 = sphi 0, %s44
      %s61 = sphi 0, %s45
      %s67 = sphi 0, %s69
      %s70 = sphi 0, %s67
      %s71 = sphi 0, %s70
      %s87 = sphi 0, %s71
      %s93 = sphi 0, %s95
      %s96 = sphi 0, %s93
      %s97 = sphi 0, %s96
      %s113 = sphi 0, %s97
      %s117 = sphi 0, %s117
      %s119 = sphi 0, %s117
      %s120 = sphi 0, %s119
      %s134 = sphi 0, %s120
      %s138 = sphi 0, %s138
      %s140 = sphi 0, %s138
      %s141 = sphi 0, %s140
      %s155 = sphi 0, %s141
      %s159 = sphi 0, %s159
      %s161 = sphi 0, %s159
      %s162 = sphi 0, %s161
      %s176 = sphi 0, %s162
      %s180 = sphi 0, %s180
      %s182 = sphi 0, %s180
      %s183 = sphi 0, %s182
      %s197 = sphi 0, %s183
      %s201 = sphi 0, %s201
      %s203 = sphi 0, %s201
      %s204 = sphi 0, %s203
      %s218 = sphi 0, %s204
      %s222 = sphi 0, %s222
      %s224 = sphi 0, %s222
      %s225 = sphi 0, %s224
      %s239 = sphi 0, %s225
      %s245 = sphi 0, %s247
      %s248 = sphi 0, %s245
      %s249 = sphi 0, %s248
      %s265 = sphi 0, %s249
      %s271 = sphi 0, %s273
      %s274 = sphi 0, %s271
      %s275 = sphi 0, %s274
      %s291 = sphi 0, %s275
    $region4: #{tpu_custom_call.1} parent=1 // loop_header_branch
      %34 = sbr.rel (%p32) target = $region8
    $region5: #{tpu_custom_call.1} parent=1 // loop_body
      %s36 = ssub.s32 %s31, 1
      %s37 = ssub.s32 %s31, 2
      %s38 = sadd.s32 %s31, 1
      %s39 = ssub.s32 %s31, %s38
      %p40 = scmp.eq.s32.totalorder %s39, 0
      %s42 = sadd.s32 %s41, 1
      %s43 = scalar_select %p40, %s41, %s42
      %p46 = pneg %p40
      %p47 = scmp.eq.s32.totalorder %s31, 1
      %p48 = por %p46, %p47
      %p49 = scmp.ne.s32.totalorder %s41, %s44
      %p50 = scmp.eq.s32.totalorder %s31, 0
      %p51 = por %p49, %p50
      %p52 = scmp.ne.s32.totalorder %s41, %s44
      %p53 = scmp.eq.s32.totalorder %s36, 1
      %p54 = por %p52, %p53
      %p55 = scmp.ne.s32.totalorder %s44, %s45
      %p56 = scmp.eq.s32.totalorder %s36, 0
      %p57 = por %p55, %p56
      %p58 = scmp.ne.s32.totalorder %s44, %s45
      %p59 = scmp.eq.s32.totalorder %s37, 1
      %p60 = por %p58, %p59
      %p62 = scmp.ne.s32.totalorder %s45, %s61
      %p63 = scmp.eq.s32.totalorder %s37, 0
      %p64 = por %p62, %p63
      %s65 = ssub.s32 %s31, %s38
      %p66 = scmp.eq.s32.totalorder %s65, 0
      %s68 = sadd.s32 %s67, 1
      %s69 = scalar_select %p66, %s67, %s68
      %p72 = pneg %p66
      %p73 = scmp.eq.s32.totalorder %s31, 1
      %p74 = por %p72, %p73
      %p75 = scmp.ne.s32.totalorder %s67, %s70
      %p76 = scmp.eq.s32.totalorder %s31, 0
      %p77 = por %p75, %p76
      %p78 = scmp.ne.s32.totalorder %s67, %s70
      %p79 = scmp.eq.s32.totalorder %s36, 1
      %p80 = por %p78, %p79
      %p81 = scmp.ne.s32.totalorder %s70, %s71
      %p82 = scmp.eq.s32.totalorder %s36, 0
      %p83 = por %p81, %p82
      %p84 = scmp.ne.s32.totalorder %s70, %s71
      %p85 = scmp.eq.s32.totalorder %s37, 1
      %p86 = por %p84, %p85
      %p88 = scmp.ne.s32.totalorder %s71, %s87
      %p89 = scmp.eq.s32.totalorder %s37, 0
      %p90 = por %p88, %p89
      %s91 = ssub.s32 %s31, %s38
      %p92 = scmp.eq.s32.totalorder %s91, 0
      %s94 = sadd.s32 %s93, 1
      %s95 = scalar_select %p92, %s93, %s94
      %p98 = pneg %p92
      %p99 = scmp.eq.s32.totalorder %s31, 1
      %p100 = por %p98, %p99
      %p101 = scmp.ne.s32.totalorder %s93, %s96
      %p102 = scmp.eq.s32.totalorder %s31, 0
      %p103 = por %p101, %p102
      %p104 = scmp.ne.s32.totalorder %s93, %s96
      %p105 = scmp.eq.s32.totalorder %s36, 1
      %p106 = por %p104, %p105
      %p107 = scmp.ne.s32.totalorder %s96, %s97
      %p108 = scmp.eq.s32.totalorder %s36, 0
      %p109 = por %p107, %p108
      %p110 = scmp.ne.s32.totalorder %s96, %s97
      %p111 = scmp.eq.s32.totalorder %s37, 1
      %p112 = por %p110, %p111
      %p114 = scmp.ne.s32.totalorder %s97, %s113
      %p115 = scmp.eq.s32.totalorder %s37, 0
      %p116 = por %p114, %p115
      %s118 = sadd.s32 %s117, 1
      %p121 = scmp.eq.s32.totalorder %s31, 1
      %p122 = scmp.ne.s32.totalorder %s117, %s119
      %p123 = scmp.eq.s32.totalorder %s31, 0
      %p124 = por %p122, %p123
      %p125 = scmp.ne.s32.totalorder %s117, %s119
      %p126 = scmp.eq.s32.totalorder %s36, 1
      %p127 = por %p125, %p126
      %p128 = scmp.ne.s32.totalorder %s119, %s120
      %p129 = scmp.eq.s32.totalorder %s36, 0
      %p130 = por %p128, %p129
      %p131 = scmp.ne.s32.totalorder %s119, %s120
      %p132 = scmp.eq.s32.totalorder %s37, 1
      %p133 = por %p131, %p132
      %p135 = scmp.ne.s32.totalorder %s120, %s134
      %p136 = scmp.eq.s32.totalorder %s37, 0
      %p137 = por %p135, %p136
      %s139 = sadd.s32 %s138, 1
      %p142 = scmp.eq.s32.totalorder %s31, 1
      %p143 = scmp.ne.s32.totalorder %s138, %s140
      %p144 = scmp.eq.s32.totalorder %s31, 0
      %p145 = por %p143, %p144
      %p146 = scmp.ne.s32.totalorder %s138, %s140
      %p147 = scmp.eq.s32.totalorder %s36, 1
      %p148 = por %p146, %p147
      %p149 = scmp.ne.s32.totalorder %s140, %s141
      %p150 = scmp.eq.s32.totalorder %s36, 0
      %p151 = por %p149, %p150
      %p152 = scmp.ne.s32.totalorder %s140, %s141
      %p153 = scmp.eq.s32.totalorder %s37, 1
      %p154 = por %p152, %p153
      %p156 = scmp.ne.s32.totalorder %s141, %s155
      %p157 = scmp.eq.s32.totalorder %s37, 0
      %p158 = por %p156, %p157
      %s160 = sadd.s32 %s159, 1
      %p163 = scmp.eq.s32.totalorder %s31, 1
      %p164 = scmp.ne.s32.totalorder %s159, %s161
      %p165 = scmp.eq.s32.totalorder %s31, 0
      %p166 = por %p164, %p165
      %p167 = scmp.ne.s32.totalorder %s159, %s161
      %p168 = scmp.eq.s32.totalorder %s36, 1
      %p169 = por %p167, %p168
      %p170 = scmp.ne.s32.totalorder %s161, %s162
      %p171 = scmp.eq.s32.totalorder %s36, 0
      %p172 = por %p170, %p171
      %p173 = scmp.ne.s32.totalorder %s161, %s162
      %p174 = scmp.eq.s32.totalorder %s37, 1
      %p175 = por %p173, %p174
      %p177 = scmp.ne.s32.totalorder %s162, %s176
      %p178 = scmp.eq.s32.totalorder %s37, 0
      %p179 = por %p177, %p178
      %s181 = sadd.s32 %s180, 1
      %p184 = scmp.eq.s32.totalorder %s31, 1
      %p185 = scmp.ne.s32.totalorder %s180, %s182
      %p186 = scmp.eq.s32.totalorder %s31, 0
      %p187 = por %p185, %p186
      %p188 = scmp.ne.s32.totalorder %s180, %s182
      %p189 = scmp.eq.s32.totalorder %s36, 1
      %p190 = por %p188, %p189
      %p191 = scmp.ne.s32.totalorder %s182, %s183
      %p192 = scmp.eq.s32.totalorder %s36, 0
      %p193 = por %p191, %p192
      %p194 = scmp.ne.s32.totalorder %s182, %s183
      %p195 = scmp.eq.s32.totalorder %s37, 1
      %p196 = por %p194, %p195
      %p198 = scmp.ne.s32.totalorder %s183, %s197
      %p199 = scmp.eq.s32.totalorder %s37, 0
      %p200 = por %p198, %p199
      %s202 = sadd.s32 %s201, 1
      %p205 = scmp.eq.s32.totalorder %s31, 1
      %p206 = scmp.ne.s32.totalorder %s201, %s203
      %p207 = scmp.eq.s32.totalorder %s31, 0
      %p208 = por %p206, %p207
      %p209 = scmp.ne.s32.totalorder %s201, %s203
      %p210 = scmp.eq.s32.totalorder %s36, 1
      %p211 = por %p209, %p210
      %p212 = scmp.ne.s32.totalorder %s203, %s204
      %p213 = scmp.eq.s32.totalorder %s36, 0
      %p214 = por %p212, %p213
      %p215 = scmp.ne.s32.totalorder %s203, %s204
      %p216 = scmp.eq.s32.totalorder %s37, 1
      %p217 = por %p215, %p216
      %p219 = scmp.ne.s32.totalorder %s204, %s218
      %p220 = scmp.eq.s32.totalorder %s37, 0
      %p221 = por %p219, %p220
      %s223 = sadd.s32 %s222, 1
      %p226 = scmp.eq.s32.totalorder %s31, 1
      %p227 = scmp.ne.s32.totalorder %s222, %s224
      %p228 = scmp.eq.s32.totalorder %s31, 0
      %p229 = por %p227, %p228
      %p230 = scmp.ne.s32.totalorder %s222, %s224
      %p231 = scmp.eq.s32.totalorder %s36, 1
      %p232 = por %p230, %p231
      %p233 = scmp.ne.s32.totalorder %s224, %s225
      %p234 = scmp.eq.s32.totalorder %s36, 0
      %p235 = por %p233, %p234
      %p236 = scmp.ne.s32.totalorder %s224, %s225
      %p237 = scmp.eq.s32.totalorder %s37, 1
      %p238 = por %p236, %p237
      %p240 = scmp.ne.s32.totalorder %s225, %s239
      %p241 = scmp.eq.s32.totalorder %s37, 0
      %p242 = por %p240, %p241
      %s243 = ssub.s32 %s31, %s38
      %p244 = scmp.eq.s32.totalorder %s243, 0
      %s246 = sadd.s32 %s245, 1
      %s247 = scalar_select %p244, %s245, %s246
      %p250 = pneg %p244
      %p251 = scmp.eq.s32.totalorder %s31, 1
      %p252 = por %p250, %p251
      %p253 = scmp.ne.s32.totalorder %s245, %s248
      %p254 = scmp.eq.s32.totalorder %s31, 0
      %p255 = por %p253, %p254
      %p256 = scmp.ne.s32.totalorder %s245, %s248
      %p257 = scmp.eq.s32.totalorder %s36, 1
      %p258 = por %p256, %p257
      %p259 = scmp.ne.s32.totalorder %s248, %s249
      %p260 = scmp.eq.s32.totalorder %s36, 0
      %p261 = por %p259, %p260
      %p262 = scmp.ne.s32.totalorder %s248, %s249
      %p263 = scmp.eq.s32.totalorder %s37, 1
      %p264 = por %p262, %p263
      %p266 = scmp.ne.s32.totalorder %s249, %s265
      %p267 = scmp.eq.s32.totalorder %s37, 0
      %p268 = por %p266, %p267
      %s269 = ssub.s32 %s31, %s38
      %p270 = scmp.eq.s32.totalorder %s269, 0
      %s272 = sadd.s32 %s271, 1
      %s273 = scalar_select %p270, %s271, %s272
      %p276 = pneg %p270
      %p277 = scmp.eq.s32.totalorder %s31, 1
      %p278 = por %p276, %p277
      %p279 = scmp.ne.s32.totalorder %s271, %s274
      %p280 = scmp.eq.s32.totalorder %s31, 0
      %p281 = por %p279, %p280
      %p282 = scmp.ne.s32.totalorder %s271, %s274
      %p283 = scmp.eq.s32.totalorder %s36, 1
      %p284 = por %p282, %p283
      %p285 = scmp.ne.s32.totalorder %s274, %s275
      %p286 = scmp.eq.s32.totalorder %s36, 0
      %p287 = por %p285, %p286
      %p288 = scmp.ne.s32.totalorder %s274, %s275
      %p289 = scmp.eq.s32.totalorder %s37, 1
      %p290 = por %p288, %p289
      %p292 = scmp.ne.s32.totalorder %s275, %s291
      %p293 = scmp.eq.s32.totalorder %s37, 0
      %p294 = por %p292, %p293
      %p295 = scmp.le.s32.totalorder 1, %s31
      %p296 = scmp.lt.s32.totalorder %s31, 3
      %p297 = pnand %p295, %p296
      %p298 = pneg %p297
      // Predicated region
      $region9: #{tpu_custom_call.1} parent=5 // pred_check
        _
      $region10: #{tpu_custom_call.1} parent=5 // pred_check_branch
        %300 = sbr.rel (%p297) target = $region12
      $region11: #{tpu_custom_call.1} parent=5 // pred_region
        %s301 = ssub.s32 %s31, 1
        // Predicated region
        $region13: #{tpu_custom_call.1} parent=11 // pred_check
          %p302 = pneg %p130
        $region14: #{tpu_custom_call.1} parent=11 // pred_check_branch
          %304 = sbr.rel (%p302) target = $region16
        $region15: #{tpu_custom_call.1} parent=11 // pred_region
          %306 = vsyncadd [#allocation9], 0
          %s307 = sshll.u32 %s3, 4
          %s308 = int_to_ptr.hbm [resolvable:$true] %s307
          %s309 = sshll.u32 [#allocation8], 4
          %s310 = int_to_ptr.vmem [resolvable:$true] %s309
          %315 = dma.hbm_to_vmem [thread:$0]  %s308, 512, %s310, [#allocation9], 128, 128, 8
        $region16: #{tpu_custom_call.1} parent=11 // pred_fallthru
          _
        // Predicated region
        $region17: #{tpu_custom_call.1} parent=11 // pred_check
          %p316 = pneg %p151
        $region18: #{tpu_custom_call.1} parent=11 // pred_check_branch
          %318 = sbr.rel (%p316) target = $region20
        $region19: #{tpu_custom_call.1} parent=11 // pred_region
          _
        $region20: #{tpu_custom_call.1} parent=11 // pred_fallthru
          _
        // Predicated region
        $region21: #{tpu_custom_call.1} parent=11 // pred_check
          %p319 = pneg %p172
        $region22: #{tpu_custom_call.1} parent=11 // pred_check_branch
          %321 = sbr.rel (%p319) target = $region24
        $region23: #{tpu_custom_call.1} parent=11 // pred_region
          %323 = vsyncadd [#allocation9], 0
          %s324 = sshll.u32 %s5, 4
          %s325 = int_to_ptr.hbm [resolvable:$true] %s324
          %s326 = sshll.u32 [#allocation10], 4
          %s327 = int_to_ptr.vmem [resolvable:$true] %s326
          %332 = dma.hbm_to_vmem [thread:$0]  %s325, 512, %s327, [#allocation9], 128, 128, 8
        $region24: #{tpu_custom_call.1} parent=11 // pred_fallthru
          _
        // Predicated region
        $region25: #{tpu_custom_call.1} parent=11 // pred_check
          %p333 = pneg %p193
        $region26: #{tpu_custom_call.1} parent=11 // pred_check_branch
          %335 = sbr.rel (%p333) target = $region28
        $region27: #{tpu_custom_call.1} parent=11 // pred_region
          _
        $region28: #{tpu_custom_call.1} parent=11 // pred_fallthru
          _
        // Predicated region
        $region29: #{tpu_custom_call.1} parent=11 // pred_check
          %p336 = pneg %p214
        $region30: #{tpu_custom_call.1} parent=11 // pred_check_branch
          %338 = sbr.rel (%p336) target = $region32
        $region31: #{tpu_custom_call.1} parent=11 // pred_region
          %340 = vsyncadd [#allocation12], 0
          %s341 = sshll.u32 %s7, 4
          %s342 = int_to_ptr.hbm [resolvable:$true] %s341
          %s343 = sshll.u32 [#allocation11], 4
          %s344 = int_to_ptr.vmem [resolvable:$true] %s343
          %349 = dma.hbm_to_vmem [thread:$0]  %s342, 512, %s344, [#allocation12], 128, 128, 8
        $region32: #{tpu_custom_call.1} parent=11 // pred_fallthru
          _
        // Predicated region
        $region33: #{tpu_custom_call.1} parent=11 // pred_check
          %p350 = pneg %p235
        $region34: #{tpu_custom_call.1} parent=11 // pred_check_branch
          %352 = sbr.rel (%p350) target = $region36
        $region35: #{tpu_custom_call.1} parent=11 // pred_region
          _
        $region36: #{tpu_custom_call.1} parent=11 // pred_fallthru
          _
      $region12: #{tpu_custom_call.1} parent=5 // pred_fallthru
        _
      %p353 = scmp.lt.s32.totalorder %s31, 2
      // Predicated region
      $region37: #{tpu_custom_call.1} parent=5 // pred_check
        %p354 = pneg %p353
      $region38: #{tpu_custom_call.1} parent=5 // pred_check_branch
        %356 = sbr.rel (%p354) target = $region40
      $region39: #{tpu_custom_call.1} parent=5 // pred_region
        // Predicated region
        $region41: #{tpu_custom_call.1} parent=39 // pred_check
          %p357 = pneg %p51
        $region42: #{tpu_custom_call.1} parent=39 // pred_check_branch
          %359 = sbr.rel (%p357) target = $region44
        $region43: #{tpu_custom_call.1} parent=39 // pred_region
          %s360 = sand.u32 %s41, 1
          %s361 = scalar_lea.sflag [#allocation3], %s360
          %s362 = sand.u32 %s41, 1
          %s363 = smul.addr %s362, 16
          %s364 = scalar_lea.vmem [#allocation2], %s363
          %s365 = smul.u32 2, %s31
          %367 = vsyncadd %s361, 0
          %s368 = smul.addr %s365, 8
          %s369 = scalar_lea.hbm %s0, %s368
          %s370 = sshll.u32 %s369, 4
          %s371 = int_to_ptr.hbm [resolvable:$true] %s370
          %s372 = sshll.u32 %s364, 4
          %s373 = int_to_ptr.vmem [resolvable:$true] %s372
          %378 = dma.hbm_to_vmem [thread:$0]  %s371, 256, %s373, %s361, 128, 128, 8
        $region44: #{tpu_custom_call.1} parent=39 // pred_fallthru
          _
        // Predicated region
        $region45: #{tpu_custom_call.1} parent=39 // pred_check
          %p379 = pneg %p77
        $region46: #{tpu_custom_call.1} parent=39 // pred_check_branch
          %381 = sbr.rel (%p379) target = $region48
        $region47: #{tpu_custom_call.1} parent=39 // pred_region
          %s382 = sand.u32 %s31, 1
          %s383 = scalar_lea.sflag [#allocation6], %s382
          %s384 = sand.u32 %s67, 1
          %s385 = smul.addr %s384, 32
          %s386 = scalar_lea.vmem [#allocation5], %s385
          %s387 = smul.u32 2, %s31
          %389 = vsyncadd %s383, 0
          %s390 = smul.addr %s387, 2
          %s391 = smul.addr %s390, 8
          %s392 = scalar_lea.hbm %s1, %s391
          %s393 = sshll.u32 %s392, 4
          %s394 = int_to_ptr.hbm [resolvable:$true] %s393
          %s395 = sshll.u32 %s386, 4
          %s396 = int_to_ptr.vmem [resolvable:$true] %s395
          %401 = dma.hbm_to_vmem [thread:$0]  %s394, 512, %s396, %s383, 128, 128, 8
        $region48: #{tpu_custom_call.1} parent=39 // pred_fallthru
          _
        // Predicated region
        $region49: #{tpu_custom_call.1} parent=39 // pred_check
          %p402 = pneg %p103
        $region50: #{tpu_custom_call.1} parent=39 // pred_check_branch
          %404 = sbr.rel (%p402) target = $region52
        $region51: #{tpu_custom_call.1} parent=39 // pred_region
          %s405 = sand.u32 %s31, 1
          %s406 = scalar_lea.sflag [#allocation6], %s405
          %s407 = sand.u32 %s93, 1
          %s408 = smul.addr %s407, 2
          %s409 = scalar_lea.vmem [#allocation7], %s408
          %s410 = smul.u32 2, %s31
          %412 = vsyncadd %s406, 0
          %s413 = scalar_lea.hbm %s2, %s410
          %s414 = sshll.u32 %s413, 4
          %s415 = int_to_ptr.hbm [resolvable:$true] %s414
          %s416 = sshll.u32 %s409, 4
          %s417 = int_to_ptr.vmem [resolvable:$true] %s416
          %422 = dma.hbm_to_vmem [thread:$0]  %s415, 32, %s417, %s406, 16, 16, 1
        $region52: #{tpu_custom_call.1} parent=39 // pred_fallthru
          _
      $region40: #{tpu_custom_call.1} parent=5 // pred_fallthru
        _
      %p423 = scmp.le.s32.totalorder 1, %s31
      %p424 = scmp.lt.s32.totalorder %s31, 3
      %p425 = pnand %p423, %p424
      %p426 = pneg %p425
      // Predicated region
      $region53: #{tpu_custom_call.1} parent=5 // pred_check
        _
      $region54: #{tpu_custom_call.1} parent=5 // pred_check_branch
        %428 = sbr.rel (%p425) target = $region56
      $region55: #{tpu_custom_call.1} parent=5 // pred_region
        %s429 = ssub.s32 %s31, 1
        %s430 = sand.u32 %s44, 1
        %s431 = scalar_lea.sflag [#allocation3], %s430
        %s432 = sand.u32 %s44, 1
        %s433 = smul.addr %s432, 16
        %s434 = scalar_lea.vmem [#allocation2], %s433
        // Predicated region
        $region57: #{tpu_custom_call.1} parent=55 // pred_check
          %p435 = pneg %p57
        $region58: #{tpu_custom_call.1} parent=55 // pred_check_branch
          %437 = sbr.rel (%p435) target = $region60
        $region59: #{tpu_custom_call.1} parent=55 // pred_region
          %439 = dma.done %s431, 256
        $region60: #{tpu_custom_call.1} parent=55 // pred_fallthru
          _
        %s440 = sand.u32 %s36, 1
        %s441 = scalar_lea.sflag [#allocation6], %s440
        %s442 = sand.u32 %s70, 1
        %s443 = smul.addr %s442, 32
        %s444 = scalar_lea.vmem [#allocation5], %s443
        // Predicated region
        $region61: #{tpu_custom_call.1} parent=55 // pred_check
          %p445 = pneg %p83
        $region62: #{tpu_custom_call.1} parent=55 // pred_check_branch
          %447 = sbr.rel (%p445) target = $region64
        $region63: #{tpu_custom_call.1} parent=55 // pred_region
          %449 = dma.done %s441, 512
        $region64: #{tpu_custom_call.1} parent=55 // pred_fallthru
          _
        %s450 = sand.u32 %s36, 1
        %s451 = scalar_lea.sflag [#allocation6], %s450
        %s452 = sand.u32 %s96, 1
        %s453 = smul.addr %s452, 2
        %s454 = scalar_lea.vmem [#allocation7], %s453
        // Predicated region
        $region65: #{tpu_custom_call.1} parent=55 // pred_check
          %p455 = pneg %p109
        $region66: #{tpu_custom_call.1} parent=55 // pred_check_branch
          %457 = sbr.rel (%p455) target = $region68
        $region67: #{tpu_custom_call.1} parent=55 // pred_region
          %459 = dma.done %s451, 32
        $region68: #{tpu_custom_call.1} parent=55 // pred_fallthru
          _
        // Predicated region
        $region69: #{tpu_custom_call.1} parent=55 // pred_check
          %p460 = pneg %p130
        $region70: #{tpu_custom_call.1} parent=55 // pred_check_branch
          %462 = sbr.rel (%p460) target = $region72
        $region71: #{tpu_custom_call.1} parent=55 // pred_region
          %464 = dma.done [#allocation9], 512
        $region72: #{tpu_custom_call.1} parent=55 // pred_fallthru
          _
        // Predicated region
        $region73: #{tpu_custom_call.1} parent=55 // pred_check
          %p465 = pneg %p172
        $region74: #{tpu_custom_call.1} parent=55 // pred_check_branch
          %467 = sbr.rel (%p465) target = $region76
        $region75: #{tpu_custom_call.1} parent=55 // pred_region
          %469 = dma.done [#allocation9], 512
        $region76: #{tpu_custom_call.1} parent=55 // pred_fallthru
          _
        // Predicated region
        $region77: #{tpu_custom_call.1} parent=55 // pred_check
          %p470 = pneg %p214
        $region78: #{tpu_custom_call.1} parent=55 // pred_check_branch
          %472 = sbr.rel (%p470) target = $region80
        $region79: #{tpu_custom_call.1} parent=55 // pred_region
          %474 = dma.done [#allocation12], 512
        $region80: #{tpu_custom_call.1} parent=55 // pred_fallthru
          _
        %s475 = sand.u32 %s44, 1
        %s476 = scalar_lea.sflag [#allocation3], %s475
        %s477 = sand.u32 %s44, 1
        %s478 = smul.addr %s477, 16
        %s479 = scalar_lea.vmem [#allocation2], %s478
        %p480 = pneg %p57
        %p481 = pneg %p54
        %s482 = sand.u32 %s36, 1
        %s483 = scalar_lea.sflag [#allocation6], %s482
        %s484 = sand.u32 %s70, 1
        %s485 = smul.addr %s484, 32
        %s486 = scalar_lea.vmem [#allocation5], %s485
        %p487 = pneg %p83
        %p488 = pneg %p80
        %s489 = sand.u32 %s36, 1
        %s490 = scalar_lea.sflag [#allocation6], %s489
        %s491 = sand.u32 %s96, 1
        %s492 = smul.addr %s491, 2
        %s493 = scalar_lea.vmem [#allocation7], %s492
        %p494 = pneg %p109
        %p495 = pneg %p106
        %p496 = pneg %p130
        %p497 = pneg %p127
        %p498 = pneg %p151
        %p499 = pneg %p148
        %p500 = pneg %p172
        %p501 = pneg %p169
        %p502 = pneg %p193
        %p503 = pneg %p190
        %p504 = pneg %p214
        %p505 = pneg %p211
        %p506 = pneg %p235
        %p507 = pneg %p232
        %p508 = pneg %p261
        %p509 = pneg %p258
        %s510 = sand.u32 %s248, 1
        %s511 = scalar_lea.sflag [#allocation4], %s510
        %s512 = sand.u32 %s248, 1
        %s513 = smul.addr %s512, 16
        %s514 = scalar_lea.vmem [#allocation13], %s513
        %p515 = pneg %p287
        %p516 = pneg %p284
        %s517 = sand.u32 %s274, 1
        %s518 = scalar_lea.sflag [#allocation15], %s517
        %s519 = sand.u32 %s274, 1
        %s520 = smul.addr %s519, 64
        %s521 = scalar_lea.vmem [#allocation14], %s520
        %s522 = smul.u32 2, %s36
        %s523 = smul.u32 2, %s36
        %s524 = smul.u32 2, %s36
        %s525 = smul.u32 2, %s36
        %s526 = smul.u32 2, %s36
        %v527 = vld [vmem:[%s434] sm:$0xff]
        %v528 = vld [vmem:[%s434 + $0x8] sm:$0xff]
        %v529 = vld [vmem:[%s444] sm:$0xff]
        %v530 = vld [vmem:[%s444 + $0x8] sm:$0xff]
        %v531 = vld [vmem:[%s444 + $0x10] sm:$0xff]
        %v532 = vld [vmem:[%s444 + $0x18] sm:$0xff]
        %v533 = vld [vmem:[#allocation8] sm:$0xff]
        %v534 = vld [vmem:[#allocation8 + $0x8] sm:$0xff]
        %v535 = vld [vmem:[#allocation8 + $0x10] sm:$0xff]
        %v536 = vld [vmem:[#allocation8 + $0x18] sm:$0xff]
        %v537 = vld [vmem:[%s4] sm:$0x1]
        %v539 = vperm.slane %v537, 0
        %vm541 = vcmask 261120
        %v543 = vsel %vm541, %v527, 0
        %v546 = vsel %vm541, %v528, 0
        %548 = vmatpush.msra.mxu0 0.0
        %549 = vmatpush.msra.mxu0 0.0
        %550 = vmatpush.msra.mxu0 0.0
        %551 = vmatpush.msra.mxu0 0.0
        %552 = vmatpush.msra.mxu0 0.0
        %553 = vmatpush.msra.mxu0 0.0
        %554 = vmatpush.msra.mxu0 0.0
        %555 = vmatpush.msra.mxu0 0.0
        %556 = vmatpush.msra.mxu0 0.0
        %557 = vmatpush.msra.mxu0 0.0
        %558 = vmatpush.msra.mxu0 0.0
        %559 = vmatpush.msra.mxu0 0.0
        %560 = vmatpush.msra.mxu0 %v536
        %561 = vmatpush.msra.mxu0 %v535
        %562 = vmatpush.msra.mxu0 %v534
        %563 = vmatpush.msra.mxu0 %v533
        %564 = vmatmul.f32.gmra.mxu0 %v543
        %v565 = vpop.f32.mrf.mxu0
        %v566 = vadd.f32 %v539, %v565
        %567 = vmatmul.f32.gmra.mxu0 %v546
        %v568 = vpop.f32.mrf.mxu0
        %v569 = vadd.f32 %v539, %v568
        %570 = vdwg.mxu0
        %v571 = vmul.f32 %v566, 0.35355338
        %v572 = vmul.f32 %v569, 0.35355338
        %v573 = vld [vmem:[#allocation10] sm:$0xff]
        %v574 = vld [vmem:[#allocation10 + $0x8] sm:$0xff]
        %v575 = vld [vmem:[#allocation10 + $0x10] sm:$0xff]
        %v576 = vld [vmem:[#allocation10 + $0x18] sm:$0xff]
        %v577 = vld [vmem:[%s6] sm:$0x1]
        %v579 = vperm.slane %v577, 0
        %v582 = vsel %vm541, %v529, 0
        %v585 = vsel %vm541, %v530, 0
        %v588 = vsel %vm541, %v531, 0
        %v591 = vsel %vm541, %v532, 0
        %593 = vmatpush.msra.mxu0 0.0
        %594 = vmatpush.msra.mxu0 0.0
        %595 = vmatpush.msra.mxu0 0.0
        %596 = vmatpush.msra.mxu0 0.0
        %597 = vmatpush.msra.mxu0 0.0
        %598 = vmatpush.msra.mxu0 0.0
        %599 = vmatpush.msra.mxu0 0.0
        %600 = vmatpush.msra.mxu0 0.0
        %601 = vmatpush.msra.mxu0 0.0
        %602 = vmatpush.msra.mxu0 0.0
        %603 = vmatpush.msra.mxu0 0.0
        %604 = vmatpush.msra.mxu0 0.0
        %605 = vmatpush.msra.mxu0 %v576
        %606 = vmatpush.msra.mxu0 %v575
        %607 = vmatpush.msra.mxu0 %v574
        %608 = vmatpush.msra.mxu0 %v573
        %609 = vmatmul.f32.gmra.mxu0 %v582
        %v610 = vpop.f32.mrf.mxu0
        %v611 = vadd.f32 %v579, %v610
        %612 = vmatmul.f32.gmra.mxu0 %v585
        %v613 = vpop.f32.mrf.mxu0
        %v614 = vadd.f32 %v579, %v613
        %615 = vmatmul.f32.gmra.mxu0 %v588
        %v616 = vpop.f32.mrf.mxu0
        %v617 = vadd.f32 %v579, %v616
        %618 = vmatmul.f32.gmra.mxu0 %v591
        %v619 = vpop.f32.mrf.mxu0
        %v620 = vadd.f32 %v579, %v619
        %621 = vdwg.mxu0
        %v622 = vld [vmem:[#allocation11] sm:$0xff]
        %v623 = vld [vmem:[#allocation11 + $0x8] sm:$0xff]
        %v624 = vld [vmem:[#allocation11 + $0x10] sm:$0xff]
        %v625 = vld [vmem:[#allocation11 + $0x18] sm:$0xff]
        %v626 = vld [vmem:[%s8] sm:$0x1]
        %v628 = vperm.slane %v626, 0
        %630 = vmatpush.msra.mxu0 0.0
        %631 = vmatpush.msra.mxu0 0.0
        %632 = vmatpush.msra.mxu0 0.0
        %633 = vmatpush.msra.mxu0 0.0
        %634 = vmatpush.msra.mxu0 0.0
        %635 = vmatpush.msra.mxu0 0.0
        %636 = vmatpush.msra.mxu0 0.0
        %637 = vmatpush.msra.mxu0 0.0
        %638 = vmatpush.msra.mxu0 0.0
        %639 = vmatpush.msra.mxu0 0.0
        %640 = vmatpush.msra.mxu0 0.0
        %641 = vmatpush.msra.mxu0 0.0
        %642 = vmatpush.msra.mxu0 %v625
        %643 = vmatpush.msra.mxu0 %v624
        %644 = vmatpush.msra.mxu0 %v623
        %645 = vmatpush.msra.mxu0 %v622
        %646 = vmatmul.f32.gmra.mxu0 %v582
        %v647 = vpop.f32.mrf.mxu0
        %v648 = vadd.f32 %v628, %v647
        %649 = vmatmul.f32.gmra.mxu0 %v585
        %v650 = vpop.f32.mrf.mxu0
        %v651 = vadd.f32 %v628, %v650
        %652 = vmatmul.f32.gmra.mxu0 %v588
        %v653 = vpop.f32.mrf.mxu0
        %v654 = vadd.f32 %v628, %v653
        %655 = vmatmul.f32.gmra.mxu0 %v591
        %v656 = vpop.f32.mrf.mxu0
        %v657 = vadd.f32 %v628, %v656
        %658 = vdwg.mxu0
        %v659 = vld [vmem:[%s454] sm:$0x1]
        %v660 = vld [vmem:[%s454 + $0x1] sm:$0x1]
        %v663 = vperm.slane %v659, 0
        %v664 = vperm.slane %v660, 0
        %vm667 = vcmask 64512
        %v669 = vsel %vm667, %v571, 0
        %v672 = vsel %vm667, %v611, 0
        %v675 = vsel %vm667, %v614, 0
        %677 = vmatpush.xpose.msra.mxu0 0.0
        %678 = vmatpush.xpose.msra.mxu0 0.0
        %679 = vmatpush.xpose.msra.mxu0 0.0
        %680 = vmatpush.xpose.msra.mxu0 0.0
        %681 = vmatpush.xpose.msra.mxu0 0.0
        %682 = vmatpush.xpose.msra.mxu0 0.0
        %683 = vmatpush.xpose.msra.mxu0 0.0
        %684 = vmatpush.xpose.msra.mxu0 0.0
        %685 = vmatpush.xpose.msra.mxu0 0.0
        %686 = vmatpush.xpose.msra.mxu0 0.0
        %687 = vmatpush.xpose.msra.mxu0 0.0
        %688 = vmatpush.xpose.msra.mxu0 0.0
        %689 = vmatpush.xpose.msra.mxu0 0.0
        %690 = vmatpush.xpose.msra.mxu0 0.0
        %691 = vmatpush.xpose.msra.mxu0 %v675
        %692 = vmatpush.xpose.msra.mxu0 %v672
        %693 = vmatmul.f32.gmra.mxu0 %v669
        %v694 = vpop.f32.mrf.mxu0
        %v695 = vadd.f32 %v663, %v694
        %696 = vdwg.mxu0
        %v698 = vsel %vm667, %v572, 0
        %v701 = vsel %vm667, %v617, 0
        %v704 = vsel %vm667, %v620, 0
        %706 = vmatpush.xpose.msra.mxu0 0.0
        %707 = vmatpush.xpose.msra.mxu0 0.0
        %708 = vmatpush.xpose.msra.mxu0 0.0
        %709 = vmatpush.xpose.msra.mxu0 0.0
        %710 = vmatpush.xpose.msra.mxu0 0.0
        %711 = vmatpush.xpose.msra.mxu0 0.0
        %712 = vmatpush.xpose.msra.mxu0 0.0
        %713 = vmatpush.xpose.msra.mxu0 0.0
        %714 = vmatpush.xpose.msra.mxu0 0.0
        %715 = vmatpush.xpose.msra.mxu0 0.0
        %716 = vmatpush.xpose.msra.mxu0 0.0
        %717 = vmatpush.xpose.msra.mxu0 0.0
        %718 = vmatpush.xpose.msra.mxu0 0.0
        %719 = vmatpush.xpose.msra.mxu0 0.0
        %720 = vmatpush.xpose.msra.mxu0 %v704
        %721 = vmatpush.xpose.msra.mxu0 %v701
        %722 = vmatmul.f32.gmra.mxu0 %v698
        %v723 = vpop.f32.mrf.mxu0
        %v724 = vadd.f32 %v664, %v723
        %725 = vdwg.mxu0
        %vm726 = vcmask 130048
        %v727 = vsel %vm726, %v695, -inf
        %728 = vmax.xlane.f32.xlu0 %v727
        %v729 = vpop.xlane.xlu0 %728
        %v730 = vsel %vm726, %v724, -inf
        %731 = vmax.xlane.f32.xlu0 %v730
        %v732 = vpop.xlane.xlu0 %731
        %v733 = vsub.f32 %v695, %v729
        %v734 = vsub.f32 %v724, %v732
        %v735 = vmul.f32 %v733, 1.442695
        %v736 = vpow.pop %v735
        %v737 = vmul.f32 %v734, 1.442695
        %v738 = vpow.pop %v737
        %v739 = vsel %vm726, %v736, 0.0
        %740 = vadd.xlane.f32.xlu0 %v739
        %v741 = vpop.xlane.xlu0 %740
        %v742 = vsel %vm726, %v738, 0.0
        %743 = vadd.xlane.f32.xlu0 %v742
        %v744 = vpop.xlane.xlu0 %743
        %v745 = vrcp.pop %v741
        %v746 = vmul.f32 %v741, %v745
        %v747 = vsub.f32 1.0, %v746
        %v748 = vmul.f32 %v745, %v747
        %v749 = vadd.f32 %v745, %v748
        %vm750 = vweird.f32 %v741
        %vm751 = vweird.f32 %v745
        %vm752 = vmor %vm750, %vm751
        %v753 = vsel %vm752, %v745, %v749
        %v754 = vand.u32 2147483647, %v741
        %vm755 = vcmp.eq.f32.partialorder %v754, 8.507059e+37
        %v756 = vand.u32 %v741, 2147483648
        %v757 = vor.u32 1.1754944e-38, %v756
        %v758 = vsel %vm755, %v757, %v753
        %v759 = vrcp.pop %v744
        %v760 = vmul.f32 %v744, %v759
        %v761 = vsub.f32 1.0, %v760
        %v762 = vmul.f32 %v759, %v761
        %v763 = vadd.f32 %v759, %v762
        %vm764 = vweird.f32 %v744
        %vm765 = vweird.f32 %v759
        %vm766 = vmor %vm764, %vm765
        %v767 = vsel %vm766, %v759, %v763
        %v768 = vand.u32 2147483647, %v744
        %vm769 = vcmp.eq.f32.partialorder %v768, 8.507059e+37
        %v770 = vand.u32 %v744, 2147483648
        %v771 = vor.u32 1.1754944e-38, %v770
        %v772 = vsel %vm769, %v771, %v767
        %v773 = vmul.f32 %v736, %v758
        %v774 = vmul.f32 %v738, %v772
        %775 = vst.msk [vmem:[%s521] sm:$0xff] %vm726, %v773
        %776 = vst.msk [vmem:[%s521 + $0x20] sm:$0xff] %vm726, %v774
        %v778 = vsel %vm726, %v773, 0
        %780 = vmatpush.msra.mxu0 0.0
        %781 = vmatpush.msra.mxu0 0.0
        %782 = vmatpush.msra.mxu0 0.0
        %783 = vmatpush.msra.mxu0 0.0
        %784 = vmatpush.msra.mxu0 0.0
        %785 = vmatpush.msra.mxu0 0.0
        %786 = vmatpush.msra.mxu0 0.0
        %787 = vmatpush.msra.mxu0 0.0
        %788 = vmatpush.msra.mxu0 0.0
        %789 = vmatpush.msra.mxu0 0.0
        %790 = vmatpush.msra.mxu0 0.0
        %791 = vmatpush.msra.mxu0 0.0
        %792 = vmatpush.msra.mxu0 0.0
        %793 = vmatpush.msra.mxu0 0.0
        %794 = vmatpush.msra.mxu0 %v651
        %795 = vmatpush.msra.mxu0 %v648
        %796 = vmatmul.f32.gmra.mxu0 %v778
        %v797 = vpop.f32.mrf.mxu0
        %v798 = vadd.f32 0.0, %v797
        %799 = vdwg.mxu0
        %v801 = vsel %vm726, %v774, 0
        %803 = vmatpush.msra.mxu0 0.0
        %804 = vmatpush.msra.mxu0 0.0
        %805 = vmatpush.msra.mxu0 0.0
        %806 = vmatpush.msra.mxu0 0.0
        %807 = vmatpush.msra.mxu0 0.0
        %808 = vmatpush.msra.mxu0 0.0
        %809 = vmatpush.msra.mxu0 0.0
        %810 = vmatpush.msra.mxu0 0.0
        %811 = vmatpush.msra.mxu0 0.0
        %812 = vmatpush.msra.mxu0 0.0
        %813 = vmatpush.msra.mxu0 0.0
        %814 = vmatpush.msra.mxu0 0.0
        %815 = vmatpush.msra.mxu0 0.0
        %816 = vmatpush.msra.mxu0 0.0
        %817 = vmatpush.msra.mxu0 %v657
        %818 = vmatpush.msra.mxu0 %v654
        %819 = vmatmul.f32.gmra.mxu0 %v801
        %v820 = vpop.f32.mrf.mxu0
        %v821 = vadd.f32 0.0, %v820
        %822 = vdwg.mxu0
        %823 = vst.msk [vmem:[%s514] sm:$0xff] %vm667, %v798
        %824 = vst.msk [vmem:[%s514 + $0x8] sm:$0xff] %vm667, %v821
        %825 = vrot.lane.b32.xlu0 %v571, 120
        %v826 = vpop.permute.xlu0 %825
        %827 = vrot.lane.b32.xlu0 %v611, 120
        %v828 = vpop.permute.xlu0 %827
        %829 = vrot.lane.b32.xlu0 %v614, 120
        %v830 = vpop.permute.xlu0 %829
        %v831 = vsel %vm667, %v826, 0
        %v833 = vsel %vm667, %v828, 0
        %v835 = vsel %vm667, %v830, 0
        %837 = vmatpush.xpose.msra.mxu0 0.0
        %838 = vmatpush.xpose.msra.mxu0 0.0
        %839 = vmatpush.xpose.msra.mxu0 0.0
        %840 = vmatpush.xpose.msra.mxu0 0.0
        %841 = vmatpush.xpose.msra.mxu0 0.0
        %842 = vmatpush.xpose.msra.mxu0 0.0
        %843 = vmatpush.xpose.msra.mxu0 0.0
        %844 = vmatpush.xpose.msra.mxu0 0.0
        %845 = vmatpush.xpose.msra.mxu0 0.0
        %846 = vmatpush.xpose.msra.mxu0 0.0
        %847 = vmatpush.xpose.msra.mxu0 0.0
        %848 = vmatpush.xpose.msra.mxu0 0.0
        %849 = vmatpush.xpose.msra.mxu0 0.0
        %850 = vmatpush.xpose.msra.mxu0 0.0
        %851 = vmatpush.xpose.msra.mxu0 %v835
        %852 = vmatpush.xpose.msra.mxu0 %v833
        %853 = vmatmul.f32.gmra.mxu0 %v831
        %v854 = vpop.f32.mrf.mxu0
        %v855 = vadd.f32 %v663, %v854
        %856 = vdwg.mxu0
        %857 = vrot.lane.b32.xlu0 %v572, 120
        %v858 = vpop.permute.xlu0 %857
        %859 = vrot.lane.b32.xlu0 %v617, 120
        %v860 = vpop.permute.xlu0 %859
        %861 = vrot.lane.b32.xlu0 %v620, 120
        %v862 = vpop.permute.xlu0 %861
        %v863 = vsel %vm667, %v858, 0
        %v865 = vsel %vm667, %v860, 0
        %v867 = vsel %vm667, %v862, 0
        %869 = vmatpush.xpose.msra.mxu0 0.0
        %870 = vmatpush.xpose.msra.mxu0 0.0
        %871 = vmatpush.xpose.msra.mxu0 0.0
        %872 = vmatpush.xpose.msra.mxu0 0.0
        %873 = vmatpush.xpose.msra.mxu0 0.0
        %874 = vmatpush.xpose.msra.mxu0 0.0
        %875 = vmatpush.xpose.msra.mxu0 0.0
        %876 = vmatpush.xpose.msra.mxu0 0.0
        %877 = vmatpush.xpose.msra.mxu0 0.0
        %878 = vmatpush.xpose.msra.mxu0 0.0
        %879 = vmatpush.xpose.msra.mxu0 0.0
        %880 = vmatpush.xpose.msra.mxu0 0.0
        %881 = vmatpush.xpose.msra.mxu0 0.0
        %882 = vmatpush.xpose.msra.mxu0 0.0
        %883 = vmatpush.xpose.msra.mxu0 %v867
        %884 = vmatpush.xpose.msra.mxu0 %v865
        %885 = vmatmul.f32.gmra.mxu0 %v863
        %v886 = vpop.f32.mrf.mxu0
        %v887 = vadd.f32 %v664, %v886
        %888 = vdwg.mxu0
        %v889 = vsel %vm726, %v855, -inf
        %890 = vmax.xlane.f32.xlu0 %v889
        %v891 = vpop.xlane.xlu0 %890
        %v892 = vsel %vm726, %v887, -inf
        %893 = vmax.xlane.f32.xlu0 %v892
        %v894 = vpop.xlane.xlu0 %893
        %v895 = vsub.f32 %v855, %v891
        %v896 = vsub.f32 %v887, %v894
        %v897 = vmul.f32 %v895, 1.442695
        %v898 = vpow.pop %v897
        %v899 = vmul.f32 %v896, 1.442695
        %v900 = vpow.pop %v899
        %v901 = vsel %vm726, %v898, 0.0
        %902 = vadd.xlane.f32.xlu0 %v901
        %v903 = vpop.xlane.xlu0 %902
        %v904 = vsel %vm726, %v900, 0.0
        %905 = vadd.xlane.f32.xlu0 %v904
        %v906 = vpop.xlane.xlu0 %905
        %v907 = vrcp.pop %v903
        %v908 = vmul.f32 %v903, %v907
        %v909 = vsub.f32 1.0, %v908
        %v910 = vmul.f32 %v907, %v909
        %v911 = vadd.f32 %v907, %v910
        %vm912 = vweird.f32 %v903
        %vm913 = vweird.f32 %v907
        %vm914 = vmor %vm912, %vm913
        %v915 = vsel %vm914, %v907, %v911
        %v916 = vand.u32 2147483647, %v903
        %vm917 = vcmp.eq.f32.partialorder %v916, 8.507059e+37
        %v918 = vand.u32 %v903, 2147483648
        %v919 = vor.u32 1.1754944e-38, %v918
        %v920 = vsel %vm917, %v919, %v915
        %v921 = vrcp.pop %v906
        %v922 = vmul.f32 %v906, %v921
        %v923 = vsub.f32 1.0, %v922
        %v924 = vmul.f32 %v921, %v923
        %v925 = vadd.f32 %v921, %v924
        %vm926 = vweird.f32 %v906
        %vm927 = vweird.f32 %v921
        %vm928 = vmor %vm926, %vm927
        %v929 = vsel %vm928, %v921, %v925
        %v930 = vand.u32 2147483647, %v906
        %vm931 = vcmp.eq.f32.partialorder %v930, 8.507059e+37
        %v932 = vand.u32 %v906, 2147483648
        %v933 = vor.u32 1.1754944e-38, %v932
        %v934 = vsel %vm931, %v933, %v929
        %v935 = vmul.f32 %v898, %v920
        %v936 = vmul.f32 %v900, %v934
        %s937 = scalar_lea.vmem %s521, 8 [#allocation14]
        %938 = vst.msk [vmem:[%s937] sm:$0xff] %vm726, %v935
        %939 = vst.msk [vmem:[%s937 + $0x20] sm:$0xff] %vm726, %v936
        %942 = vrot.lane.b32.xlu0 %v648, 120
        %v943 = vpop.permute.xlu0 %942
        %944 = vrot.lane.b32.xlu0 %v651, 120
        %v945 = vpop.permute.xlu0 %944
        %v949 = vsel %vm726, %v935, 0
        %951 = vmatpush.msra.mxu0 0.0
        %952 = vmatpush.msra.mxu0 0.0
        %953 = vmatpush.msra.mxu0 0.0
        %954 = vmatpush.msra.mxu0 0.0
        %955 = vmatpush.msra.mxu0 0.0
        %956 = vmatpush.msra.mxu0 0.0
        %957 = vmatpush.msra.mxu0 0.0
        %958 = vmatpush.msra.mxu0 0.0
        %959 = vmatpush.msra.mxu0 0.0
        %960 = vmatpush.msra.mxu0 0.0
        %961 = vmatpush.msra.mxu0 0.0
        %962 = vmatpush.msra.mxu0 0.0
        %963 = vmatpush.msra.mxu0 0.0
        %964 = vmatpush.msra.mxu0 0.0
        %965 = vmatpush.msra.mxu0 %v945
        %966 = vmatpush.msra.mxu0 %v943
        %967 = vmatmul.f32.gmra.mxu0 %v949
        %v968 = vpop.f32.mrf.mxu0
        %v969 = vadd.f32 0.0, %v968
        %970 = vdwg.mxu0
        %973 = vrot.lane.b32.xlu0 %v654, 120
        %v974 = vpop.permute.xlu0 %973
        %975 = vrot.lane.b32.xlu0 %v657, 120
        %v976 = vpop.permute.xlu0 %975
        %v980 = vsel %vm726, %v936, 0
        %982 = vmatpush.msra.mxu0 0.0
        %983 = vmatpush.msra.mxu0 0.0
        %984 = vmatpush.msra.mxu0 0.0
        %985 = vmatpush.msra.mxu0 0.0
        %986 = vmatpush.msra.mxu0 0.0
        %987 = vmatpush.msra.mxu0 0.0
        %988 = vmatpush.msra.mxu0 0.0
        %989 = vmatpush.msra.mxu0 0.0
        %990 = vmatpush.msra.mxu0 0.0
        %991 = vmatpush.msra.mxu0 0.0
        %992 = vmatpush.msra.mxu0 0.0
        %993 = vmatpush.msra.mxu0 0.0
        %994 = vmatpush.msra.mxu0 0.0
        %995 = vmatpush.msra.mxu0 0.0
        %996 = vmatpush.msra.mxu0 %v976
        %997 = vmatpush.msra.mxu0 %v974
        %998 = vmatmul.f32.gmra.mxu0 %v980
        %v999 = vpop.f32.mrf.mxu0
        %v1000 = vadd.f32 0.0, %v999
        %1001 = vdwg.mxu0
        %1004 = vrot.lane.b32.xlu0 %v969, 8
        %v1005 = vpop.permute.xlu0 %1004
        %1006 = vrot.lane.b32.xlu0 %v1000, 8
        %v1007 = vpop.permute.xlu0 %1006
        %vm1010 = vcmask 130112
        %1011 = vst.msk [vmem:[%s514] sm:$0xff] %vm1010, %v1005
        %1012 = vst.msk [vmem:[%s514 + $0x8] sm:$0xff] %vm1010, %v1007
        %1013 = vrot.lane.b32.xlu0 %v571, 112
        %v1014 = vpop.permute.xlu0 %1013
        %1015 = vrot.lane.b32.xlu0 %v611, 112
        %v1016 = vpop.permute.xlu0 %1015
        %1017 = vrot.lane.b32.xlu0 %v614, 112
        %v1018 = vpop.permute.xlu0 %1017
        %v1019 = vsel %vm667, %v1014, 0
        %v1021 = vsel %vm667, %v1016, 0
        %v1023 = vsel %vm667, %v1018, 0
        %1025 = vmatpush.xpose.msra.mxu0 0.0
        %1026 = vmatpush.xpose.msra.mxu0 0.0
        %1027 = vmatpush.xpose.msra.mxu0 0.0
        %1028 = vmatpush.xpose.msra.mxu0 0.0
        %1029 = vmatpush.xpose.msra.mxu0 0.0
        %1030 = vmatpush.xpose.msra.mxu0 0.0
        %1031 = vmatpush.xpose.msra.mxu0 0.0
        %1032 = vmatpush.xpose.msra.mxu0 0.0
        %1033 = vmatpush.xpose.msra.mxu0 0.0
        %1034 = vmatpush.xpose.msra.mxu0 0.0
        %1035 = vmatpush.xpose.msra.mxu0 0.0
        %1036 = vmatpush.xpose.msra.mxu0 0.0
        %1037 = vmatpush.xpose.msra.mxu0 0.0
        %1038 = vmatpush.xpose.msra.mxu0 0.0
        %1039 = vmatpush.xpose.msra.mxu0 %v1023
        %1040 = vmatpush.xpose.msra.mxu0 %v1021
        %1041 = vmatmul.f32.gmra.mxu0 %v1019
        %v1042 = vpop.f32.mrf.mxu0
        %v1043 = vadd.f32 %v663, %v1042
        %1044 = vdwg.mxu0
        %1045 = vrot.lane.b32.xlu0 %v572, 112
        %v1046 = vpop.permute.xlu0 %1045
        %1047 = vrot.lane.b32.xlu0 %v617, 112
        %v1048 = vpop.permute.xlu0 %1047
        %1049 = vrot.lane.b32.xlu0 %v620, 112
        %v1050 = vpop.permute.xlu0 %1049
        %v1051 = vsel %vm667, %v1046, 0
        %v1053 = vsel %vm667, %v1048, 0
        %v1055 = vsel %vm667, %v1050, 0
        %1057 = vmatpush.xpose.msra.mxu0 0.0
        %1058 = vmatpush.xpose.msra.mxu0 0.0
        %1059 = vmatpush.xpose.msra.mxu0 0.0
        %1060 = vmatpush.xpose.msra.mxu0 0.0
        %1061 = vmatpush.xpose.msra.mxu0 0.0
        %1062 = vmatpush.xpose.msra.mxu0 0.0
        %1063 = vmatpush.xpose.msra.mxu0 0.0
        %1064 = vmatpush.xpose.msra.mxu0 0.0
        %1065 = vmatpush.xpose.msra.mxu0 0.0
        %1066 = vmatpush.xpose.msra.mxu0 0.0
        %1067 = vmatpush.xpose.msra.mxu0 0.0
        %1068 = vmatpush.xpose.msra.mxu0 0.0
        %1069 = vmatpush.xpose.msra.mxu0 0.0
        %1070 = vmatpush.xpose.msra.mxu0 0.0
        %1071 = vmatpush.xpose.msra.mxu0 %v1055
        %1072 = vmatpush.xpose.msra.mxu0 %v1053
        %1073 = vmatmul.f32.gmra.mxu0 %v1051
        %v1074 = vpop.f32.mrf.mxu0
        %v1075 = vadd.f32 %v664, %v1074
        %1076 = vdwg.mxu0
        %v1077 = vsel %vm726, %v1043, -inf
        %1078 = vmax.xlane.f32.xlu0 %v1077
        %v1079 = vpop.xlane.xlu0 %1078
        %v1080 = vsel %vm726, %v1075, -inf
        %1081 = vmax.xlane.f32.xlu0 %v1080
        %v1082 = vpop.xlane.xlu0 %1081
        %v1083 = vsub.f32 %v1043, %v1079
        %v1084 = vsub.f32 %v1075, %v1082
        %v1085 = vmul.f32 %v1083, 1.442695
        %v1086 = vpow.pop %v1085
        %v1087 = vmul.f32 %v1084, 1.442695
        %v1088 = vpow.pop %v1087
        %v1089 = vsel %vm726, %v1086, 0.0
        %1090 = vadd.xlane.f32.xlu0 %v1089
        %v1091 = vpop.xlane.xlu0 %1090
        %v1092 = vsel %vm726, %v1088, 0.0
        %1093 = vadd.xlane.f32.xlu0 %v1092
        %v1094 = vpop.xlane.xlu0 %1093
        %v1095 = vrcp.pop %v1091
        %v1096 = vmul.f32 %v1091, %v1095
        %v1097 = vsub.f32 1.0, %v1096
        %v1098 = vmul.f32 %v1095, %v1097
        %v1099 = vadd.f32 %v1095, %v1098
        %vm1100 = vweird.f32 %v1091
        %vm1101 = vweird.f32 %v1095
        %vm1102 = vmor %vm1100, %vm1101
        %v1103 = vsel %vm1102, %v1095, %v1099
        %v1104 = vand.u32 2147483647, %v1091
        %vm1105 = vcmp.eq.f32.partialorder %v1104, 8.507059e+37
        %v1106 = vand.u32 %v1091, 2147483648
        %v1107 = vor.u32 1.1754944e-38, %v1106
        %v1108 = vsel %vm1105, %v1107, %v1103
        %v1109 = vrcp.pop %v1094
        %v1110 = vmul.f32 %v1094, %v1109
        %v1111 = vsub.f32 1.0, %v1110
        %v1112 = vmul.f32 %v1109, %v1111
        %v1113 = vadd.f32 %v1109, %v1112
        %vm1114 = vweird.f32 %v1094
        %vm1115 = vweird.f32 %v1109
        %vm1116 = vmor %vm1114, %vm1115
        %v1117 = vsel %vm1116, %v1109, %v1113
        %v1118 = vand.u32 2147483647, %v1094
        %vm1119 = vcmp.eq.f32.partialorder %v1118, 8.507059e+37
        %v1120 = vand.u32 %v1094, 2147483648
        %v1121 = vor.u32 1.1754944e-38, %v1120
        %v1122 = vsel %vm1119, %v1121, %v1117
        %v1123 = vmul.f32 %v1086, %v1108
        %v1124 = vmul.f32 %v1088, %v1122
        %s1125 = scalar_lea.vmem %s521, 16 [#allocation14]
        %1126 = vst.msk [vmem:[%s1125] sm:$0xff] %vm726, %v1123
        %1127 = vst.msk [vmem:[%s1125 + $0x20] sm:$0xff] %vm726, %v1124
        %1128 = vrot.lane.b32.xlu0 %v648, 112
        %v1129 = vpop.permute.xlu0 %1128
        %1130 = vrot.lane.b32.xlu0 %v651, 112
        %v1131 = vpop.permute.xlu0 %1130
        %v1135 = vsel %vm726, %v1123, 0
        %1137 = vmatpush.msra.mxu0 0.0
        %1138 = vmatpush.msra.mxu0 0.0
        %1139 = vmatpush.msra.mxu0 0.0
        %1140 = vmatpush.msra.mxu0 0.0
        %1141 = vmatpush.msra.mxu0 0.0
        %1142 = vmatpush.msra.mxu0 0.0
        %1143 = vmatpush.msra.mxu0 0.0
        %1144 = vmatpush.msra.mxu0 0.0
        %1145 = vmatpush.msra.mxu0 0.0
        %1146 = vmatpush.msra.mxu0 0.0
        %1147 = vmatpush.msra.mxu0 0.0
        %1148 = vmatpush.msra.mxu0 0.0
        %1149 = vmatpush.msra.mxu0 0.0
        %1150 = vmatpush.msra.mxu0 0.0
        %1151 = vmatpush.msra.mxu0 %v1131
        %1152 = vmatpush.msra.mxu0 %v1129
        %1153 = vmatmul.f32.gmra.mxu0 %v1135
        %v1154 = vpop.f32.mrf.mxu0
        %v1155 = vadd.f32 0.0, %v1154
        %1156 = vdwg.mxu0
        %1157 = vrot.lane.b32.xlu0 %v654, 112
        %v1158 = vpop.permute.xlu0 %1157
        %1159 = vrot.lane.b32.xlu0 %v657, 112
        %v1160 = vpop.permute.xlu0 %1159
        %v1164 = vsel %vm726, %v1124, 0
        %1166 = vmatpush.msra.mxu0 0.0
        %1167 = vmatpush.msra.mxu0 0.0
        %1168 = vmatpush.msra.mxu0 0.0
        %1169 = vmatpush.msra.mxu0 0.0
        %1170 = vmatpush.msra.mxu0 0.0
        %1171 = vmatpush.msra.mxu0 0.0
        %1172 = vmatpush.msra.mxu0 0.0
        %1173 = vmatpush.msra.mxu0 0.0
        %1174 = vmatpush.msra.mxu0 0.0
        %1175 = vmatpush.msra.mxu0 0.0
        %1176 = vmatpush.msra.mxu0 0.0
        %1177 = vmatpush.msra.mxu0 0.0
        %1178 = vmatpush.msra.mxu0 0.0
        %1179 = vmatpush.msra.mxu0 0.0
        %1180 = vmatpush.msra.mxu0 %v1160
        %1181 = vmatpush.msra.mxu0 %v1158
        %1182 = vmatmul.f32.gmra.mxu0 %v1164
        %v1183 = vpop.f32.mrf.mxu0
        %v1184 = vadd.f32 0.0, %v1183
        %1185 = vdwg.mxu0
        %1188 = vrot.lane.b32.xlu0 %v1155, 16
        %v1189 = vpop.permute.xlu0 %1188
        %1190 = vrot.lane.b32.xlu0 %v1184, 16
        %v1191 = vpop.permute.xlu0 %1190
        %vm1194 = vcmask 195712
        %1195 = vst.msk [vmem:[%s514] sm:$0xff] %vm1194, %v1189
        %1196 = vst.msk [vmem:[%s514 + $0x8] sm:$0xff] %vm1194, %v1191
        %1197 = vrot.lane.b32.xlu0 %v571, 104
        %v1198 = vpop.permute.xlu0 %1197
        %1199 = vrot.lane.b32.xlu0 %v611, 104
        %v1200 = vpop.permute.xlu0 %1199
        %1201 = vrot.lane.b32.xlu0 %v614, 104
        %v1202 = vpop.permute.xlu0 %1201
        %v1203 = vsel %vm667, %v1198, 0
        %v1205 = vsel %vm667, %v1200, 0
        %v1207 = vsel %vm667, %v1202, 0
        %1209 = vmatpush.xpose.msra.mxu0 0.0
        %1210 = vmatpush.xpose.msra.mxu0 0.0
        %1211 = vmatpush.xpose.msra.mxu0 0.0
        %1212 = vmatpush.xpose.msra.mxu0 0.0
        %1213 = vmatpush.xpose.msra.mxu0 0.0
        %1214 = vmatpush.xpose.msra.mxu0 0.0
        %1215 = vmatpush.xpose.msra.mxu0 0.0
        %1216 = vmatpush.xpose.msra.mxu0 0.0
        %1217 = vmatpush.xpose.msra.mxu0 0.0
        %1218 = vmatpush.xpose.msra.mxu0 0.0
        %1219 = vmatpush.xpose.msra.mxu0 0.0
        %1220 = vmatpush.xpose.msra.mxu0 0.0
        %1221 = vmatpush.xpose.msra.mxu0 0.0
        %1222 = vmatpush.xpose.msra.mxu0 0.0
        %1223 = vmatpush.xpose.msra.mxu0 %v1207
        %1224 = vmatpush.xpose.msra.mxu0 %v1205
        %1225 = vmatmul.f32.gmra.mxu0 %v1203
        %v1226 = vpop.f32.mrf.mxu0
        %v1227 = vadd.f32 %v663, %v1226
        %1228 = vdwg.mxu0
        %1229 = vrot.lane.b32.xlu0 %v572, 104
        %v1230 = vpop.permute.xlu0 %1229
        %1231 = vrot.lane.b32.xlu0 %v617, 104
        %v1232 = vpop.permute.xlu0 %1231
        %1233 = vrot.lane.b32.xlu0 %v620, 104
        %v1234 = vpop.permute.xlu0 %1233
        %v1235 = vsel %vm667, %v1230, 0
        %v1237 = vsel %vm667, %v1232, 0
        %v1239 = vsel %vm667, %v1234, 0
        %1241 = vmatpush.xpose.msra.mxu0 0.0
        %1242 = vmatpush.xpose.msra.mxu0 0.0
        %1243 = vmatpush.xpose.msra.mxu0 0.0
        %1244 = vmatpush.xpose.msra.mxu0 0.0
        %1245 = vmatpush.xpose.msra.mxu0 0.0
        %1246 = vmatpush.xpose.msra.mxu0 0.0
        %1247 = vmatpush.xpose.msra.mxu0 0.0
        %1248 = vmatpush.xpose.msra.mxu0 0.0
        %1249 = vmatpush.xpose.msra.mxu0 0.0
        %1250 = vmatpush.xpose.msra.mxu0 0.0
        %1251 = vmatpush.xpose.msra.mxu0 0.0
        %1252 = vmatpush.xpose.msra.mxu0 0.0
        %1253 = vmatpush.xpose.msra.mxu0 0.0
        %1254 = vmatpush.xpose.msra.mxu0 0.0
        %1255 = vmatpush.xpose.msra.mxu0 %v1239
        %1256 = vmatpush.xpose.msra.mxu0 %v1237
        %1257 = vmatmul.f32.gmra.mxu0 %v1235
        %v1258 = vpop.f32.mrf.mxu0
        %v1259 = vadd.f32 %v664, %v1258
        %1260 = vdwg.mxu0
        %v1261 = vsel %vm726, %v1227, -inf
        %1262 = vmax.xlane.f32.xlu0 %v1261
        %v1263 = vpop.xlane.xlu0 %1262
        %v1264 = vsel %vm726, %v1259, -inf
        %1265 = vmax.xlane.f32.xlu0 %v1264
        %v1266 = vpop.xlane.xlu0 %1265
        %v1267 = vsub.f32 %v1227, %v1263
        %v1268 = vsub.f32 %v1259, %v1266
        %v1269 = vmul.f32 %v1267, 1.442695
        %v1270 = vpow.pop %v1269
        %v1271 = vmul.f32 %v1268, 1.442695
        %v1272 = vpow.pop %v1271
        %v1273 = vsel %vm726, %v1270, 0.0
        %1274 = vadd.xlane.f32.xlu0 %v1273
        %v1275 = vpop.xlane.xlu0 %1274
        %v1276 = vsel %vm726, %v1272, 0.0
        %1277 = vadd.xlane.f32.xlu0 %v1276
        %v1278 = vpop.xlane.xlu0 %1277
        %v1279 = vrcp.pop %v1275
        %v1280 = vmul.f32 %v1275, %v1279
        %v1281 = vsub.f32 1.0, %v1280
        %v1282 = vmul.f32 %v1279, %v1281
        %v1283 = vadd.f32 %v1279, %v1282
        %vm1284 = vweird.f32 %v1275
        %vm1285 = vweird.f32 %v1279
        %vm1286 = vmor %vm1284, %vm1285
        %v1287 = vsel %vm1286, %v1279, %v1283
        %v1288 = vand.u32 2147483647, %v1275
        %vm1289 = vcmp.eq.f32.partialorder %v1288, 8.507059e+37
        %v1290 = vand.u32 %v1275, 2147483648
        %v1291 = vor.u32 1.1754944e-38, %v1290
        %v1292 = vsel %vm1289, %v1291, %v1287
        %v1293 = vrcp.pop %v1278
        %v1294 = vmul.f32 %v1278, %v1293
        %v1295 = vsub.f32 1.0, %v1294
        %v1296 = vmul.f32 %v1293, %v1295
        %v1297 = vadd.f32 %v1293, %v1296
        %vm1298 = vweird.f32 %v1278
        %vm1299 = vweird.f32 %v1293
        %vm1300 = vmor %vm1298, %vm1299
        %v1301 = vsel %vm1300, %v1293, %v1297
        %v1302 = vand.u32 2147483647, %v1278
        %vm1303 = vcmp.eq.f32.partialorder %v1302, 8.507059e+37
        %v1304 = vand.u32 %v1278, 2147483648
        %v1305 = vor.u32 1.1754944e-38, %v1304
        %v1306 = vsel %vm1303, %v1305, %v1301
        %v1307 = vmul.f32 %v1270, %v1292
        %v1308 = vmul.f32 %v1272, %v1306
        %s1309 = scalar_lea.vmem %s521, 24 [#allocation14]
        %1310 = vst.msk [vmem:[%s1309] sm:$0xff] %vm726, %v1307
        %1311 = vst.msk [vmem:[%s1309 + $0x20] sm:$0xff] %vm726, %v1308
        %1312 = vrot.lane.b32.xlu0 %v648, 104
        %v1313 = vpop.permute.xlu0 %1312
        %1314 = vrot.lane.b32.xlu0 %v651, 104
        %v1315 = vpop.permute.xlu0 %1314
        %v1319 = vsel %vm726, %v1307, 0
        %1321 = vmatpush.msra.mxu0 0.0
        %1322 = vmatpush.msra.mxu0 0.0
        %1323 = vmatpush.msra.mxu0 0.0
        %1324 = vmatpush.msra.mxu0 0.0
        %1325 = vmatpush.msra.mxu0 0.0
        %1326 = vmatpush.msra.mxu0 0.0
        %1327 = vmatpush.msra.mxu0 0.0
        %1328 = vmatpush.msra.mxu0 0.0
        %1329 = vmatpush.msra.mxu0 0.0
        %1330 = vmatpush.msra.mxu0 0.0
        %1331 = vmatpush.msra.mxu0 0.0
        %1332 = vmatpush.msra.mxu0 0.0
        %1333 = vmatpush.msra.mxu0 0.0
        %1334 = vmatpush.msra.mxu0 0.0
        %1335 = vmatpush.msra.mxu0 %v1315
        %1336 = vmatpush.msra.mxu0 %v1313
        %1337 = vmatmul.f32.gmra.mxu0 %v1319
        %v1338 = vpop.f32.mrf.mxu0
        %v1339 = vadd.f32 0.0, %v1338
        %1340 = vdwg.mxu0
        %1341 = vrot.lane.b32.xlu0 %v654, 104
        %v1342 = vpop.permute.xlu0 %1341
        %1343 = vrot.lane.b32.xlu0 %v657, 104
        %v1344 = vpop.permute.xlu0 %1343
        %v1348 = vsel %vm726, %v1308, 0
        %1350 = vmatpush.msra.mxu0 0.0
        %1351 = vmatpush.msra.mxu0 0.0
        %1352 = vmatpush.msra.mxu0 0.0
        %1353 = vmatpush.msra.mxu0 0.0
        %1354 = vmatpush.msra.mxu0 0.0
        %1355 = vmatpush.msra.mxu0 0.0
        %1356 = vmatpush.msra.mxu0 0.0
        %1357 = vmatpush.msra.mxu0 0.0
        %1358 = vmatpush.msra.mxu0 0.0
        %1359 = vmatpush.msra.mxu0 0.0
        %1360 = vmatpush.msra.mxu0 0.0
        %1361 = vmatpush.msra.mxu0 0.0
        %1362 = vmatpush.msra.mxu0 0.0
        %1363 = vmatpush.msra.mxu0 0.0
        %1364 = vmatpush.msra.mxu0 %v1344
        %1365 = vmatpush.msra.mxu0 %v1342
        %1366 = vmatmul.f32.gmra.mxu0 %v1348
        %v1367 = vpop.f32.mrf.mxu0
        %v1368 = vadd.f32 0.0, %v1367
        %1369 = vdwg.mxu0
        %1372 = vrot.lane.b32.xlu0 %v1339, 24
        %v1373 = vpop.permute.xlu0 %1372
        %1374 = vrot.lane.b32.xlu0 %v1368, 24
        %v1375 = vpop.permute.xlu0 %1374
        %vm1378 = vcmask 261312
        %1379 = vst.msk [vmem:[%s514] sm:$0xff] %vm1378, %v1373
        %1380 = vst.msk [vmem:[%s514 + $0x8] sm:$0xff] %vm1378, %v1375
        %s1381 = sand.u32 %s248, 1
        %s1382 = scalar_lea.sflag [#allocation4], %s1381
        %s1383 = sand.u32 %s248, 1
        %s1384 = smul.addr %s1383, 16
        %s1385 = scalar_lea.vmem [#allocation13], %s1384
        %s1386 = sand.u32 %s274, 1
        %s1387 = scalar_lea.sflag [#allocation15], %s1386
        %s1388 = sand.u32 %s274, 1
        %s1389 = smul.addr %s1388, 64
        %s1390 = scalar_lea.vmem [#allocation14], %s1389
        // Predicated region
        $region81: #{tpu_custom_call.1} parent=55 // pred_check
          %p1391 = pneg %p258
        $region82: #{tpu_custom_call.1} parent=55 // pred_check_branch
          %1393 = sbr.rel (%p1391) target = $region84
        $region83: #{tpu_custom_call.1} parent=55 // pred_region
          %s1394 = smul.u32 2, %s36
          %1396 = vsyncadd %s1382, 0
          %s1397 = smul.addr %s1394, 8
          %s1398 = scalar_lea.hbm %s9, %s1397
          %s1399 = sshll.u32 %s1385, 4
          %s1400 = int_to_ptr.vmem [resolvable:$true] %s1399
          %s1401 = sshll.u32 %s1398, 4
          %s1402 = int_to_ptr.hbm [resolvable:$true] %s1401
          %1407 = dma.vmem_to_hbm [thread:$0]  %s1400, 256, %s1402, %s1382, 128, 128, 8
        $region84: #{tpu_custom_call.1} parent=55 // pred_fallthru
          _
        // Predicated region
        $region85: #{tpu_custom_call.1} parent=55 // pred_check
          %p1408 = pneg %p284
        $region86: #{tpu_custom_call.1} parent=55 // pred_check_branch
          %1410 = sbr.rel (%p1408) target = $region88
        $region87: #{tpu_custom_call.1} parent=55 // pred_region
          %s1411 = smul.u32 2, %s36
          %1413 = vsyncadd %s1387, 0
          %s1414 = smul.addr %s1411, 4
          %s1415 = smul.addr %s1414, 8
          %s1416 = scalar_lea.hbm %s10, %s1415
          %s1417 = sshll.u32 %s1390, 4
          %s1418 = int_to_ptr.vmem [resolvable:$true] %s1417
          %s1419 = sshll.u32 %s1416, 4
          %s1420 = int_to_ptr.hbm [resolvable:$true] %s1419
          %1425 = dma.vmem_to_hbm [thread:$0]  %s1418, 1024, %s1420, %s1387, 128, 128, 8
        $region88: #{tpu_custom_call.1} parent=55 // pred_fallthru
          _
      $region56: #{tpu_custom_call.1} parent=5 // pred_fallthru
        _
      %p1426 = scmp.le.s32.totalorder 2, %s31
      // Predicated region
      $region89: #{tpu_custom_call.1} parent=5 // pred_check
        %p1427 = pneg %p1426
      $region90: #{tpu_custom_call.1} parent=5 // pred_check_branch
        %1429 = sbr.rel (%p1427) target = $region92
      $region91: #{tpu_custom_call.1} parent=5 // pred_region
        %s1430 = ssub.s32 %s31, 2
        // Predicated region
        $region93: #{tpu_custom_call.1} parent=91 // pred_check
          %p1431 = pneg %p264
        $region94: #{tpu_custom_call.1} parent=91 // pred_check_branch
          %1433 = sbr.rel (%p1431) target = $region96
        $region95: #{tpu_custom_call.1} parent=91 // pred_region
          %s1434 = sand.u32 %s249, 1
          %s1435 = scalar_lea.sflag [#allocation4], %s1434
          %s1436 = sand.u32 %s249, 1
          %s1437 = smul.addr %s1436, 16
          %s1438 = scalar_lea.vmem [#allocation13], %s1437
          %1440 = dma.done %s1435, 256
        $region96: #{tpu_custom_call.1} parent=91 // pred_fallthru
          _
        // Predicated region
        $region97: #{tpu_custom_call.1} parent=91 // pred_check
          %p1441 = pneg %p290
        $region98: #{tpu_custom_call.1} parent=91 // pred_check_branch
          %1443 = sbr.rel (%p1441) target = $region100
        $region99: #{tpu_custom_call.1} parent=91 // pred_region
          %s1444 = sand.u32 %s275, 1
          %s1445 = scalar_lea.sflag [#allocation15], %s1444
          %s1446 = sand.u32 %s275, 1
          %s1447 = smul.addr %s1446, 64
          %s1448 = scalar_lea.vmem [#allocation14], %s1447
          %1450 = dma.done %s1445, 1024
        $region100: #{tpu_custom_call.1} parent=91 // pred_fallthru
          _
      $region92: #{tpu_custom_call.1} parent=5 // pred_fallthru
        _
    $region6: #{tpu_custom_call.1} parent=1 // loop_footer
      %s35 = sadd.s32 1, %s31
    $region7: #{tpu_custom_call.1} parent=1 // loop_footer_branch
      %30 = sbr.rel target = $region3
    $region8: #{tpu_custom_call.1} parent=1 // loop_exit
      _
    %1451 = vsyncpa [#allocation3], 1
    %s1452 = scalar_lea.sflag [#allocation3], 1
    %1453 = vsyncpa %s1452, 1
    %1454 = vsyncpa [#allocation6], 1
    %s1455 = scalar_lea.sflag [#allocation6], 1
    %1456 = vsyncpa %s1455, 1
    %1457 = vsyncpa [#allocation9], 1
    %1458 = vsyncpa [#allocation12], 1
    %1459 = vsyncpa [#allocation4], 1
    %s1460 = scalar_lea.sflag [#allocation4], 1
    %1461 = vsyncpa %s1460, 1
    %1462 = vsyncpa [#allocation15], 1
    %s1463 = scalar_lea.sflag [#allocation15], 1
    %1464 = vsyncpa %s1463, 1

// kernel: tpu_custom_call.1
$region0: #{tpu_custom_call.1}
  #allocation0 [shape = 'u32[]', space=smem, size = 0x4, offset = 0x4, fixed_abs, tag = 'smem constant byte address 0x4 - core index']
  #allocation1 [shape = 'u32[72,128]{1,0:T(1,128)}', space=vmem, size = 0x9000, scoped, tag = 'internal scratch']
  %s0 = inlined_call_operand.hbm [shape: f32[4,8,32], index: 0, kind: input, shape index: {}]
  %s1 = inlined_call_operand.hbm [shape: f32[4,16,32], index: 1, kind: input, shape index: {}]
  %s2 = inlined_call_operand.hbm [shape: f32[4,1,16], index: 2, kind: input, shape index: {}]
  %s3 = inlined_call_operand.hbm [shape: f32[32,32], index: 3, kind: input, shape index: {}]
  %s4 = inlined_call_operand.vmem [shape: f32[1,32], index: 4, kind: input, shape index: {}]
  %s5 = inlined_call_operand.hbm [shape: f32[32,32], index: 5, kind: input, shape index: {}]
  %s6 = inlined_call_operand.vmem [shape: f32[1,32], index: 6, kind: input, shape index: {}]
  %s7 = inlined_call_operand.hbm [shape: f32[32,32], index: 7, kind: input, shape index: {}]
  %s8 = inlined_call_operand.vmem [shape: f32[1,32], index: 8, kind: input, shape index: {}]
  %s9 = inlined_call_operand.hbm [shape: f32[4,8,32], index: 9, kind: output, shape index: {0}]
  %s10 = inlined_call_operand.hbm [shape: f32[4,4,8,16], index: 10, kind: output, shape index: {1}]
  %11 = xla_tuple %s9, %s10
  %s12 = sld [smem:[#allocation0]]
  $region101: #{tpu_custom_call.1} parent=0
    _
  %s14 = ssub.s32 1, %s12
  %s15 = scalar_select 0, %s14, %s12
  $region1: #{tpu_custom_call.1} parent=0
    #allocation2 [shape = 'u8[16384]{0}', space=vmem, size = 0x4000, scoped, tag = 'input window, operand 0']
    #allocation3 [shape = 's32[2]{0}', space=sflag, size = 0x8, scoped, tag = 'scoped memory for tpu_custom_call.1']
    #allocation4 [shape = 's32[2]{0}', space=sflag, size = 0x8, scoped, tag = 'scoped memory for tpu_custom_call.1']
    #allocation5 [shape = 'u8[32768]{0}', space=vmem, size = 0x8000, scoped, tag = 'input window, operand 1']
    #allocation6 [shape = 's32[2]{0}', space=sflag, size = 0x8, scoped, tag = 'scoped memory for tpu_custom_call.1']
    #allocation7 [shape = 'u8[2048]{0}', space=vmem, size = 0x800, scoped, tag = 'input window, operand 2']
    #allocation8 [shape = 'u8[16384]{0}', space=vmem, size = 0x4000, scoped, tag = 'input window, operand 3, single buffered']
    #allocation9 [shape = 's32[1]{0}', space=sflag, size = 0x4, scoped, tag = 'scoped memory for tpu_custom_call.1']
    #allocation10 [shape = 'u8[16384]{0}', space=vmem, size = 0x4000, scoped, tag = 'input window, operand 5, single buffered']
    #allocation11 [shape = 'u8[16384]{0}', space=vmem, size = 0x4000, scoped, tag = 'input window, operand 7, single buffered']
    #allocation12 [shape = 's32[1]{0}', space=sflag, size = 0x4, scoped, tag = 'scoped memory for tpu_custom_call.1']
    #allocation13 [shape = 'u8[16384]{0}', space=vmem, size = 0x4000, scoped, tag = 'output window, operand 0']
    #allocation14 [shape = 'u8[65536]{0}', space=vmem, size = 0x10000, scoped, tag = 'output window, operand 1']
    #allocation15 [shape = 's32[2]{0}', space=sflag, size = 0x8, scoped, tag = 'scoped memory for tpu_custom_call.1']
    %16 = vsyncpa [#allocation3], 0
    %s17 = scalar_lea.sflag [#allocation3], 1
    %18 = vsyncpa %s17, 0
    %19 = vsyncpa [#allocation6], 0
    %s20 = scalar_lea.sflag [#allocation6], 1
    %21 = vsyncpa %s20, 0
    %22 = vsyncpa [#allocation9], 0
    %23 = vsyncpa [#allocation12], 0
    %24 = vsyncpa [#allocation4], 0
    %s25 = scalar_lea.sflag [#allocation4], 1
    %26 = vsyncpa %s25, 0
    %27 = vsyncpa [#allocation15], 0
    %s28 = scalar_lea.sflag [#allocation15], 1
    %29 = vsyncpa %s28, 0
    loop: start=0, step=1, limit=4
    $region2: #{tpu_custom_call.1} parent=1 // loop_pre_header
      _
    $region3: #{tpu_custom_call.1} parent=1 // loop_header
      %s31 = sphi 0, %s35
      %p32 = scmp.ge.s32.totalorder %s31, 4
      %s41 = sphi 0, %s43
      %s44 = sphi 0, %s41
      %s45 = sphi 0, %s44
      %s61 = sphi 0, %s45
      %s67 = sphi 0, %s69
      %s70 = sphi 0, %s67
      %s71 = sphi 0, %s70
      %s87 = sphi 0, %s71
      %s93 = sphi 0, %s95
      %s96 = sphi 0, %s93
      %s97 = sphi 0, %s96
      %s113 = sphi 0, %s97
      %s117 = sphi 0, %s117
      %s119 = sphi 0, %s117
      %s120 = sphi 0, %s119
      %s134 = sphi 0, %s120
      %s138 = sphi 0, %s138
      %s140 = sphi 0, %s138
      %s141 = sphi 0, %s140
      %s155 = sphi 0, %s141
      %s159 = sphi 0, %s159
      %s161 = sphi 0, %s159
      %s162 = sphi 0, %s161
      %s176 = sphi 0, %s162
      %s180 = sphi 0, %s180
      %s182 = sphi 0, %s180
      %s183 = sphi 0, %s182
      %s197 = sphi 0, %s183
      %s201 = sphi 0, %s201
      %s203 = sphi 0, %s201
      %s204 = sphi 0, %s203
      %s218 = sphi 0, %s204
      %s222 = sphi 0, %s222
      %s224 = sphi 0, %s222
      %s225 = sphi 0, %s224
      %s239 = sphi 0, %s225
      %s245 = sphi 0, %s247
      %s248 = sphi 0, %s245
      %s249 = sphi 0, %s248
      %s265 = sphi 0, %s249
      %s271 = sphi 0, %s273
      %s274 = sphi 0, %s271
      %s275 = sphi 0, %s274
      %s291 = sphi 0, %s275
    $region4: #{tpu_custom_call.1} parent=1 // loop_header_branch
      %34 = sbr.rel (%p32) target = $region8
    $region5: #{tpu_custom_call.1} parent=1 // loop_body
      %s36 = ssub.s32 %s31, 1
      %s37 = ssub.s32 %s31, 2
      %s38 = sadd.s32 %s31, 1
      %s39 = ssub.s32 %s31, %s38
      %p40 = scmp.eq.s32.totalorder %s39, 0
      %s42 = sadd.s32 %s41, 1
      %s43 = scalar_select %p40, %s41, %s42
      %p46 = pneg %p40
      %p47 = scmp.eq.s32.totalorder %s31, 1
      %p48 = por %p46, %p47
      %p49 = scmp.ne.s32.totalorder %s41, %s44
      %p50 = scmp.eq.s32.totalorder %s31, 0
      %p51 = por %p49, %p50
      %p52 = scmp.ne.s32.totalorder %s41, %s44
      %p53 = scmp.eq.s32.totalorder %s36, 1
      %p54 = por %p52, %p53
      %p55 = scmp.ne.s32.totalorder %s44, %s45
      %p56 = scmp.eq.s32.totalorder %s36, 0
      %p57 = por %p55, %p56
      %p58 = scmp.ne.s32.totalorder %s44, %s45
      %p59 = scmp.eq.s32.totalorder %s37, 1
      %p60 = por %p58, %p59
      %p62 = scmp.ne.s32.totalorder %s45, %s61
      %p63 = scmp.eq.s32.totalorder %s37, 0
      %p64 = por %p62, %p63
      %s65 = ssub.s32 %s31, %s38
      %p66 = scmp.eq.s32.totalorder %s65, 0
      %s68 = sadd.s32 %s67, 1
      %s69 = scalar_select %p66, %s67, %s68
      %p72 = pneg %p66
      %p73 = scmp.eq.s32.totalorder %s31, 1
      %p74 = por %p72, %p73
      %p75 = scmp.ne.s32.totalorder %s67, %s70
      %p76 = scmp.eq.s32.totalorder %s31, 0
      %p77 = por %p75, %p76
      %p78 = scmp.ne.s32.totalorder %s67, %s70
      %p79 = scmp.eq.s32.totalorder %s36, 1
      %p80 = por %p78, %p79
      %p81 = scmp.ne.s32.totalorder %s70, %s71
      %p82 = scmp.eq.s32.totalorder %s36, 0
      %p83 = por %p81, %p82
      %p84 = scmp.ne.s32.totalorder %s70, %s71
      %p85 = scmp.eq.s32.totalorder %s37, 1
      %p86 = por %p84, %p85
      %p88 = scmp.ne.s32.totalorder %s71, %s87
      %p89 = scmp.eq.s32.totalorder %s37, 0
      %p90 = por %p88, %p89
      %s91 = ssub.s32 %s31, %s38
      %p92 = scmp.eq.s32.totalorder %s91, 0
      %s94 = sadd.s32 %s93, 1
      %s95 = scalar_select %p92, %s93, %s94
      %p98 = pneg %p92
      %p99 = scmp.eq.s32.totalorder %s31, 1
      %p100 = por %p98, %p99
      %p101 = scmp.ne.s32.totalorder %s93, %s96
      %p102 = scmp.eq.s32.totalorder %s31, 0
      %p103 = por %p101, %p102
      %p104 = scmp.ne.s32.totalorder %s93, %s96
      %p105 = scmp.eq.s32.totalorder %s36, 1
      %p106 = por %p104, %p105
      %p107 = scmp.ne.s32.totalorder %s96, %s97
      %p108 = scmp.eq.s32.totalorder %s36, 0
      %p109 = por %p107, %p108
      %p110 = scmp.ne.s32.totalorder %s96, %s97
      %p111 = scmp.eq.s32.totalorder %s37, 1
      %p112 = por %p110, %p111
      %p114 = scmp.ne.s32.totalorder %s97, %s113
      %p115 = scmp.eq.s32.totalorder %s37, 0
      %p116 = por %p114, %p115
      %s118 = sadd.s32 %s117, 1
      %p121 = scmp.eq.s32.totalorder %s31, 1
      %p122 = scmp.ne.s32.totalorder %s117, %s119
      %p123 = scmp.eq.s32.totalorder %s31, 0
      %p124 = por %p122, %p123
      %p125 = scmp.ne.s32.totalorder %s117, %s119
      %p126 = scmp.eq.s32.totalorder %s36, 1
      %p127 = por %p125, %p126
      %p128 = scmp.ne.s32.totalorder %s119, %s120
      %p129 = scmp.eq.s32.totalorder %s36, 0
      %p130 = por %p128, %p129
      %p131 = scmp.ne.s32.totalorder %s119, %s120
      %p132 = scmp.eq.s32.totalorder %s37, 1
      %p133 = por %p131, %p132
      %p135 = scmp.ne.s32.totalorder %s120, %s134
      %p136 = scmp.eq.s32.totalorder %s37, 0
      %p137 = por %p135, %p136
      %s139 = sadd.s32 %s138, 1
      %p142 = scmp.eq.s32.totalorder %s31, 1
      %p143 = scmp.ne.s32.totalorder %s138, %s140
      %p144 = scmp.eq.s32.totalorder %s31, 0
      %p145 = por %p143, %p144
      %p146 = scmp.ne.s32.totalorder %s138, %s140
      %p147 = scmp.eq.s32.totalorder %s36, 1
      %p148 = por %p146, %p147
      %p149 = scmp.ne.s32.totalorder %s140, %s141
      %p150 = scmp.eq.s32.totalorder %s36, 0
      %p151 = por %p149, %p150
      %p152 = scmp.ne.s32.totalorder %s140, %s141
      %p153 = scmp.eq.s32.totalorder %s37, 1
      %p154 = por %p152, %p153
      %p156 = scmp.ne.s32.totalorder %s141, %s155
      %p157 = scmp.eq.s32.totalorder %s37, 0
      %p158 = por %p156, %p157
      %s160 = sadd.s32 %s159, 1
      %p163 = scmp.eq.s32.totalorder %s31, 1
      %p164 = scmp.ne.s32.totalorder %s159, %s161
      %p165 = scmp.eq.s32.totalorder %s31, 0
      %p166 = por %p164, %p165
      %p167 = scmp.ne.s32.totalorder %s159, %s161
      %p168 = scmp.eq.s32.totalorder %s36, 1
      %p169 = por %p167, %p168
      %p170 = scmp.ne.s32.totalorder %s161, %s162
      %p171 = scmp.eq.s32.totalorder %s36, 0
      %p172 = por %p170, %p171
      %p173 = scmp.ne.s32.totalorder %s161, %s162
      %p174 = scmp.eq.s32.totalorder %s37, 1
      %p175 = por %p173, %p174
      %p177 = scmp.ne.s32.totalorder %s162, %s176
      %p178 = scmp.eq.s32.totalorder %s37, 0
      %p179 = por %p177, %p178
      %s181 = sadd.s32 %s180, 1
      %p184 = scmp.eq.s32.totalorder %s31, 1
      %p185 = scmp.ne.s32.totalorder %s180, %s182
      %p186 = scmp.eq.s32.totalorder %s31, 0
      %p187 = por %p185, %p186
      %p188 = scmp.ne.s32.totalorder %s180, %s182
      %p189 = scmp.eq.s32.totalorder %s36, 1
      %p190 = por %p188, %p189
      %p191 = scmp.ne.s32.totalorder %s182, %s183
      %p192 = scmp.eq.s32.totalorder %s36, 0
      %p193 = por %p191, %p192
      %p194 = scmp.ne.s32.totalorder %s182, %s183
      %p195 = scmp.eq.s32.totalorder %s37, 1
      %p196 = por %p194, %p195
      %p198 = scmp.ne.s32.totalorder %s183, %s197
      %p199 = scmp.eq.s32.totalorder %s37, 0
      %p200 = por %p198, %p199
      %s202 = sadd.s32 %s201, 1
      %p205 = scmp.eq.s32.totalorder %s31, 1
      %p206 = scmp.ne.s32.totalorder %s201, %s203
      %p207 = scmp.eq.s32.totalorder %s31, 0
      %p208 = por %p206, %p207
      %p209 = scmp.ne.s32.totalorder %s201, %s203
      %p210 = scmp.eq.s32.totalorder %s36, 1
      %p211 = por %p209, %p210
      %p212 = scmp.ne.s32.totalorder %s203, %s204
      %p213 = scmp.eq.s32.totalorder %s36, 0
      %p214 = por %p212, %p213
      %p215 = scmp.ne.s32.totalorder %s203, %s204
      %p216 = scmp.eq.s32.totalorder %s37, 1
      %p217 = por %p215, %p216
      %p219 = scmp.ne.s32.totalorder %s204, %s218
      %p220 = scmp.eq.s32.totalorder %s37, 0
      %p221 = por %p219, %p220
      %s223 = sadd.s32 %s222, 1
      %p226 = scmp.eq.s32.totalorder %s31, 1
      %p227 = scmp.ne.s32.totalorder %s222, %s224
      %p228 = scmp.eq.s32.totalorder %s31, 0
      %p229 = por %p227, %p228
      %p230 = scmp.ne.s32.totalorder %s222, %s224
      %p231 = scmp.eq.s32.totalorder %s36, 1
      %p232 = por %p230, %p231
      %p233 = scmp.ne.s32.totalorder %s224, %s225
      %p234 = scmp.eq.s32.totalorder %s36, 0
      %p235 = por %p233, %p234
      %p236 = scmp.ne.s32.totalorder %s224, %s225
      %p237 = scmp.eq.s32.totalorder %s37, 1
      %p238 = por %p236, %p237
      %p240 = scmp.ne.s32.totalorder %s225, %s239
      %p241 = scmp.eq.s32.totalorder %s37, 0
      %p242 = por %p240, %p241
      %s243 = ssub.s32 %s31, %s38
      %p244 = scmp.eq.s32.totalorder %s243, 0
      %s246 = sadd.s32 %s245, 1
      %s247 = scalar_select %p244, %s245, %s246
      %p250 = pneg %p244
      %p251 = scmp.eq.s32.totalorder %s31, 1
      %p252 = por %p250, %p251
      %p253 = scmp.ne.s32.totalorder %s245, %s248
      %p254 = scmp.eq.s32.totalorder %s31, 0
      %p255 = por %p253, %p254
      %p256 = scmp.ne.s32.totalorder %s245, %s248
      %p257 = scmp.eq.s32.totalorder %s36, 1
      %p258 = por %p256, %p257
      %p259 = scmp.ne.s32.totalorder %s248, %s249
      %p260 = scmp.eq.s32.totalorder %s36, 0
      %p261 = por %p259, %p260
      %p262 = scmp.ne.s32.totalorder %s248, %s249
      %p263 = scmp.eq.s32.totalorder %s37, 1
      %p264 = por %p262, %p263
      %p266 = scmp.ne.s32.totalorder %s249, %s265
      %p267 = scmp.eq.s32.totalorder %s37, 0
      %p268 = por %p266, %p267
      %s269 = ssub.s32 %s31, %s38
      %p270 = scmp.eq.s32.totalorder %s269, 0
      %s272 = sadd.s32 %s271, 1
      %s273 = scalar_select %p270, %s271, %s272
      %p276 = pneg %p270
      %p277 = scmp.eq.s32.totalorder %s31, 1
      %p278 = por %p276, %p277
      %p279 = scmp.ne.s32.totalorder %s271, %s274
      %p280 = scmp.eq.s32.totalorder %s31, 0
      %p281 = por %p279, %p280
      %p282 = scmp.ne.s32.totalorder %s271, %s274
      %p283 = scmp.eq.s32.totalorder %s36, 1
      %p284 = por %p282, %p283
      %p285 = scmp.ne.s32.totalorder %s274, %s275
      %p286 = scmp.eq.s32.totalorder %s36, 0
      %p287 = por %p285, %p286
      %p288 = scmp.ne.s32.totalorder %s274, %s275
      %p289 = scmp.eq.s32.totalorder %s37, 1
      %p290 = por %p288, %p289
      %p292 = scmp.ne.s32.totalorder %s275, %s291
      %p293 = scmp.eq.s32.totalorder %s37, 0
      %p294 = por %p292, %p293
      %p295 = scmp.le.s32.totalorder 1, %s31
      %p296 = scmp.lt.s32.totalorder %s31, 3
      %p297 = pnand %p295, %p296
      %p298 = pneg %p297
      // Predicated region
      $region9: #{tpu_custom_call.1} parent=5 // pred_check
        _
      $region10: #{tpu_custom_call.1} parent=5 // pred_check_branch
        %300 = sbr.rel (%p297) target = $region12
      $region11: #{tpu_custom_call.1} parent=5 // pred_region
        %s301 = ssub.s32 %s31, 1
        // Predicated region
        $region13: #{tpu_custom_call.1} parent=11 // pred_check
          %p302 = pneg %p130
        $region14: #{tpu_custom_call.1} parent=11 // pred_check_branch
          %304 = sbr.rel (%p302) target = $region16
        $region15: #{tpu_custom_call.1} parent=11 // pred_region
          %306 = vsyncadd [#allocation9], 0
          %s307 = sshll.u32 %s3, 4
          %s308 = int_to_ptr.hbm [resolvable:$true] %s307
          %s309 = sshll.u32 [#allocation8], 4
          %s310 = int_to_ptr.vmem [resolvable:$true] %s309
          %315 = dma.hbm_to_vmem [thread:$0]  %s308, 512, %s310, [#allocation9], 128, 128, 8
        $region16: #{tpu_custom_call.1} parent=11 // pred_fallthru
          _
        // Predicated region
        $region17: #{tpu_custom_call.1} parent=11 // pred_check
          %p316 = pneg %p151
        $region18: #{tpu_custom_call.1} parent=11 // pred_check_branch
          %318 = sbr.rel (%p316) target = $region20
        $region19: #{tpu_custom_call.1} parent=11 // pred_region
          _
        $region20: #{tpu_custom_call.1} parent=11 // pred_fallthru
          _
        // Predicated region
        $region21: #{tpu_custom_call.1} parent=11 // pred_check
          %p319 = pneg %p172
        $region22: #{tpu_custom_call.1} parent=11 // pred_check_branch
          %321 = sbr.rel (%p319) target = $region24
        $region23: #{tpu_custom_call.1} parent=11 // pred_region
          %323 = vsyncadd [#allocation9], 0
          %s324 = sshll.u32 %s5, 4
          %s325 = int_to_ptr.hbm [resolvable:$true] %s324
          %s326 = sshll.u32 [#allocation10], 4
          %s327 = int_to_ptr.vmem [resolvable:$true] %s326
          %332 = dma.hbm_to_vmem [thread:$0]  %s325, 512, %s327, [#allocation9], 128, 128, 8
        $region24: #{tpu_custom_call.1} parent=11 // pred_fallthru
          _
        // Predicated region
        $region25: #{tpu_custom_call.1} parent=11 // pred_check
          %p333 = pneg %p193
        $region26: #{tpu_custom_call.1} parent=11 // pred_check_branch
          %335 = sbr.rel (%p333) target = $region28
        $region27: #{tpu_custom_call.1} parent=11 // pred_region
          _
        $region28: #{tpu_custom_call.1} parent=11 // pred_fallthru
          _
        // Predicated region
        $region29: #{tpu_custom_call.1} parent=11 // pred_check
          %p336 = pneg %p214
        $region30: #{tpu_custom_call.1} parent=11 // pred_check_branch
          %338 = sbr.rel (%p336) target = $region32
        $region31: #{tpu_custom_call.1} parent=11 // pred_region
          %340 = vsyncadd [#allocation12], 0
          %s341 = sshll.u32 %s7, 4
          %s342 = int_to_ptr.hbm [resolvable:$true] %s341
          %s343 = sshll.u32 [#allocation11], 4
          %s344 = int_to_ptr.vmem [resolvable:$true] %s343
          %349 = dma.hbm_to_vmem [thread:$0]  %s342, 512, %s344, [#allocation12], 128, 128, 8
        $region32: #{tpu_custom_call.1} parent=11 // pred_fallthru
          _
        // Predicated region
        $region33: #{tpu_custom_call.1} parent=11 // pred_check
          %p350 = pneg %p235
        $region34: #{tpu_custom_call.1} parent=11 // pred_check_branch
          %352 = sbr.rel (%p350) target = $region36
        $region35: #{tpu_custom_call.1} parent=11 // pred_region
          _
        $region36: #{tpu_custom_call.1} parent=11 // pred_fallthru
          _
      $region12: #{tpu_custom_call.1} parent=5 // pred_fallthru
        _
      %p353 = scmp.lt.s32.totalorder %s31, 2
      // Predicated region
      $region37: #{tpu_custom_call.1} parent=5 // pred_check
        %p354 = pneg %p353
      $region38: #{tpu_custom_call.1} parent=5 // pred_check_branch
        %356 = sbr.rel (%p354) target = $region40
      $region39: #{tpu_custom_call.1} parent=5 // pred_region
        // Predicated region
        $region41: #{tpu_custom_call.1} parent=39 // pred_check
          %p357 = pneg %p51
        $region42: #{tpu_custom_call.1} parent=39 // pred_check_branch
          %359 = sbr.rel (%p357) target = $region44
        $region43: #{tpu_custom_call.1} parent=39 // pred_region
          %s360 = sand.u32 %s41, 1
          %s361 = scalar_lea.sflag [#allocation3], %s360
          %s362 = sand.u32 %s41, 1
          %s363 = smul.addr %s362, 16
          %s364 = scalar_lea.vmem [#allocation2], %s363
          %s365 = smul.u32 2, %s31
          %367 = vsyncadd %s361, 0
          %s368 = smul.addr %s365, 8
          %s369 = scalar_lea.hbm %s0, %s368
          %s370 = sshll.u32 %s369, 4
          %s371 = int_to_ptr.hbm [resolvable:$true] %s370
          %s372 = sshll.u32 %s364, 4
          %s373 = int_to_ptr.vmem [resolvable:$true] %s372
          %378 = dma.hbm_to_vmem [thread:$0]  %s371, 256, %s373, %s361, 128, 128, 8
        $region44: #{tpu_custom_call.1} parent=39 // pred_fallthru
          _
        // Predicated region
        $region45: #{tpu_custom_call.1} parent=39 // pred_check
          %p379 = pneg %p77
        $region46: #{tpu_custom_call.1} parent=39 // pred_check_branch
          %381 = sbr.rel (%p379) target = $region48
        $region47: #{tpu_custom_call.1} parent=39 // pred_region
          %s382 = sand.u32 %s31, 1
          %s383 = scalar_lea.sflag [#allocation6], %s382
          %s384 = sand.u32 %s67, 1
          %s385 = smul.addr %s384, 32
          %s386 = scalar_lea.vmem [#allocation5], %s385
          %s387 = smul.u32 2, %s31
          %389 = vsyncadd %s383, 0
          %s390 = smul.addr %s387, 2
          %s391 = smul.addr %s390, 8
          %s392 = scalar_lea.hbm %s1, %s391
          %s393 = sshll.u32 %s392, 4
          %s394 = int_to_ptr.hbm [resolvable:$true] %s393
          %s395 = sshll.u32 %s386, 4
          %s396 = int_to_ptr.vmem [resolvable:$true] %s395
          %401 = dma.hbm_to_vmem [thread:$0]  %s394, 512, %s396, %s383, 128, 128, 8
        $region48: #{tpu_custom_call.1} parent=39 // pred_fallthru
          _
        // Predicated region
        $region49: #{tpu_custom_call.1} parent=39 // pred_check
          %p402 = pneg %p103
        $region50: #{tpu_custom_call.1} parent=39 // pred_check_branch
          %404 = sbr.rel (%p402) target = $region52
        $region51: #{tpu_custom_call.1} parent=39 // pred_region
          %s405 = sand.u32 %s31, 1
          %s406 = scalar_lea.sflag [#allocation6], %s405
          %s407 = sand.u32 %s93, 1
          %s408 = smul.addr %s407, 2
          %s409 = scalar_lea.vmem [#allocation7], %s408
          %s410 = smul.u32 2, %s31
          %412 = vsyncadd %s406, 0
          %s413 = scalar_lea.hbm %s2, %s410
          %s414 = sshll.u32 %s413, 4
          %s415 = int_to_ptr.hbm [resolvable:$true] %s414
          %s416 = sshll.u32 %s409, 4
          %s417 = int_to_ptr.vmem [resolvable:$true] %s416
          %422 = dma.hbm_to_vmem [thread:$0]  %s415, 32, %s417, %s406, 16, 16, 1
        $region52: #{tpu_custom_call.1} parent=39 // pred_fallthru
          _
      $region40: #{tpu_custom_call.1} parent=5 // pred_fallthru
        _
      %p423 = scmp.le.s32.totalorder 1, %s31
      %p424 = scmp.lt.s32.totalorder %s31, 3
      %p425 = pnand %p423, %p424
      %p426 = pneg %p425
      // Predicated region
      $region53: #{tpu_custom_call.1} parent=5 // pred_check
        _
      $region54: #{tpu_custom_call.1} parent=5 // pred_check_branch
        %428 = sbr.rel (%p425) target = $region56
      $region55: #{tpu_custom_call.1} parent=5 // pred_region
        %s429 = ssub.s32 %s31, 1
        %s430 = sand.u32 %s44, 1
        %s431 = scalar_lea.sflag [#allocation3], %s430
        %s432 = sand.u32 %s44, 1
        %s433 = smul.addr %s432, 16
        %s434 = scalar_lea.vmem [#allocation2], %s433
        // Predicated region
        $region57: #{tpu_custom_call.1} parent=55 // pred_check
          %p435 = pneg %p57
        $region58: #{tpu_custom_call.1} parent=55 // pred_check_branch
          %437 = sbr.rel (%p435) target = $region60
        $region59: #{tpu_custom_call.1} parent=55 // pred_region
          %439 = dma.done %s431, 256
        $region60: #{tpu_custom_call.1} parent=55 // pred_fallthru
          _
        %s440 = sand.u32 %s36, 1
        %s441 = scalar_lea.sflag [#allocation6], %s440
        %s442 = sand.u32 %s70, 1
        %s443 = smul.addr %s442, 32
        %s444 = scalar_lea.vmem [#allocation5], %s443
        // Predicated region
        $region61: #{tpu_custom_call.1} parent=55 // pred_check
          %p445 = pneg %p83
        $region62: #{tpu_custom_call.1} parent=55 // pred_check_branch
          %447 = sbr.rel (%p445) target = $region64
        $region63: #{tpu_custom_call.1} parent=55 // pred_region
          %449 = dma.done %s441, 512
        $region64: #{tpu_custom_call.1} parent=55 // pred_fallthru
          _
        %s450 = sand.u32 %s36, 1
        %s451 = scalar_lea.sflag [#allocation6], %s450
        %s452 = sand.u32 %s96, 1
        %s453 = smul.addr %s452, 2
        %s454 = scalar_lea.vmem [#allocation7], %s453
        // Predicated region
        $region65: #{tpu_custom_call.1} parent=55 // pred_check
          %p455 = pneg %p109
        $region66: #{tpu_custom_call.1} parent=55 // pred_check_branch
          %457 = sbr.rel (%p455) target = $region68
        $region67: #{tpu_custom_call.1} parent=55 // pred_region
          %459 = dma.done %s451, 32
        $region68: #{tpu_custom_call.1} parent=55 // pred_fallthru
          _
        // Predicated region
        $region69: #{tpu_custom_call.1} parent=55 // pred_check
          %p460 = pneg %p130
        $region70: #{tpu_custom_call.1} parent=55 // pred_check_branch
          %462 = sbr.rel (%p460) target = $region72
        $region71: #{tpu_custom_call.1} parent=55 // pred_region
          %464 = dma.done [#allocation9], 512
        $region72: #{tpu_custom_call.1} parent=55 // pred_fallthru
          _
        // Predicated region
        $region73: #{tpu_custom_call.1} parent=55 // pred_check
          %p465 = pneg %p172
        $region74: #{tpu_custom_call.1} parent=55 // pred_check_branch
          %467 = sbr.rel (%p465) target = $region76
        $region75: #{tpu_custom_call.1} parent=55 // pred_region
          %469 = dma.done [#allocation9], 512
        $region76: #{tpu_custom_call.1} parent=55 // pred_fallthru
          _
        // Predicated region
        $region77: #{tpu_custom_call.1} parent=55 // pred_check
          %p470 = pneg %p214
        $region78: #{tpu_custom_call.1} parent=55 // pred_check_branch
          %472 = sbr.rel (%p470) target = $region80
        $region79: #{tpu_custom_call.1} parent=55 // pred_region
          %474 = dma.done [#allocation12], 512
        $region80: #{tpu_custom_call.1} parent=55 // pred_fallthru
          _
        %s475 = sand.u32 %s44, 1
        %s476 = scalar_lea.sflag [#allocation3], %s475
        %s477 = sand.u32 %s44, 1
        %s478 = smul.addr %s477, 16
        %s479 = scalar_lea.vmem [#allocation2], %s478
        %p480 = pneg %p57
        %p481 = pneg %p54
        %s482 = sand.u32 %s36, 1
        %s483 = scalar_lea.sflag [#allocation6], %s482
        %s484 = sand.u32 %s70, 1
        %s485 = smul.addr %s484, 32
        %s486 = scalar_lea.vmem [#allocation5], %s485
        %p487 = pneg %p83
        %p488 = pneg %p80
        %s489 = sand.u32 %s36, 1
        %s490 = scalar_lea.sflag [#allocation6], %s489
        %s491 = sand.u32 %s96, 1
        %s492 = smul.addr %s491, 2
        %s493 = scalar_lea.vmem [#allocation7], %s492
        %p494 = pneg %p109
        %p495 = pneg %p106
        %p496 = pneg %p130
        %p497 = pneg %p127
        %p498 = pneg %p151
        %p499 = pneg %p148
        %p500 = pneg %p172
        %p501 = pneg %p169
        %p502 = pneg %p193
        %p503 = pneg %p190
        %p504 = pneg %p214
        %p505 = pneg %p211
        %p506 = pneg %p235
        %p507 = pneg %p232
        %p508 = pneg %p261
        %p509 = pneg %p258
        %s510 = sand.u32 %s248, 1
        %s511 = scalar_lea.sflag [#allocation4], %s510
        %s512 = sand.u32 %s248, 1
        %s513 = smul.addr %s512, 16
        %s514 = scalar_lea.vmem [#allocation13], %s513
        %p515 = pneg %p287
        %p516 = pneg %p284
        %s517 = sand.u32 %s274, 1
        %s518 = scalar_lea.sflag [#allocation15], %s517
        %s519 = sand.u32 %s274, 1
        %s520 = smul.addr %s519, 64
        %s521 = scalar_lea.vmem [#allocation14], %s520
        %s522 = smul.u32 2, %s36
        %s523 = smul.u32 2, %s36
        %s524 = smul.u32 2, %s36
        %s525 = smul.u32 2, %s36
        %s526 = smul.u32 2, %s36
        %v527 = vld [vmem:[%s434] sm:$0xff]
        %v528 = vld [vmem:[%s434 + $0x8] sm:$0xff]
        %v529 = vld [vmem:[%s444] sm:$0xff]
        %v530 = vld [vmem:[%s444 + $0x8] sm:$0xff]
        %v531 = vld [vmem:[%s444 + $0x10] sm:$0xff]
        %v532 = vld [vmem:[%s444 + $0x18] sm:$0xff]
        %v533 = vld [vmem:[#allocation8] sm:$0xff]
        %v534 = vld [vmem:[#allocation8 + $0x8] sm:$0xff]
        %v535 = vld [vmem:[#allocation8 + $0x10] sm:$0xff]
        %v536 = vld [vmem:[#allocation8 + $0x18] sm:$0xff]
        %v537 = vld [vmem:[%s4] sm:$0x1]
        %v539 = vperm.slane %v537, 0
        %vm541 = vcmask 261120
        %v543 = vsel %vm541, %v527, 0
        %v546 = vsel %vm541, %v528, 0
        %548 = vmatpush.msra.mxu0 0.0
        %549 = vmatpush.msra.mxu0 0.0
        %550 = vmatpush.msra.mxu0 0.0
        %551 = vmatpush.msra.mxu0 0.0
        %552 = vmatpush.msra.mxu0 0.0
        %553 = vmatpush.msra.mxu0 0.0
        %554 = vmatpush.msra.mxu0 0.0
        %555 = vmatpush.msra.mxu0 0.0
        %556 = vmatpush.msra.mxu0 0.0
        %557 = vmatpush.msra.mxu0 0.0
        %558 = vmatpush.msra.mxu0 0.0
        %559 = vmatpush.msra.mxu0 0.0
        %560 = vmatpush.msra.mxu0 %v536
        %561 = vmatpush.msra.mxu0 %v535
        %562 = vmatpush.msra.mxu0 %v534
        %563 = vmatpush.msra.mxu0 %v533
        %564 = vmatmul.f32.gmra.mxu0 %v543
        %v565 = vpop.f32.mrf.mxu0
        %v566 = vadd.f32 %v539, %v565
        %567 = vmatmul.f32.gmra.mxu0 %v546
        %v568 = vpop.f32.mrf.mxu0
        %v569 = vadd.f32 %v539, %v568
        %570 = vdwg.mxu0
        %v571 = vmul.f32 %v566, 0.35355338
        %v572 = vmul.f32 %v569, 0.35355338
        %v573 = vld [vmem:[#allocation10] sm:$0xff]
        %v574 = vld [vmem:[#allocation10 + $0x8] sm:$0xff]
        %v575 = vld [vmem:[#allocation10 + $0x10] sm:$0xff]
        %v576 = vld [vmem:[#allocation10 + $0x18] sm:$0xff]
        %v577 = vld [vmem:[%s6] sm:$0x1]
        %v579 = vperm.slane %v577, 0
        %v582 = vsel %vm541, %v529, 0
        %v585 = vsel %vm541, %v530, 0
        %v588 = vsel %vm541, %v531, 0
        %v591 = vsel %vm541, %v532, 0
        %593 = vmatpush.msra.mxu0 0.0
        %594 = vmatpush.msra.mxu0 0.0
        %595 = vmatpush.msra.mxu0 0.0
        %596 = vmatpush.msra.mxu0 0.0
        %597 = vmatpush.msra.mxu0 0.0
        %598 = vmatpush.msra.mxu0 0.0
        %599 = vmatpush.msra.mxu0 0.0
        %600 = vmatpush.msra.mxu0 0.0
        %601 = vmatpush.msra.mxu0 0.0
        %602 = vmatpush.msra.mxu0 0.0
        %603 = vmatpush.msra.mxu0 0.0
        %604 = vmatpush.msra.mxu0 0.0
        %605 = vmatpush.msra.mxu0 %v576
        %606 = vmatpush.msra.mxu0 %v575
        %607 = vmatpush.msra.mxu0 %v574
        %608 = vmatpush.msra.mxu0 %v573
        %609 = vmatmul.f32.gmra.mxu0 %v582
        %v610 = vpop.f32.mrf.mxu0
        %v611 = vadd.f32 %v579, %v610
        %612 = vmatmul.f32.gmra.mxu0 %v585
        %v613 = vpop.f32.mrf.mxu0
        %v614 = vadd.f32 %v579, %v613
        %615 = vmatmul.f32.gmra.mxu0 %v588
        %v616 = vpop.f32.mrf.mxu0
        %v617 = vadd.f32 %v579, %v616
        %618 = vmatmul.f32.gmra.mxu0 %v591
        %v619 = vpop.f32.mrf.mxu0
        %v620 = vadd.f32 %v579, %v619
        %621 = vdwg.mxu0
        %v622 = vld [vmem:[#allocation11] sm:$0xff]
        %v623 = vld [vmem:[#allocation11 + $0x8] sm:$0xff]
        %v624 = vld [vmem:[#allocation11 + $0x10] sm:$0xff]
        %v625 = vld [vmem:[#allocation11 + $0x18] sm:$0xff]
        %v626 = vld [vmem:[%s8] sm:$0x1]
        %v628 = vperm.slane %v626, 0
        %630 = vmatpush.msra.mxu0 0.0
        %631 = vmatpush.msra.mxu0 0.0
        %632 = vmatpush.msra.mxu0 0.0
        %633 = vmatpush.msra.mxu0 0.0
        %634 = vmatpush.msra.mxu0 0.0
        %635 = vmatpush.msra.mxu0 0.0
        %636 = vmatpush.msra.mxu0 0.0
        %637 = vmatpush.msra.mxu0 0.0
        %638 = vmatpush.msra.mxu0 0.0
        %639 = vmatpush.msra.mxu0 0.0
        %640 = vmatpush.msra.mxu0 0.0
        %641 = vmatpush.msra.mxu0 0.0
        %642 = vmatpush.msra.mxu0 %v625
        %643 = vmatpush.msra.mxu0 %v624
        %644 = vmatpush.msra.mxu0 %v623
        %645 = vmatpush.msra.mxu0 %v622
        %646 = vmatmul.f32.gmra.mxu0 %v582
        %v647 = vpop.f32.mrf.mxu0
        %v648 = vadd.f32 %v628, %v647
        %649 = vmatmul.f32.gmra.mxu0 %v585
        %v650 = vpop.f32.mrf.mxu0
        %v651 = vadd.f32 %v628, %v650
        %652 = vmatmul.f32.gmra.mxu0 %v588
        %v653 = vpop.f32.mrf.mxu0
        %v654 = vadd.f32 %v628, %v653
        %655 = vmatmul.f32.gmra.mxu0 %v591
        %v656 = vpop.f32.mrf.mxu0
        %v657 = vadd.f32 %v628, %v656
        %658 = vdwg.mxu0
        %v659 = vld [vmem:[%s454] sm:$0x1]
        %v660 = vld [vmem:[%s454 + $0x1] sm:$0x1]
        %v663 = vperm.slane %v659, 0
        %v664 = vperm.slane %v660, 0
        %vm667 = vcmask 64512
        %v669 = vsel %vm667, %v571, 0
        %v672 = vsel %vm667, %v611, 0
        %v675 = vsel %vm667, %v614, 0
        %677 = vmatpush.xpose.msra.mxu0 0.0
        %678 = vmatpush.xpose.msra.mxu0 0.0
        %679 = vmatpush.xpose.msra.mxu0 0.0
        %680 = vmatpush.xpose.msra.mxu0 0.0
        %681 = vmatpush.xpose.msra.mxu0 0.0
        %682 = vmatpush.xpose.msra.mxu0 0.0
        %683 = vmatpush.xpose.msra.mxu0 0.0
        %684 = vmatpush.xpose.msra.mxu0 0.0
        %685 = vmatpush.xpose.msra.mxu0 0.0
        %686 = vmatpush.xpose.msra.mxu0 0.0
        %687 = vmatpush.xpose.msra.mxu0 0.0
        %688 = vmatpush.xpose.msra.mxu0 0.0
        %689 = vmatpush.xpose.msra.mxu0 0.0
        %690 = vmatpush.xpose.msra.mxu0 0.0
        %691 = vmatpush.xpose.msra.mxu0 %v675
        %692 = vmatpush.xpose.msra.mxu0 %v672
        %693 = vmatmul.f32.gmra.mxu0 %v669
        %v694 = vpop.f32.mrf.mxu0
        %v695 = vadd.f32 %v663, %v694
        %696 = vdwg.mxu0
        %v698 = vsel %vm667, %v572, 0
        %v701 = vsel %vm667, %v617, 0
        %v704 = vsel %vm667, %v620, 0
        %706 = vmatpush.xpose.msra.mxu0 0.0
        %707 = vmatpush.xpose.msra.mxu0 0.0
        %708 = vmatpush.xpose.msra.mxu0 0.0
        %709 = vmatpush.xpose.msra.mxu0 0.0
        %710 = vmatpush.xpose.msra.mxu0 0.0
        %711 = vmatpush.xpose.msra.mxu0 0.0
        %712 = vmatpush.xpose.msra.mxu0 0.0
        %713 = vmatpush.xpose.msra.mxu0 0.0
        %714 = vmatpush.xpose.msra.mxu0 0.0
        %715 = vmatpush.xpose.msra.mxu0 0.0
        %716 = vmatpush.xpose.msra.mxu0 0.0
        %717 = vmatpush.xpose.msra.mxu0 0.0
        %718 = vmatpush.xpose.msra.mxu0 0.0
        %719 = vmatpush.xpose.msra.mxu0 0.0
        %720 = vmatpush.xpose.msra.mxu0 %v704
        %721 = vmatpush.xpose.msra.mxu0 %v701
        %722 = vmatmul.f32.gmra.mxu0 %v698
        %v723 = vpop.f32.mrf.mxu0
        %v724 = vadd.f32 %v664, %v723
        %725 = vdwg.mxu0
        %vm726 = vcmask 130048
        %v727 = vsel %vm726, %v695, -inf
        %728 = vmax.xlane.f32.xlu0 %v727
        %v729 = vpop.xlane.xlu0 %728
        %v730 = vsel %vm726, %v724, -inf
        %731 = vmax.xlane.f32.xlu0 %v730
        %v732 = vpop.xlane.xlu0 %731
        %v733 = vsub.f32 %v695, %v729
        %v734 = vsub.f32 %v724, %v732
        %v735 = vmul.f32 %v733, 1.442695
        %v736 = vpow.pop %v735
        %v737 = vmul.f32 %v734, 1.442695
        %v738 = vpow.pop %v737
        %v739 = vsel %vm726, %v736, 0.0
        %740 = vadd.xlane.f32.xlu0 %v739
        %v741 = vpop.xlane.xlu0 %740
        %v742 = vsel %vm726, %v738, 0.0
        %743 = vadd.xlane.f32.xlu0 %v742
        %v744 = vpop.xlane.xlu0 %743
        %v745 = vrcp.pop %v741
        %v746 = vmul.f32 %v741, %v745
        %v747 = vsub.f32 1.0, %v746
        %v748 = vmul.f32 %v745, %v747
        %v749 = vadd.f32 %v745, %v748
        %vm750 = vweird.f32 %v741
        %vm751 = vweird.f32 %v745
        %vm752 = vmor %vm750, %vm751
        %v753 = vsel %vm752, %v745, %v749
        %v754 = vand.u32 2147483647, %v741
        %vm755 = vcmp.eq.f32.partialorder %v754, 8.507059e+37
        %v756 = vand.u32 %v741, 2147483648
        %v757 = vor.u32 1.1754944e-38, %v756
        %v758 = vsel %vm755, %v757, %v753
        %v759 = vrcp.pop %v744
        %v760 = vmul.f32 %v744, %v759
        %v761 = vsub.f32 1.0, %v760
        %v762 = vmul.f32 %v759, %v761
        %v763 = vadd.f32 %v759, %v762
        %vm764 = vweird.f32 %v744
        %vm765 = vweird.f32 %v759
        %vm766 = vmor %vm764, %vm765
        %v767 = vsel %vm766, %v759, %v763
        %v768 = vand.u32 2147483647, %v744
        %vm769 = vcmp.eq.f32.partialorder %v768, 8.507059e+37
        %v770 = vand.u32 %v744, 2147483648
        %v771 = vor.u32 1.1754944e-38, %v770
        %v772 = vsel %vm769, %v771, %v767
        %v773 = vmul.f32 %v736, %v758
        %v774 = vmul.f32 %v738, %v772
        %775 = vst.msk [vmem:[%s521] sm:$0xff] %vm726, %v773
        %776 = vst.msk [vmem:[%s521 + $0x20] sm:$0xff] %vm726, %v774
        %v778 = vsel %vm726, %v773, 0
        %780 = vmatpush.msra.mxu0 0.0
        %781 = vmatpush.msra.mxu0 0.0
        %782 = vmatpush.msra.mxu0 0.0
        %783 = vmatpush.msra.mxu0 0.0
        %784 = vmatpush.msra.mxu0 0.0
        %785 = vmatpush.msra.mxu0 0.0
        %786 = vmatpush.msra.mxu0 0.0
        %787 = vmatpush.msra.mxu0 0.0
        %788 = vmatpush.msra.mxu0 0.0
        %789 = vmatpush.msra.mxu0 0.0
        %790 = vmatpush.msra.mxu0 0.0
        %791 = vmatpush.msra.mxu0 0.0
        %792 = vmatpush.msra.mxu0 0.0
        %793 = vmatpush.msra.mxu0 0.0
        %794 = vmatpush.msra.mxu0 %v651
        %795 = vmatpush.msra.mxu0 %v648
        %796 = vmatmul.f32.gmra.mxu0 %v778
        %v797 = vpop.f32.mrf.mxu0
        %v798 = vadd.f32 0.0, %v797
        %799 = vdwg.mxu0
        %v801 = vsel %vm726, %v774, 0
        %803 = vmatpush.msra.mxu0 0.0
        %804 = vmatpush.msra.mxu0 0.0
        %805 = vmatpush.msra.mxu0 0.0
        %806 = vmatpush.msra.mxu0 0.0
        %807 = vmatpush.msra.mxu0 0.0
        %808 = vmatpush.msra.mxu0 0.0
        %809 = vmatpush.msra.mxu0 0.0
        %810 = vmatpush.msra.mxu0 0.0
        %811 = vmatpush.msra.mxu0 0.0
        %812 = vmatpush.msra.mxu0 0.0
        %813 = vmatpush.msra.mxu0 0.0
        %814 = vmatpush.msra.mxu0 0.0
        %815 = vmatpush.msra.mxu0 0.0
        %816 = vmatpush.msra.mxu0 0.0
        %817 = vmatpush.msra.mxu0 %v657
        %818 = vmatpush.msra.mxu0 %v654
        %819 = vmatmul.f32.gmra.mxu0 %v801
        %v820 = vpop.f32.mrf.mxu0
        %v821 = vadd.f32 0.0, %v820
        %822 = vdwg.mxu0
        %823 = vst.msk [vmem:[%s514] sm:$0xff] %vm667, %v798
        %824 = vst.msk [vmem:[%s514 + $0x8] sm:$0xff] %vm667, %v821
        %825 = vrot.lane.b32.xlu0 %v571, 120
        %v826 = vpop.permute.xlu0 %825
        %827 = vrot.lane.b32.xlu0 %v611, 120
        %v828 = vpop.permute.xlu0 %827
        %829 = vrot.lane.b32.xlu0 %v614, 120
        %v830 = vpop.permute.xlu0 %829
        %v831 = vsel %vm667, %v826, 0
        %v833 = vsel %vm667, %v828, 0
        %v835 = vsel %vm667, %v830, 0
        %837 = vmatpush.xpose.msra.mxu0 0.0
        %838 = vmatpush.xpose.msra.mxu0 0.0
        %839 = vmatpush.xpose.msra.mxu0 0.0
        %840 = vmatpush.xpose.msra.mxu0 0.0
        %841 = vmatpush.xpose.msra.mxu0 0.0
        %842 = vmatpush.xpose.msra.mxu0 0.0
        %843 = vmatpush.xpose.msra.mxu0 0.0
        %844 = vmatpush.xpose.msra.mxu0 0.0
        %845 = vmatpush.xpose.msra.mxu0 0.0
        %846 = vmatpush.xpose.msra.mxu0 0.0
        %847 = vmatpush.xpose.msra.mxu0 0.0
        %848 = vmatpush.xpose.msra.mxu0 0.0
        %849 = vmatpush.xpose.msra.mxu0 0.0
        %850 = vmatpush.xpose.msra.mxu0 0.0
        %851 = vmatpush.xpose.msra.mxu0 %v835
        %852 = vmatpush.xpose.msra.mxu0 %v833
        %853 = vmatmul.f32.gmra.mxu0 %v831
        %v854 = vpop.f32.mrf.mxu0
        %v855 = vadd.f32 %v663, %v854
        %856 = vdwg.mxu0
        %857 = vrot.lane.b32.xlu0 %v572, 120
        %v858 = vpop.permute.xlu0 %857
        %859 = vrot.lane.b32.xlu0 %v617, 120
        %v860 = vpop.permute.xlu0 %859
        %861 = vrot.lane.b32.xlu0 %v620, 120
        %v862 = vpop.permute.xlu0 %861
        %v863 = vsel %vm667, %v858, 0
        %v865 = vsel %vm667, %v860, 0
        %v867 = vsel %vm667, %v862, 0
        %869 = vmatpush.xpose.msra.mxu0 0.0
        %870 = vmatpush.xpose.msra.mxu0 0.0
        %871 = vmatpush.xpose.msra.mxu0 0.0
        %872 = vmatpush.xpose.msra.mxu0 0.0
        %873 = vmatpush.xpose.msra.mxu0 0.0
        %874 = vmatpush.xpose.msra.mxu0 0.0
        %875 = vmatpush.xpose.msra.mxu0 0.0
        %876 = vmatpush.xpose.msra.mxu0 0.0
        %877 = vmatpush.xpose.msra.mxu0 0.0
        %878 = vmatpush.xpose.msra.mxu0 0.0
        %879 = vmatpush.xpose.msra.mxu0 0.0
        %880 = vmatpush.xpose.msra.mxu0 0.0
        %881 = vmatpush.xpose.msra.mxu0 0.0
        %882 = vmatpush.xpose.msra.mxu0 0.0
        %883 = vmatpush.xpose.msra.mxu0 %v867
        %884 = vmatpush.xpose.msra.mxu0 %v865
        %885 = vmatmul.f32.gmra.mxu0 %v863
        %v886 = vpop.f32.mrf.mxu0
        %v887 = vadd.f32 %v664, %v886
        %888 = vdwg.mxu0
        %v889 = vsel %vm726, %v855, -inf
        %890 = vmax.xlane.f32.xlu0 %v889
        %v891 = vpop.xlane.xlu0 %890
        %v892 = vsel %vm726, %v887, -inf
        %893 = vmax.xlane.f32.xlu0 %v892
        %v894 = vpop.xlane.xlu0 %893
        %v895 = vsub.f32 %v855, %v891
        %v896 = vsub.f32 %v887, %v894
        %v897 = vmul.f32 %v895, 1.442695
        %v898 = vpow.pop %v897
        %v899 = vmul.f32 %v896, 1.442695
        %v900 = vpow.pop %v899
        %v901 = vsel %vm726, %v898, 0.0
        %902 = vadd.xlane.f32.xlu0 %v901
        %v903 = vpop.xlane.xlu0 %902
        %v904 = vsel %vm726, %v900, 0.0
        %905 = vadd.xlane.f32.xlu0 %v904
        %v906 = vpop.xlane.xlu0 %905
        %v907 = vrcp.pop %v903
        %v908 = vmul.f32 %v903, %v907
        %v909 = vsub.f32 1.0, %v908
        %v910 = vmul.f32 %v907, %v909
        %v911 = vadd.f32 %v907, %v910
        %vm912 = vweird.f32 %v903
        %vm913 = vweird.f32 %v907
        %vm914 = vmor %vm912, %vm913
        %v915 = vsel %vm914, %v907, %v911
        %v916 = vand.u32 2147483647, %v903
        %vm917 = vcmp.eq.f32.partialorder %v916, 8.507059e+37
        %v918 = vand.u32 %v903, 2147483648
        %v919 = vor.u32 1.1754944e-38, %v918
        %v920 = vsel %vm917, %v919, %v915
        %v921 = vrcp.pop %v906
        %v922 = vmul.f32 %v906, %v921
        %v923 = vsub.f32 1.0, %v922
        %v924 = vmul.f32 %v921, %v923
        %v925 = vadd.f32 %v921, %v924
        %vm926 = vweird.f32 %v906
        %vm927 = vweird.f32 %v921
        %vm928 = vmor %vm926, %vm927
        %v929 = vsel %vm928, %v921, %v925
        %v930 = vand.u32 2147483647, %v906
        %vm931 = vcmp.eq.f32.partialorder %v930, 8.507059e+37
        %v932 = vand.u32 %v906, 2147483648
        %v933 = vor.u32 1.1754944e-38, %v932
        %v934 = vsel %vm931, %v933, %v929
        %v935 = vmul.f32 %v898, %v920
        %v936 = vmul.f32 %v900, %v934
        %s937 = scalar_lea.vmem %s521, 8 [#allocation14]
        %938 = vst.msk [vmem:[%s937] sm:$0xff] %vm726, %v935
        %939 = vst.msk [vmem:[%s937 + $0x20] sm:$0xff] %vm726, %v936
        %942 = vrot.lane.b32.xlu0 %v648, 120
        %v943 = vpop.permute.xlu0 %942
        %944 = vrot.lane.b32.xlu0 %v651, 120
        %v945 = vpop.permute.xlu0 %944
        %v949 = vsel %vm726, %v935, 0
        %951 = vmatpush.msra.mxu0 0.0
        %952 = vmatpush.msra.mxu0 0.0
        %953 = vmatpush.msra.mxu0 0.0
        %954 = vmatpush.msra.mxu0 0.0
        %955 = vmatpush.msra.mxu0 0.0
        %956 = vmatpush.msra.mxu0 0.0
        %957 = vmatpush.msra.mxu0 0.0
        %958 = vmatpush.msra.mxu0 0.0
        %959 = vmatpush.msra.mxu0 0.0
        %960 = vmatpush.msra.mxu0 0.0
        %961 = vmatpush.msra.mxu0 0.0
        %962 = vmatpush.msra.mxu0 0.0
        %963 = vmatpush.msra.mxu0 0.0
        %964 = vmatpush.msra.mxu0 0.0
        %965 = vmatpush.msra.mxu0 %v945
        %966 = vmatpush.msra.mxu0 %v943
        %967 = vmatmul.f32.gmra.mxu0 %v949
        %v968 = vpop.f32.mrf.mxu0
        %v969 = vadd.f32 0.0, %v968
        %970 = vdwg.mxu0
        %973 = vrot.lane.b32.xlu0 %v654, 120
        %v974 = vpop.permute.xlu0 %973
        %975 = vrot.lane.b32.xlu0 %v657, 120
        %v976 = vpop.permute.xlu0 %975
        %v980 = vsel %vm726, %v936, 0
        %982 = vmatpush.msra.mxu0 0.0
        %983 = vmatpush.msra.mxu0 0.0
        %984 = vmatpush.msra.mxu0 0.0
        %985 = vmatpush.msra.mxu0 0.0
        %986 = vmatpush.msra.mxu0 0.0
        %987 = vmatpush.msra.mxu0 0.0
        %988 = vmatpush.msra.mxu0 0.0
        %989 = vmatpush.msra.mxu0 0.0
        %990 = vmatpush.msra.mxu0 0.0
        %991 = vmatpush.msra.mxu0 0.0
        %992 = vmatpush.msra.mxu0 0.0
        %993 = vmatpush.msra.mxu0 0.0
        %994 = vmatpush.msra.mxu0 0.0
        %995 = vmatpush.msra.mxu0 0.0
        %996 = vmatpush.msra.mxu0 %v976
        %997 = vmatpush.msra.mxu0 %v974
        %998 = vmatmul.f32.gmra.mxu0 %v980
        %v999 = vpop.f32.mrf.mxu0
        %v1000 = vadd.f32 0.0, %v999
        %1001 = vdwg.mxu0
        %1004 = vrot.lane.b32.xlu0 %v969, 8
        %v1005 = vpop.permute.xlu0 %1004
        %1006 = vrot.lane.b32.xlu0 %v1000, 8
        %v1007 = vpop.permute.xlu0 %1006
        %vm1010 = vcmask 130112
        %1011 = vst.msk [vmem:[%s514] sm:$0xff] %vm1010, %v1005
        %1012 = vst.msk [vmem:[%s514 + $0x8] sm:$0xff] %vm1010, %v1007
        %1013 = vrot.lane.b32.xlu0 %v571, 112
        %v1014 = vpop.permute.xlu0 %1013
        %1015 = vrot.lane.b32.xlu0 %v611, 112
        %v1016 = vpop.permute.xlu0 %1015
        %1017 = vrot.lane.b32.xlu0 %v614, 112
        %v1018 = vpop.permute.xlu0 %1017
        %v1019 = vsel %vm667, %v1014, 0
        %v1021 = vsel %vm667, %v1016, 0
        %v1023 = vsel %vm667, %v1018, 0
        %1025 = vmatpush.xpose.msra.mxu0 0.0
        %1026 = vmatpush.xpose.msra.mxu0 0.0
        %1027 = vmatpush.xpose.msra.mxu0 0.0
        %1028 = vmatpush.xpose.msra.mxu0 0.0
        %1029 = vmatpush.xpose.msra.mxu0 0.0
        %1030 = vmatpush.xpose.msra.mxu0 0.0
        %1031 = vmatpush.xpose.msra.mxu0 0.0
        %1032 = vmatpush.xpose.msra.mxu0 0.0
        %1033 = vmatpush.xpose.msra.mxu0 0.0
        %1034 = vmatpush.xpose.msra.mxu0 0.0
        %1035 = vmatpush.xpose.msra.mxu0 0.0
        %1036 = vmatpush.xpose.msra.mxu0 0.0
        %1037 = vmatpush.xpose.msra.mxu0 0.0
        %1038 = vmatpush.xpose.msra.mxu0 0.0
        %1039 = vmatpush.xpose.msra.mxu0 %v1023
        %1040 = vmatpush.xpose.msra.mxu0 %v1021
        %1041 = vmatmul.f32.gmra.mxu0 %v1019
        %v1042 = vpop.f32.mrf.mxu0
        %v1043 = vadd.f32 %v663, %v1042
        %1044 = vdwg.mxu0
        %1045 = vrot.lane.b32.xlu0 %v572, 112
        %v1046 = vpop.permute.xlu0 %1045
        %1047 = vrot.lane.b32.xlu0 %v617, 112
        %v1048 = vpop.permute.xlu0 %1047
        %1049 = vrot.lane.b32.xlu0 %v620, 112
        %v1050 = vpop.permute.xlu0 %1049
        %v1051 = vsel %vm667, %v1046, 0
        %v1053 = vsel %vm667, %v1048, 0
        %v1055 = vsel %vm667, %v1050, 0
        %1057 = vmatpush.xpose.msra.mxu0 0.0
        %1058 = vmatpush.xpose.msra.mxu0 0.0
        %1059 = vmatpush.xpose.msra.mxu0 0.0
        %1060 = vmatpush.xpose.msra.mxu0 0.0
        %1061 = vmatpush.xpose.msra.mxu0 0.0
        %1062 = vmatpush.xpose.msra.mxu0 0.0
        %1063 = vmatpush.xpose.msra.mxu0 0.0
        %1064 = vmatpush.xpose.msra.mxu0 0.0
        %1065 = vmatpush.xpose.msra.mxu0 0.0
        %1066 = vmatpush.xpose.msra.mxu0 0.0
        %1067 = vmatpush.xpose.msra.mxu0 0.0
        %1068 = vmatpush.xpose.msra.mxu0 0.0
        %1069 = vmatpush.xpose.msra.mxu0 0.0
        %1070 = vmatpush.xpose.msra.mxu0 0.0
        %1071 = vmatpush.xpose.msra.mxu0 %v1055
        %1072 = vmatpush.xpose.msra.mxu0 %v1053
        %1073 = vmatmul.f32.gmra.mxu0 %v1051
        %v1074 = vpop.f32.mrf.mxu0
        %v1075 = vadd.f32 %v664, %v1074
        %1076 = vdwg.mxu0
        %v1077 = vsel %vm726, %v1043, -inf
        %1078 = vmax.xlane.f32.xlu0 %v1077
        %v1079 = vpop.xlane.xlu0 %1078
        %v1080 = vsel %vm726, %v1075, -inf
        %1081 = vmax.xlane.f32.xlu0 %v1080
        %v1082 = vpop.xlane.xlu0 %1081
        %v1083 = vsub.f32 %v1043, %v1079
        %v1084 = vsub.f32 %v1075, %v1082
        %v1085 = vmul.f32 %v1083, 1.442695
        %v1086 = vpow.pop %v1085
        %v1087 = vmul.f32 %v1084, 1.442695
        %v1088 = vpow.pop %v1087
        %v1089 = vsel %vm726, %v1086, 0.0
        %1090 = vadd.xlane.f32.xlu0 %v1089
        %v1091 = vpop.xlane.xlu0 %1090
        %v1092 = vsel %vm726, %v1088, 0.0
        %1093 = vadd.xlane.f32.xlu0 %v1092
        %v1094 = vpop.xlane.xlu0 %1093
        %v1095 = vrcp.pop %v1091
        %v1096 = vmul.f32 %v1091, %v1095
        %v1097 = vsub.f32 1.0, %v1096
        %v1098 = vmul.f32 %v1095, %v1097
        %v1099 = vadd.f32 %v1095, %v1098
        %vm1100 = vweird.f32 %v1091
        %vm1101 = vweird.f32 %v1095
        %vm1102 = vmor %vm1100, %vm1101
        %v1103 = vsel %vm1102, %v1095, %v1099
        %v1104 = vand.u32 2147483647, %v1091
        %vm1105 = vcmp.eq.f32.partialorder %v1104, 8.507059e+37
        %v1106 = vand.u32 %v1091, 2147483648
        %v1107 = vor.u32 1.1754944e-38, %v1106
        %v1108 = vsel %vm1105, %v1107, %v1103
        %v1109 = vrcp.pop %v1094
        %v1110 = vmul.f32 %v1094, %v1109
        %v1111 = vsub.f32 1.0, %v1110
        %v1112 = vmul.f32 %v1109, %v1111
        %v1113 = vadd.f32 %v1109, %v1112
        %vm1114 = vweird.f32 %v1094
        %vm1115 = vweird.f32 %v1109
        %vm1116 = vmor %vm1114, %vm1115
        %v1117 = vsel %vm1116, %v1109, %v1113
        %v1118 = vand.u32 2147483647, %v1094
        %vm1119 = vcmp.eq.f32.partialorder %v1118, 8.507059e+37
        %v1120 = vand.u32 %v1094, 2147483648
        %v1121 = vor.u32 1.1754944e-38, %v1120
        %v1122 = vsel %vm1119, %v1121, %v1117
        %v1123 = vmul.f32 %v1086, %v1108
        %v1124 = vmul.f32 %v1088, %v1122
        %s1125 = scalar_lea.vmem %s521, 16 [#allocation14]
        %1126 = vst.msk [vmem:[%s1125] sm:$0xff] %vm726, %v1123
        %1127 = vst.msk [vmem:[%s1125 + $0x20] sm:$0xff] %vm726, %v1124
        %1128 = vrot.lane.b32.xlu0 %v648, 112
        %v1129 = vpop.permute.xlu0 %1128
        %1130 = vrot.lane.b32.xlu0 %v651, 112
        %v1131 = vpop.permute.xlu0 %1130
        %v1135 = vsel %vm726, %v1123, 0
        %1137 = vmatpush.msra.mxu0 0.0
        %1138 = vmatpush.msra.mxu0 0.0
        %1139 = vmatpush.msra.mxu0 0.0
        %1140 = vmatpush.msra.mxu0 0.0
        %1141 = vmatpush.msra.mxu0 0.0
        %1142 = vmatpush.msra.mxu0 0.0
        %1143 = vmatpush.msra.mxu0 0.0
        %1144 = vmatpush.msra.mxu0 0.0
        %1145 = vmatpush.msra.mxu0 0.0
        %1146 = vmatpush.msra.mxu0 0.0
        %1147 = vmatpush.msra.mxu0 0.0
        %1148 = vmatpush.msra.mxu0 0.0
        %1149 = vmatpush.msra.mxu0 0.0
        %1150 = vmatpush.msra.mxu0 0.0
        %1151 = vmatpush.msra.mxu0 %v1131
        %1152 = vmatpush.msra.mxu0 %v1129
        %1153 = vmatmul.f32.gmra.mxu0 %v1135
        %v1154 = vpop.f32.mrf.mxu0
        %v1155 = vadd.f32 0.0, %v1154
        %1156 = vdwg.mxu0
        %1157 = vrot.lane.b32.xlu0 %v654, 112
        %v1158 = vpop.permute.xlu0 %1157
        %1159 = vrot.lane.b32.xlu0 %v657, 112
        %v1160 = vpop.permute.xlu0 %1159
        %v1164 = vsel %vm726, %v1124, 0
        %1166 = vmatpush.msra.mxu0 0.0
        %1167 = vmatpush.msra.mxu0 0.0
        %1168 = vmatpush.msra.mxu0 0.0
        %1169 = vmatpush.msra.mxu0 0.0
        %1170 = vmatpush.msra.mxu0 0.0
        %1171 = vmatpush.msra.mxu0 0.0
        %1172 = vmatpush.msra.mxu0 0.0
        %1173 = vmatpush.msra.mxu0 0.0
        %1174 = vmatpush.msra.mxu0 0.0
        %1175 = vmatpush.msra.mxu0 0.0
        %1176 = vmatpush.msra.mxu0 0.0
        %1177 = vmatpush.msra.mxu0 0.0
        %1178 = vmatpush.msra.mxu0 0.0
        %1179 = vmatpush.msra.mxu0 0.0
        %1180 = vmatpush.msra.mxu0 %v1160
        %1181 = vmatpush.msra.mxu0 %v1158
        %1182 = vmatmul.f32.gmra.mxu0 %v1164
        %v1183 = vpop.f32.mrf.mxu0
        %v1184 = vadd.f32 0.0, %v1183
        %1185 = vdwg.mxu0
        %1188 = vrot.lane.b32.xlu0 %v1155, 16
        %v1189 = vpop.permute.xlu0 %1188
        %1190 = vrot.lane.b32.xlu0 %v1184, 16
        %v1191 = vpop.permute.xlu0 %1190
        %vm1194 = vcmask 195712
        %1195 = vst.msk [vmem:[%s514] sm:$0xff] %vm1194, %v1189
        %1196 = vst.msk [vmem:[%s514 + $0x8] sm:$0xff] %vm1194, %v1191
        %1197 = vrot.lane.b32.xlu0 %v571, 104
        %v1198 = vpop.permute.xlu0 %1197
        %1199 = vrot.lane.b32.xlu0 %v611, 104
        %v1200 = vpop.permute.xlu0 %1199
        %1201 = vrot.lane.b32.xlu0 %v614, 104
        %v1202 = vpop.permute.xlu0 %1201
        %v1203 = vsel %vm667, %v1198, 0
        %v1205 = vsel %vm667, %v1200, 0
        %v1207 = vsel %vm667, %v1202, 0
        %1209 = vmatpush.xpose.msra.mxu0 0.0
        %1210 = vmatpush.xpose.msra.mxu0 0.0
        %1211 = vmatpush.xpose.msra.mxu0 0.0
        %1212 = vmatpush.xpose.msra.mxu0 0.0
        %1213 = vmatpush.xpose.msra.mxu0 0.0
        %1214 = vmatpush.xpose.msra.mxu0 0.0
        %1215 = vmatpush.xpose.msra.mxu0 0.0
        %1216 = vmatpush.xpose.msra.mxu0 0.0
        %1217 = vmatpush.xpose.msra.mxu0 0.0
        %1218 = vmatpush.xpose.msra.mxu0 0.0
        %1219 = vmatpush.xpose.msra.mxu0 0.0
        %1220 = vmatpush.xpose.msra.mxu0 0.0
        %1221 = vmatpush.xpose.msra.mxu0 0.0
        %1222 = vmatpush.xpose.msra.mxu0 0.0
        %1223 = vmatpush.xpose.msra.mxu0 %v1207
        %1224 = vmatpush.xpose.msra.mxu0 %v1205
        %1225 = vmatmul.f32.gmra.mxu0 %v1203
        %v1226 = vpop.f32.mrf.mxu0
        %v1227 = vadd.f32 %v663, %v1226
        %1228 = vdwg.mxu0
        %1229 = vrot.lane.b32.xlu0 %v572, 104
        %v1230 = vpop.permute.xlu0 %1229
        %1231 = vrot.lane.b32.xlu0 %v617, 104
        %v1232 = vpop.permute.xlu0 %1231
        %1233 = vrot.lane.b32.xlu0 %v620, 104
        %v1234 = vpop.permute.xlu0 %1233
        %v1235 = vsel %vm667, %v1230, 0
        %v1237 = vsel %vm667, %v1232, 0
        %v1239 = vsel %vm667, %v1234, 0
        %1241 = vmatpush.xpose.msra.mxu0 0.0
        %1242 = vmatpush.xpose.msra.mxu0 0.0
        %1243 = vmatpush.xpose.msra.mxu0 0.0
        %1244 = vmatpush.xpose.msra.mxu0 0.0
        %1245 = vmatpush.xpose.msra.mxu0 0.0
        %1246 = vmatpush.xpose.msra.mxu0 0.0
        %1247 = vmatpush.xpose.msra.mxu0 0.0
        %1248 = vmatpush.xpose.msra.mxu0 0.0
        %1249 = vmatpush.xpose.msra.mxu0 0.0
        %1250 = vmatpush.xpose.msra.mxu0 0.0
        %1251 = vmatpush.xpose.msra.mxu0 0.0
        %1252 = vmatpush.xpose.msra.mxu0 0.0
        %1253 = vmatpush.xpose.msra.mxu0 0.0
        %1254 = vmatpush.xpose.msra.mxu0 0.0
        %1255 = vmatpush.xpose.msra.mxu0 %v1239
        %1256 = vmatpush.xpose.msra.mxu0 %v1237
        %1257 = vmatmul.f32.gmra.mxu0 %v1235
        %v1258 = vpop.f32.mrf.mxu0
        %v1259 = vadd.f32 %v664, %v1258
        %1260 = vdwg.mxu0
        %v1261 = vsel %vm726, %v1227, -inf
        %1262 = vmax.xlane.f32.xlu0 %v1261
        %v1263 = vpop.xlane.xlu0 %1262
        %v1264 = vsel %vm726, %v1259, -inf
        %1265 = vmax.xlane.f32.xlu0 %v1264
        %v1266 = vpop.xlane.xlu0 %1265
        %v1267 = vsub.f32 %v1227, %v1263
        %v1268 = vsub.f32 %v1259, %v1266
        %v1269 = vmul.f32 %v1267, 1.442695
        %v1270 = vpow.pop %v1269
        %v1271 = vmul.f32 %v1268, 1.442695
        %v1272 = vpow.pop %v1271
        %v1273 = vsel %vm726, %v1270, 0.0
        %1274 = vadd.xlane.f32.xlu0 %v1273
        %v1275 = vpop.xlane.xlu0 %1274
        %v1276 = vsel %vm726, %v1272, 0.0
        %1277 = vadd.xlane.f32.xlu0 %v1276
        %v1278 = vpop.xlane.xlu0 %1277
        %v1279 = vrcp.pop %v1275
        %v1280 = vmul.f32 %v1275, %v1279
        %v1281 = vsub.f32 1.0, %v1280
        %v1282 = vmul.f32 %v1279, %v1281
        %v1283 = vadd.f32 %v1279, %v1282
        %vm1284 = vweird.f32 %v1275
        %vm1285 = vweird.f32 %v1279
        %vm1286 = vmor %vm1284, %vm1285
        %v1287 = vsel %vm1286, %v1279, %v1283
        %v1288 = vand.u32 2147483647, %v1275
        %vm1289 = vcmp.eq.f32.partialorder %v1288, 8.507059e+37
        %v1290 = vand.u32 %v1275, 2147483648
        %v1291 = vor.u32 1.1754944e-38, %v1290
        %v1292 = vsel %vm1289, %v1291, %v1287
        %v1293 = vrcp.pop %v1278
        %v1294 = vmul.f32 %v1278, %v1293
        %v1295 = vsub.f32 1.0, %v1294
        %v1296 = vmul.f32 %v1293, %v1295
        %v1297 = vadd.f32 %v1293, %v1296
        %vm1298 = vweird.f32 %v1278
        %vm1299 = vweird.f32 %v1293
        %vm1300 = vmor %vm1298, %vm1299
        %v1301 = vsel %vm1300, %v1293, %v1297
        %v1302 = vand.u32 2147483647, %v1278
        %vm1303 = vcmp.eq.f32.partialorder %v1302, 8.507059e+37
        %v1304 = vand.u32 %v1278, 2147483648
        %v1305 = vor.u32 1.1754944e-38, %v1304
        %v1306 = vsel %vm1303, %v1305, %v1301
        %v1307 = vmul.f32 %v1270, %v1292
        %v1308 = vmul.f32 %v1272, %v1306
        %s1309 = scalar_lea.vmem %s521, 24 [#allocation14]
        %1310 = vst.msk [vmem:[%s1309] sm:$0xff] %vm726, %v1307
        %1311 = vst.msk [vmem:[%s1309 + $0x20] sm:$0xff] %vm726, %v1308
        %1312 = vrot.lane.b32.xlu0 %v648, 104
        %v1313 = vpop.permute.xlu0 %1312
        %1314 = vrot.lane.b32.xlu0 %v651, 104
        %v1315 = vpop.permute.xlu0 %1314
        %v1319 = vsel %vm726, %v1307, 0
        %1321 = vmatpush.msra.mxu0 0.0
        %1322 = vmatpush.msra.mxu0 0.0
        %1323 = vmatpush.msra.mxu0 0.0
        %1324 = vmatpush.msra.mxu0 0.0
        %1325 = vmatpush.msra.mxu0 0.0
        %1326 = vmatpush.msra.mxu0 0.0
        %1327 = vmatpush.msra.mxu0 0.0
        %1328 = vmatpush.msra.mxu0 0.0
        %1329 = vmatpush.msra.mxu0 0.0
        %1330 = vmatpush.msra.mxu0 0.0
        %1331 = vmatpush.msra.mxu0 0.0
        %1332 = vmatpush.msra.mxu0 0.0
        %1333 = vmatpush.msra.mxu0 0.0
        %1334 = vmatpush.msra.mxu0 0.0
        %1335 = vmatpush.msra.mxu0 %v1315
        %1336 = vmatpush.msra.mxu0 %v1313
        %1337 = vmatmul.f32.gmra.mxu0 %v1319
        %v1338 = vpop.f32.mrf.mxu0
        %v1339 = vadd.f32 0.0, %v1338
        %1340 = vdwg.mxu0
        %1341 = vrot.lane.b32.xlu0 %v654, 104
        %v1342 = vpop.permute.xlu0 %1341
        %1343 = vrot.lane.b32.xlu0 %v657, 104
        %v1344 = vpop.permute.xlu0 %1343
        %v1348 = vsel %vm726, %v1308, 0
        %1350 = vmatpush.msra.mxu0 0.0
        %1351 = vmatpush.msra.mxu0 0.0
        %1352 = vmatpush.msra.mxu0 0.0
        %1353 = vmatpush.msra.mxu0 0.0
        %1354 = vmatpush.msra.mxu0 0.0
        %1355 = vmatpush.msra.mxu0 0.0
        %1356 = vmatpush.msra.mxu0 0.0
        %1357 = vmatpush.msra.mxu0 0.0
        %1358 = vmatpush.msra.mxu0 0.0
        %1359 = vmatpush.msra.mxu0 0.0
        %1360 = vmatpush.msra.mxu0 0.0
        %1361 = vmatpush.msra.mxu0 0.0
        %1362 = vmatpush.msra.mxu0 0.0
        %1363 = vmatpush.msra.mxu0 0.0
        %1364 = vmatpush.msra.mxu0 %v1344
        %1365 = vmatpush.msra.mxu0 %v1342
        %1366 = vmatmul.f32.gmra.mxu0 %v1348
        %v1367 = vpop.f32.mrf.mxu0
        %v1368 = vadd.f32 0.0, %v1367
        %1369 = vdwg.mxu0
        %1372 = vrot.lane.b32.xlu0 %v1339, 24
        %v1373 = vpop.permute.xlu0 %1372
        %1374 = vrot.lane.b32.xlu0 %v1368, 24
        %v1375 = vpop.permute.xlu0 %1374
        %vm1378 = vcmask 261312
        %1379 = vst.msk [vmem:[%s514] sm:$0xff] %vm1378, %v1373
        %1380 = vst.msk [vmem:[%s514 + $0x8] sm:$0xff] %vm1378, %v1375
        %s1381 = sand.u32 %s248, 1
        %s1382 = scalar_lea.sflag [#allocation4], %s1381
        %s1383 = sand.u32 %s248, 1
        %s1384 = smul.addr %s1383, 16
        %s1385 = scalar_lea.vmem [#allocation13], %s1384
        %s1386 = sand.u32 %s274, 1
        %s1387 = scalar_lea.sflag [#allocation15], %s1386
        %s1388 = sand.u32 %s274, 1
        %s1389 = smul.addr %s1388, 64
        %s1390 = scalar_lea.vmem [#allocation14], %s1389
        // Predicated region
        $region81: #{tpu_custom_call.1} parent=55 // pred_check
          %p1391 = pneg %p258
        $region82: #{tpu_custom_call.1} parent=55 // pred_check_branch
          %1393 = sbr.rel (%p1391) target = $region84
        $region83: #{tpu_custom_call.1} parent=55 // pred_region
          %s1394 = smul.u32 2, %s36
          %1396 = vsyncadd %s1382, 0
          %s1397 = smul.addr %s1394, 8
          %s1398 = scalar_lea.hbm %s9, %s1397
          %s1399 = sshll.u32 %s1385, 4
          %s1400 = int_to_ptr.vmem [resolvable:$true] %s1399
          %s1401 = sshll.u32 %s1398, 4
          %s1402 = int_to_ptr.hbm [resolvable:$true] %s1401
          %1407 = dma.vmem_to_hbm [thread:$0]  %s1400, 256, %s1402, %s1382, 128, 128, 8
        $region84: #{tpu_custom_call.1} parent=55 // pred_fallthru
          _
        // Predicated region
        $region85: #{tpu_custom_call.1} parent=55 // pred_check
          %p1408 = pneg %p284
        $region86: #{tpu_custom_call.1} parent=55 // pred_check_branch
          %1410 = sbr.rel (%p1408) target = $region88
        $region87: #{tpu_custom_call.1} parent=55 // pred_region
          %s1411 = smul.u32 2, %s36
          %1413 = vsyncadd %s1387, 0
          %s1414 = smul.addr %s1411, 4
          %s1415 = smul.addr %s1414, 8
          %s1416 = scalar_lea.hbm %s10, %s1415
          %s1417 = sshll.u32 %s1390, 4
          %s1418 = int_to_ptr.vmem [resolvable:$true] %s1417
          %s1419 = sshll.u32 %s1416, 4
          %s1420 = int_to_ptr.hbm [resolvable:$true] %s1419
          %1425 = dma.vmem_to_hbm [thread:$0]  %s1418, 1024, %s1420, %s1387, 128, 128, 8
        $region88: #{tpu_custom_call.1} parent=55 // pred_fallthru
          _
      $region56: #{tpu_custom_call.1} parent=5 // pred_fallthru
        _
      %p1426 = scmp.le.s32.totalorder 2, %s31
      // Predicated region
      $region89: #{tpu_custom_call.1} parent=5 // pred_check
        %p1427 = pneg %p1426
      $region90: #{tpu_custom_call.1} parent=5 // pred_check_branch
        %1429 = sbr.rel (%p1427) target = $region92
      $region91: #{tpu_custom_call.1} parent=5 // pred_region
        %s1430 = ssub.s32 %s31, 2
        // Predicated region
        $region93: #{tpu_custom_call.1} parent=91 // pred_check
          %p1431 = pneg %p264
        $region94: #{tpu_custom_call.1} parent=91 // pred_check_branch
          %1433 = sbr.rel (%p1431) target = $region96
        $region95: #{tpu_custom_call.1} parent=91 // pred_region
          %s1434 = sand.u32 %s249, 1
          %s1435 = scalar_lea.sflag [#allocation4], %s1434
          %s1436 = sand.u32 %s249, 1
          %s1437 = smul.addr %s1436, 16
          %s1438 = scalar_lea.vmem [#allocation13], %s1437
          %1440 = dma.done %s1435, 256
        $region96: #{tpu_custom_call.1} parent=91 // pred_fallthru
          _
        // Predicated region
        $region97: #{tpu_custom_call.1} parent=91 // pred_check
          %p1441 = pneg %p290
        $region98: #{tpu_custom_call.1} parent=91 // pred_check_branch
          %1443 = sbr.rel (%p1441) target = $region100
        $region99: #{tpu_custom_call.1} parent=91 // pred_region
          %s1444 = sand.u32 %s275, 1
          %s1445 = scalar_lea.sflag [#allocation15], %s1444
          %s1446 = sand.u32 %s275, 1
          %s1447 = smul.addr %s1446, 64
          %s1448 = scalar_lea.vmem [#allocation14], %s1447
          %1450 = dma.done %s1445, 1024
        $region100: #{tpu_custom_call.1} parent=91 // pred_fallthru
          _
      $region92: #{tpu_custom_call.1} parent=5 // pred_fallthru
        _
    $region6: #{tpu_custom_call.1} parent=1 // loop_footer
      %s35 = sadd.s32 1, %s31
    $region7: #{tpu_custom_call.1} parent=1 // loop_footer_branch
      %30 = sbr.rel target = $region3
    $region8: #{tpu_custom_call.1} parent=1 // loop_exit
      _
    %1451 = vsyncpa [#allocation3], 1
    %s1452 = scalar_lea.sflag [#allocation3], 1
    %1453 = vsyncpa %s1452, 1
    %1454 = vsyncpa [#allocation6], 1
    %s1455 = scalar_lea.sflag [#allocation6], 1
    %1456 = vsyncpa %s1455, 1
    %1457 = vsyncpa [#allocation9], 1
    %1458 = vsyncpa [#allocation12], 1
    %1459 = vsyncpa [#allocation4], 1
    %s1460 = scalar_lea.sflag [#allocation4], 1
    %1461 = vsyncpa %s1460, 1
    %1462 = vsyncpa [#allocation15], 1
    %s1463 = scalar_lea.sflag [#allocation15], 1
    %1464 = vsyncpa %s1463, 1

</llo_original>
